<compile_context>
chip_gen: v7x
topology: tpu7x:2x2x1
jax: 0.10.0
libtpu: 0.0.40
codegen_flags: <defaults>
</compile_context>

<pallas_src>
import functools

import numpy as np

import jax
import jax.numpy as jnp
from jax.experimental import pallas as pl
from jax.experimental.pallas import tpu as pltpu


# ------------------------------ small helpers ------------------------------

@functools.lru_cache(maxsize=None)
def _vmem_limit_bytes():
    """Generation-aware scoped-VMEM limit for CompilerParams."""
    try:
        cap = int(pltpu.get_tpu_info().vmem_capacity_bytes)
    except Exception:
        return 32 * 1024 * 1024
    if cap >= 128 * 1024 * 1024:          # v5e / v6e: 128 MiB physical
        return 96 * 1024 * 1024
    return min(40 * 1024 * 1024, (cap * 5) // 8)   # v7x-class: 64 MiB physical


def _pick_tile(dim, target, align):
    """Largest block <= target that divides `dim` and is `align`-aligned.

    Falls back to the full dim (always a legal block size). For transformer
    shapes a suitable aligned divisor always exists, so the fallback never
    blows the VMEM budget in practice.
    """
    if dim <= target:
        return dim
    t = (target // align) * align
    while t >= align:
        if dim % t == 0:
            return t
        t -= align
    return dim


def _erf(x):
    # Abramowitz & Stegun 7.1.26 (|err| < 1.5e-7): only exp/mul/add/where, so it
    # lowers cleanly in Mosaic and matches exact (erf) GELU to float tolerance.
    a = jnp.abs(x)
    t = 1.0 / (1.0 + 0.3275911 * a)
    poly = t * (0.254829592 + t * (-0.284496736 + t * (1.421413741 +
             t * (-1.453152027 + t * 1.061405429))))
    e = 1.0 - poly * jnp.exp(-a * a)
    return jnp.where(x >= 0.0, e, -e)


def _gelu_exact(x):
    return 0.5 * x * (1.0 + _erf(x * 0.7071067811865476))


# --------------------- fused LN + matmul + act + residual ------------------

def _make_linear_kernel(num_outs, has_bias, has_ln, has_res, gelu):
    def kernel(*refs):
        refs = list(refs)
        x_ref = refs.pop(0)
        w_refs = [refs.pop(0) for _ in range(num_outs)]
        b_refs = ([refs.pop(0) for _ in range(num_outs)] if has_bias
                  else [None] * num_outs)
        g_ref = refs.pop(0) if has_ln else None
        beta_ref = refs.pop(0) if has_ln else None
        r_ref = refs.pop(0) if has_res else None
        o_refs = [refs.pop(0) for _ in range(num_outs)]
        ln_ref = refs.pop(0) if has_ln else None

        if has_ln:
            # LayerNorm is computed once per M tile (j == 0) and cached in a
            # bf16 VMEM scratch, so it is NOT recomputed for every N tile.
            @pl.when(pl.program_id(1) == 0)
            def _():
                x = x_ref[...].astype(jnp.float32)
                mu = jnp.mean(x, axis=-1, keepdims=True)
                var = jnp.mean(jnp.square(x - mu), axis=-1, keepdims=True)
                xn = (x - mu) * jax.lax.rsqrt(var + 1e-5)
                xn = (xn * g_ref[...].astype(jnp.float32)
                      + beta_ref[...].astype(jnp.float32))
                ln_ref[...] = xn.astype(ln_ref.dtype)
            xin = ln_ref[...]
        else:
            xin = x_ref[...]
        xin = xin.astype(w_refs[0].dtype)          # bf16 MXU operand

        for w_ref, b_ref, o_ref in zip(w_refs, b_refs, o_refs):
            acc = jnp.dot(xin, w_ref[...], preferred_element_type=jnp.float32)
            if has_bias:
                acc = acc + b_ref[...].astype(jnp.float32)
            if gelu:
                acc = _gelu_exact(acc)
            if has_res:
                acc = acc + r_ref[...].astype(jnp.float32)
            o_ref[...] = acc.astype(o_ref.dtype)

    return kernel


def fused_linear(x2d, ws, bs=None, *, ln_g=None, ln_b=None, residual=None,
                 gelu=False, tm_target=1024, tn_target=256):
    """out_k = [LN(x)] @ w_k (+ b_k) [-> GELU] (+ residual), tiled over (M, N).

    `ws` may be a single (K, N) weight or a tuple of weights sharing N (e.g.
    the q/k/v projections); the outputs mirror that structure. Weights are
    expected pre-cast to bf16 by the caller (prepare_params).
    """
    single = not isinstance(ws, (tuple, list))
    ws = [ws] if single else list(ws)
    num_outs = len(ws)
    if bs is not None and not isinstance(bs, (tuple, list)):
        bs = [bs]

    M, K = x2d.shape
    N = ws[0].shape[1]
    for w in ws:
        assert w.shape == (K, N)
    has_bias = bs is not None
    has_ln = ln_g is not None
    has_res = residual is not None
    assert not (has_res and num_outs > 1)

    vmem_limit = _vmem_limit_bytes()
    budget = int(vmem_limit * 0.7)
    tn = _pick_tile(N, tn_target, 128)         # lane-dense N tiles
    w_itemsize = jnp.dtype(ws[0].dtype).itemsize

    def usage(tm_):
        b = 2 * tm_ * K * 4                               # x block (f32), 2 bufs
        b += 2 * num_outs * K * tn * w_itemsize           # weight blocks
        b += 2 * num_outs * tm_ * tn * 4                  # output blocks
        if has_res:
            b += 2 * tm_ * tn * 4
        if has_ln:
            b += tm_ * K * 2                              # LN cache (bf16)
        if has_bias:
            b += 2 * num_outs * tn * 4
        return b

    tm = _pick_tile(M, tm_target, 8)
    while tm > 8 and usage(tm) > budget:
        nxt = _pick_tile(M, max(8, tm // 2), 8)
        if nxt == tm:
            break
        tm = nxt
    # Prefer >= 2 M blocks (megacore on v7x) as long as tiles stay >= 256 rows.
    if M // tm < 2:
        smaller = _pick_tile(M, max(8, tm // 2), 8)
        if smaller < tm and smaller >= 256:
            tm = smaller

    grid = (M // tm, N // tn)

    in_specs = [pl.BlockSpec((tm, K), lambda i, j: (i, 0))]
    args = [x2d]
    for w in ws:
        in_specs.append(pl.BlockSpec((K, tn), lambda i, j: (0, j)))
        args.append(w)
    if has_bias:
        for b in bs:
            in_specs.append(pl.BlockSpec((1, tn), lambda i, j: (0, j)))
            args.append(b.reshape(1, N))
    if has_ln:
        in_specs.append(pl.BlockSpec((1, K), lambda i, j: (0, 0)))
        args.append(ln_g.reshape(1, K))
        in_specs.append(pl.BlockSpec((1, K), lambda i, j: (0, 0)))
        args.append(ln_b.reshape(1, K))
    if has_res:
        in_specs.append(pl.BlockSpec((tm, tn), lambda i, j: (i, j)))
        args.append(residual)

    out_spec = pl.BlockSpec((tm, tn), lambda i, j: (i, j))
    out_sds = jax.ShapeDtypeStruct((M, N), x2d.dtype)
    scratch = (pltpu.VMEM((tm, K), jnp.bfloat16),) if has_ln else ()

    kernel = _make_linear_kernel(num_outs, has_bias, has_ln, has_res, gelu)
    outs = pl.pallas_call(
        kernel,
        out_shape=out_sds if num_outs == 1 else tuple([out_sds] * num_outs),
        grid=grid,
        in_specs=in_specs,
        out_specs=out_spec if num_outs == 1 else tuple([out_spec] * num_outs),
        scratch_shapes=scratch,
        compiler_params=pltpu.CompilerParams(
            # j must be sequential ("arbitrary") when the LN cache is reused
            # across N tiles; i stays "parallel" for megacore sharding.
            dimension_semantics=("parallel", "arbitrary" if has_ln else "parallel"),
            vmem_limit_bytes=vmem_limit),
    )(*args)
    return outs


# ------------------- fused window attention + LePE kernel -------------------

def _lepe_masks(H_sp, W_sp):
    """Static per-token validity masks for the 9 depthwise-conv taps."""
    n = H_sp * W_sp
    t = np.arange(n)
    row, col = t // W_sp, t % W_sp
    m = np.zeros((9, n, 1), np.float32)
    idx = 0
    for dh in (-1, 0, 1):
        for dw in (-1, 0, 1):
            valid = ((row + dh >= 0) & (row + dh < H_sp) &
                     (col + dw >= 0) & (col + dw < W_sp))
            m[idx, :, 0] = valid.astype(np.float32)
            idx += 1
    return jnp.asarray(m)


def _attn_lepe_kernel(q_ref, k_ref, v_ref, mw_ref, cb_ref, o_ref, *,
                      nh, W_sp, scale, mxu_dtype):
    wb, n, Cb = q_ref.shape
    d = Cb // nh

    q = (q_ref[...].astype(jnp.float32) * scale).astype(mxu_dtype)
    k = k_ref[...].astype(mxu_dtype)
    v_f32 = v_ref[...].astype(jnp.float32)
    v = v_f32.astype(mxu_dtype)

    # ---- LePE: depthwise 3x3 conv (zero padded per window) in token space ----
    # mask(border) is already folded into the per-tap weights mw (9, n, Cb), so
    # each tap is one multiply + one add:  out[t] += v[t + dh*W_sp + dw] * mw[tap][t]
    # jnp.roll with a static shift lowers to sublane slice+concat (cheap, not a
    # VPU iota/select path).
    mw = mw_ref[...].astype(jnp.float32)
    lepe = jnp.zeros((wb, n, Cb), jnp.float32)
    tap = 0
    for dh in (-1, 0, 1):
        for dw in (-1, 0, 1):
            shift = dh * W_sp + dw
            src = v_f32 if shift == 0 else jnp.roll(v_f32, -shift, axis=1)
            lepe = lepe + src * mw[tap]
            tap += 1
    lepe = lepe + cb_ref[0, 0, :].astype(jnp.float32)

    # ---- multi-head attention (heads = lane slices of the channel dim) ----
    # Each head's output (+ its lepe slice) is stored straight into the
    # corresponding lane slice of o_ref: no nh-way concat relayout.
    for h in range(nh):
        sl = slice(h * d, (h + 1) * d)
        s = jnp.einsum("wnd,wmd->wnm", q[:, :, sl], k[:, :, sl],
                       preferred_element_type=jnp.float32)
        s = s - jnp.max(s, axis=-1, keepdims=True)
        p = jnp.exp(s)
        # approx reciprocal runs on the EUP slot; ~1e-3 rel. error vs exact.
        p = p * pl.reciprocal(jnp.sum(p, axis=-1, keepdims=True), approx=True)
        out_h = jnp.einsum("wnm,wmd->wnd", p.astype(mxu_dtype), v[:, :, sl],
                           preferred_element_type=jnp.float32)
        o_ref[:, :, sl] = (out_h + lepe[:, :, sl]).astype(o_ref.dtype)


def _pick_window_batch(n_windows, n_tokens, cb, target_bytes=2 << 20):
    """Byte-budgeted windows-per-grid-step; keeps >=2 grid steps when possible."""
    per_win = max(1, 5 * n_tokens * cb * 4)      # q,k,v,out blocks + lepe temps
    wb = max(1, min(n_windows, target_bytes // per_win))
    if wb >= n_windows and n_windows > 1:        # both v7x cores get work
        wb = max(1, n_windows // 2)
    while n_windows % wb:
        wb -= 1
    return wb


def window_attention_lepe_pallas(q_win, k_win, v_win, conv_w, conv_b, *,
                                 num_heads, H_sp, W_sp, scale,
                                 mxu_dtype=jnp.bfloat16):
    nW, n, Cb = q_win.shape
    assert n == H_sp * W_sp and Cb % num_heads == 0
    wb = _pick_window_batch(nW, n, Cb)
    grid = (nW // wb,)
    spec = pl.BlockSpec((wb, n, Cb), lambda i: (i, 0, 0))

    # Pre-fold the window-border mask into the 9 depthwise tap weights (tiny).
    masks = _lepe_masks(H_sp, W_sp)                           # (9, n, 1)
    mw = masks * conv_w.reshape(9, 1, Cb).astype(jnp.float32)  # (9, n, Cb)

    kernel = functools.partial(_attn_lepe_kernel, nh=num_heads, W_sp=W_sp,
                               scale=scale, mxu_dtype=mxu_dtype)
    return pl.pallas_call(
        kernel,
        out_shape=jax.ShapeDtypeStruct((nW, n, Cb), q_win.dtype),
        grid=grid,
        in_specs=[spec, spec, spec,
                  pl.BlockSpec((9, n, Cb), lambda i: (0, 0, 0)),
                  pl.BlockSpec((1, 1, Cb), lambda i: (0, 0, 0))],
        out_specs=spec,
        compiler_params=pltpu.CompilerParams(
            dimension_semantics=("parallel",),
            vmem_limit_bytes=_vmem_limit_bytes()),
    )(q_win, k_win, v_win, mw, conv_b.reshape(1, 1, Cb))


# --------------------------- pure-JAX references ----------------------------

def layernorm_ref(x2d, g, b):
    mu = jnp.mean(x2d, axis=-1, keepdims=True)
    var = jnp.mean((x2d - mu) ** 2, axis=-1, keepdims=True)
    return (x2d - mu) * jax.lax.rsqrt(var + 1e-5) * g + b


def window_attention_lepe_ref(q_win, k_win, v_win, conv_w, conv_b, *,
                              num_heads, H_sp, W_sp, scale):
    nW, n, Cb = q_win.shape
    d = Cb // num_heads
    v_img = v_win.reshape(nW, H_sp, W_sp, Cb)
    xp = jnp.pad(v_img, ((0, 0), (1, 1), (1, 1), (0, 0)))
    lepe = sum(xp[:, dh:dh + H_sp, dw:dw + W_sp, :] * conv_w[dh, dw, :]
               for dh in range(3) for dw in range(3)) + conv_b
    lepe = lepe.reshape(nW, n, Cb)

    def heads(t):
        return jnp.transpose(t.reshape(nW, n, num_heads, d), (0, 2, 1, 3))

    qh, kh, vh = heads(q_win), heads(k_win), heads(v_win)
    s = jnp.einsum("whnd,whmd->whnm", qh * scale, kh)
    p = jax.nn.softmax(s, axis=-1)
    o = jnp.einsum("whnm,whmd->whnd", p, vh)
    return jnp.transpose(o, (0, 2, 1, 3)).reshape(nW, n, Cb) + lepe


# ------------------------------ model glue ----------------------------------

def _to_windows(t, H, W, H_sp, W_sp):
    B, L, Cb = t.shape
    t = t.reshape(B, H // H_sp, H_sp, W // W_sp, W_sp, Cb)
    t = jnp.transpose(t, (0, 1, 3, 2, 4, 5))
    return t.reshape(-1, H_sp * W_sp, Cb)


def _from_windows(t, H, W, H_sp, W_sp):
    nW, _, Cb = t.shape
    B = nW // ((H // H_sp) * (W // W_sp))
    t = t.reshape(B, H // H_sp, W // W_sp, H_sp, W_sp, Cb)
    t = jnp.transpose(t, (0, 1, 3, 2, 4, 5))
    return t.reshape(B, H * W, Cb)


def lepe_attention_branch(q, k, v, H, W, H_sp, W_sp, num_heads, conv_w, conv_b,
                          *, use_pallas, mxu_dtype):
    B, L, Cb = q.shape
    scale = (Cb // num_heads) ** (-0.5)
    qw = _to_windows(q, H, W, H_sp, W_sp)
    kw = _to_windows(k, H, W, H_sp, W_sp)
    vw = _to_windows(v, H, W, H_sp, W_sp)
    if use_pallas:
        ow = window_attention_lepe_pallas(qw, kw, vw, conv_w, conv_b,
                                          num_heads=num_heads, H_sp=H_sp,
                                          W_sp=W_sp, scale=scale,
                                          mxu_dtype=mxu_dtype)
    else:
        ow = window_attention_lepe_ref(qw, kw, vw, conv_w, conv_b,
                                       num_heads=num_heads, H_sp=H_sp,
                                       W_sp=W_sp, scale=scale)
    return _from_windows(ow, H, W, H_sp, W_sp)


def prepare_params(p, dim, mxu_dtype=jnp.bfloat16):
    """One-time wrapper-level prep: split the qkv weight into q/k/v and pre-cast
    every matmul weight to bf16 so kernels stream half the HBM bytes."""
    out = dict(p)
    out["wq"] = p["qkv_w"][:, :dim].astype(mxu_dtype)
    out["wk"] = p["qkv_w"][:, dim:2 * dim].astype(mxu_dtype)
    out["wv"] = p["qkv_w"][:, 2 * dim:].astype(mxu_dtype)
    out["proj_w_lp"] = p["proj_w"].astype(mxu_dtype)
    out["fc1_w_lp"] = p["fc1_w"].astype(mxu_dtype)
    out["fc2_w_lp"] = p["fc2_w"].astype(mxu_dtype)
    return out


def cswin_block_forward(x_nchw, p, *, reso, split_size, num_heads,
                        use_pallas=True, mxu_dtype=jnp.bfloat16):
    B, C, H, W = x_nchw.shape
    L = H * W
    x = jnp.transpose(x_nchw, (0, 2, 3, 1)).reshape(B, L, C)   # b (h w) c
    x2d = x.reshape(B * L, C)

    if use_pallas:
        pp = p if "wq" in p else prepare_params(p, C, mxu_dtype)
        # norm1 fused into the qkv matmul prologue (qkv_bias=False); q/k/v are
        # emitted as three separate outputs (no (M,3C) tensor + XLA slices).
        q2d, k2d, v2d = fused_linear(x2d, (pp["wq"], pp["wk"], pp["wv"]), None,
                                     ln_g=pp["norm1_w"], ln_b=pp["norm1_b"])
        q = q2d.reshape(B, L, C)
        k = k2d.reshape(B, L, C)
        v = v2d.reshape(B, L, C)
    else:
        pp = p
        qkv2d = layernorm_ref(x2d, p["norm1_w"], p["norm1_b"]) @ p["qkv_w"]
        qkv = qkv2d.reshape(B, L, 3 * C)
        q, k, v = qkv[..., :C], qkv[..., C:2 * C], qkv[..., 2 * C:]

    last_stage = (reso == split_size)
    if not last_stage:
        Ch, nh = C // 2, num_heads // 2
        # Per-branch channel halves: the slice fuses into the windowing copy.
        # idx=0 branch: H_sp = reso, W_sp = split_size
        x1 = lepe_attention_branch(q[..., :Ch], k[..., :Ch], v[..., :Ch], H, W,
                                   reso, split_size, nh, pp["conv0_w"],
                                   pp["conv0_b"], use_pallas=use_pallas,
                                   mxu_dtype=mxu_dtype)
        # idx=1 branch: H_sp = split_size, W_sp = reso
        x2 = lepe_attention_branch(q[..., Ch:], k[..., Ch:], v[..., Ch:], H, W,
                                   split_size, reso, nh, pp["conv1_w"],
                                   pp["conv1_b"], use_pallas=use_pallas,
                                   mxu_dtype=mxu_dtype)
        attened = jnp.concatenate([x1, x2], axis=2)
    else:
        attened = lepe_attention_branch(q, k, v, H, W, reso, reso, num_heads,
                                        pp["conv0_w"], pp["conv0_b"],
                                        use_pallas=use_pallas,
                                        mxu_dtype=mxu_dtype)

    a2d = attened.reshape(B * L, C)
    if use_pallas:
        # proj (+ first residual), norm2+fc1+GELU, fc2 (+ second residual)
        x2d = fused_linear(a2d, pp["proj_w_lp"], pp["proj_b"], residual=x2d)
        hid = fused_linear(x2d, pp["fc1_w_lp"], pp["fc1_b"],
                           ln_g=pp["norm2_w"], ln_b=pp["norm2_b"], gelu=True)
        x2d = fused_linear(hid, pp["fc2_w_lp"], pp["fc2_b"], residual=x2d)
    else:
        x2d = x2d + (a2d @ p["proj_w"] + p["proj_b"])
        y = layernorm_ref(x2d, p["norm2_w"], p["norm2_b"])
        y = jax.nn.gelu(y @ p["fc1_w"] + p["fc1_b"], approximate=False)
        x2d = x2d + (y @ p["fc2_w"] + p["fc2_b"])

    return jnp.transpose(x2d.reshape(B, H, W, C), (0, 3, 1, 2))   # back to NCHW


# ------------------------------ parameters ----------------------------------

def init_params(key, dim, reso, split_size, mlp_ratio=4.0):
    last_stage = (reso == split_size)
    cb = dim if last_stage else dim // 2          # channels per attention branch
    hidden = int(dim * mlp_ratio)
    ks = jax.random.split(key, 16)

    def nrm(k, shape, s=0.02):
        return (s * jax.random.normal(k, shape)).astype(jnp.float32)

    return {
        "norm1_w": (jnp.ones((dim,)) + 0.1 * jax.random.normal(ks[0], (dim,))).astype(jnp.float32),
        "norm1_b": nrm(ks[1], (dim,)),
        "qkv_w":   nrm(ks[2], (dim, 3 * dim)),     # PyTorch weight (3C, C) transposed
        "proj_w":  nrm(ks[3], (dim, dim)),
        "proj_b":  nrm(ks[4], (dim,)),
        # depthwise conv weights stored channels-last: PyTorch (Cb,1,3,3) -> (3,3,Cb)
        "conv0_w": nrm(ks[5], (3, 3, cb)),
        "conv0_b": nrm(ks[6], (cb,)),
        "conv1_w": nrm(ks[7], (3, 3, cb)),
        "conv1_b": nrm(ks[8], (cb,)),
        "norm2_w": (jnp.ones((dim,)) + 0.1 * jax.random.normal(ks[9], (dim,))).astype(jnp.float32),
        "norm2_b": nrm(ks[10], (dim,)),
        "fc1_w":   nrm(ks[11], (dim, hidden)),
        "fc1_b":   nrm(ks[12], (hidden,)),
        "fc2_w":   nrm(ks[13], (hidden, dim)),
        "fc2_b":   nrm(ks[14], (dim,)),
    }


# --------------------------------- main --------------------------------------

if __name__ == "__main__":
    B, C, H, W = 2, 32, 16, 16
    reso, split_size, num_heads = H, 2, 4     # not last stage -> 2 branches

    key = jax.random.PRNGKey(0)
    kx, kp, ku = jax.random.split(key, 3)
    x = jax.random.normal(kx, (B, C, H, W), dtype=jnp.float32)
    params = init_params(kp, C, reso, split_size, mlp_ratio=4.0)

    # --- unit check: fused LN + matmul + GELU kernel (multi N-tile LN cache) ---
    ks = jax.random.split(ku, 8)
    M, K, N = 512, 32, 512
    xt = jax.random.normal(ks[0], (M, K), jnp.float32)
    wt = 0.05 * jax.random.normal(ks[1], (K, N), jnp.float32)
    bt = 0.05 * jax.random.normal(ks[2], (N,), jnp.float32)
    gt = 1.0 + 0.1 * jax.random.normal(ks[3], (K,), jnp.float32)
    bet = 0.1 * jax.random.normal(ks[4], (K,), jnp.float32)
    got = jax.block_until_ready(fused_linear(
        xt, wt.astype(jnp.bfloat16), bt, ln_g=gt, ln_b=bet, gelu=True))
    want = jax.nn.gelu(layernorm_ref(xt, gt, bet) @ wt + bt, approximate=False)
    assert jnp.allclose(got, want, atol=1e-2, rtol=1e-2), \
        float(jnp.max(jnp.abs(got - want)))

    # --- unit check: fused window attention + LePE kernel ---
    H_sp_t, W_sp_t, nh_t = 4, 2, 2
    nW_t, n_t, Cb_t = 16, H_sp_t * W_sp_t, 16
    qt = 0.5 * jax.random.normal(ks[5], (nW_t, n_t, Cb_t), jnp.float32)
    kt = 0.5 * jax.random.normal(ks[6], (nW_t, n_t, Cb_t), jnp.float32)
    vt = jax.random.normal(ks[7], (nW_t, n_t, Cb_t), jnp.float32)
    cw = 0.1 * jax.random.normal(ks[0], (3, 3, Cb_t), jnp.float32)
    cbias = 0.1 * jax.random.normal(ks[1], (Cb_t,), jnp.float32)
    sc = (Cb_t // nh_t) ** (-0.5)
    got = jax.block_until_ready(window_attention_lepe_pallas(
        qt, kt, vt, cw, cbias, num_heads=nh_t, H_sp=H_sp_t, W_sp=W_sp_t, scale=sc))
    want = window_attention_lepe_ref(qt, kt, vt, cw, cbias, num_heads=nh_t,
                                     H_sp=H_sp_t, W_sp=W_sp_t, scale=sc)
    assert jnp.allclose(got, want, atol=2e-2, rtol=2e-2), \
        float(jnp.max(jnp.abs(got - want)))

    # --- end-to-end CSWinBlock forward: Pallas vs pure-JAX reference ---
    prepped = prepare_params(params, C)           # one-time bf16 weight prep
    fwd = jax.jit(functools.partial(
        cswin_block_forward, reso=reso, split_size=split_size,
        num_heads=num_heads, use_pallas=True))
    out = jax.block_until_ready(fwd(x, prepped))

    ref = jax.block_until_ready(cswin_block_forward(
        x, params, reso=reso, split_size=split_size,
        num_heads=num_heads, use_pallas=False))

    assert out.shape == (B, C, H, W), out.shape
    err = float(jnp.max(jnp.abs(out - ref)))
    assert jnp.allclose(out, ref, atol=3e-3, rtol=3e-3), err
    print("KERNEL_OK")
</pallas_src>

<mosaic_0001>
module attributes {stable_mosaic.version = 11 : i64} {
  func.func @kernel(%arg0: i32, %arg1: i32, %arg2: memref<256x32xf32, #tpu.memory_space<vmem>>, %arg3: memref<32x256xbf16, #tpu.memory_space<vmem>>, %arg4: memref<1x256xf32, #tpu.memory_space<vmem>>, %arg5: memref<1x32xf32, #tpu.memory_space<vmem>>, %arg6: memref<1x32xf32, #tpu.memory_space<vmem>>, %arg7: memref<256x256xf32, #tpu.memory_space<vmem>>, %arg8: memref<256x32xbf16, #tpu.memory_space<vmem>>) attributes {dimension_semantics = [#tpu.dimension_semantics<parallel>, #tpu.dimension_semantics<arbitrary>], iteration_bounds = array<i64: 2, 2>, scalar_prefetch = 0 : i64, scratch_operands = 1 : i64, tpu.core_type = #tpu.core_type<tc>, window_params = [{transform_indices = @transform_0, window_bounds = array<i64: 256, 32>}, {transform_indices = @transform_1, window_bounds = array<i64: 32, 256>}, {transform_indices = @transform_2, window_bounds = array<i64: 1, 256>}, {pipeline_mode = #tpu.pipeline_mode<synchronous>, transform_indices = @transform_3, window_bounds = array<i64: 1, 32>}, {pipeline_mode = #tpu.pipeline_mode<synchronous>, transform_indices = @transform_4, window_bounds = array<i64: 1, 32>}, {transform_indices = @transform_5, window_bounds = array<i64: 256, 256>}]} {
    %c0_i32 = arith.constant 0 : i32
    %0 = arith.cmpi eq, %arg1, %c0_i32 : i32
    %1 = arith.extui %0 : i1 to i32
    %c0_i32_0 = arith.constant 0 : i32
    %2 = arith.cmpi ne, %1, %c0_i32_0 : i32
    scf.if %2 {
      %c0_23 = arith.constant 0 : index
      %c0_24 = arith.constant 0 : index
      %50 = vector.load %arg2[%c0_23, %c0_24] : memref<256x32xf32, #tpu.memory_space<vmem>>, vector<256x32xf32>
      %cst_25 = arith.constant dense<0.000000e+00> : vector<256xf32>
      %51 = vector.multi_reduction <add>, %50, %cst_25 [1] : vector<256x32xf32> to vector<256xf32>
      %52 = vector.shape_cast %51 : vector<256xf32> to vector<256x1xf32>
      %cst_26 = arith.constant 3.200000e+01 : f32
      %53 = vector.broadcast %cst_26 : f32 to vector<256x1xf32>
      %54 = arith.divf %52, %53 : vector<256x1xf32>
      %55 = vector.broadcast %54 : vector<256x1xf32> to vector<256x32xf32>
      %56 = arith.subf %50, %55 : vector<256x32xf32>
      %57 = arith.mulf %56, %56 : vector<256x32xf32>
      %cst_27 = arith.constant dense<0.000000e+00> : vector<256xf32>
      %58 = vector.multi_reduction <add>, %57, %cst_27 [1] : vector<256x32xf32> to vector<256xf32>
      %59 = vector.shape_cast %58 : vector<256xf32> to vector<256x1xf32>
      %cst_28 = arith.constant 3.200000e+01 : f32
      %60 = vector.broadcast %cst_28 : f32 to vector<256x1xf32>
      %61 = arith.divf %59, %60 : vector<256x1xf32>
      %62 = vector.broadcast %54 : vector<256x1xf32> to vector<256x32xf32>
      %63 = arith.subf %50, %62 : vector<256x32xf32>
      %cst_29 = arith.constant 9.99999974E-6 : f32
      %64 = vector.broadcast %cst_29 : f32 to vector<256x1xf32>
      %65 = arith.addf %61, %64 : vector<256x1xf32>
      %66 = math.rsqrt %65 : vector<256x1xf32>
      %67 = vector.broadcast %66 : vector<256x1xf32> to vector<256x32xf32>
      %68 = arith.mulf %63, %67 : vector<256x32xf32>
      %c0_30 = arith.constant 0 : index
      %c0_31 = arith.constant 0 : index
      %69 = vector.load %arg5[%c0_30, %c0_31] : memref<1x32xf32, #tpu.memory_space<vmem>>, vector<1x32xf32>
      %70 = vector.broadcast %69 : vector<1x32xf32> to vector<256x32xf32>
      %71 = arith.mulf %68, %70 : vector<256x32xf32>
      %c0_32 = arith.constant 0 : index
      %c0_33 = arith.constant 0 : index
      %72 = vector.load %arg6[%c0_32, %c0_33] : memref<1x32xf32, #tpu.memory_space<vmem>>, vector<1x32xf32>
      %73 = vector.broadcast %72 : vector<1x32xf32> to vector<256x32xf32>
      %74 = arith.addf %71, %73 : vector<256x32xf32>
      %75 = arith.truncf %74 : vector<256x32xf32> to vector<256x32xbf16>
      %c0_34 = arith.constant 0 : index
      %c0_35 = arith.constant 0 : index
      %76 = vector.load %arg8[%c0_34, %c0_35] : memref<256x32xbf16, #tpu.memory_space<vmem>>, vector<256x32xbf16>
      tpu.vector_store %arg8[%c0_34, %c0_35], %75 {strides = array<i32>} : memref<256x32xbf16, #tpu.memory_space<vmem>>, vector<256x32xbf16>,
    } else {
    }
    %c0 = arith.constant 0 : index
    %c0_1 = arith.constant 0 : index
    %3 = vector.load %arg8[%c0, %c0_1] : memref<256x32xbf16, #tpu.memory_space<vmem>>, vector<256x32xbf16>
    %c0_2 = arith.constant 0 : index
    %c0_3 = arith.constant 0 : index
    %4 = vector.load %arg3[%c0_2, %c0_3] : memref<32x256xbf16, #tpu.memory_space<vmem>>, vector<32x256xbf16>
    %cst = arith.constant dense<0.000000e+00> : vector<256x256xf32>
    %5 = tpu.matmul %3, %4, %cst {dimension_numbers = #tpu.dot_dimension_numbers<[1], [0], [0], [1], [0, 0, 1, 1], [], []>} : vector<256x32xbf16>, vector<32x256xbf16>, vector<256x256xf32> -> vector<256x256xf32>
    %c0_4 = arith.constant 0 : index
    %c0_5 = arith.constant 0 : index
    %6 = vector.load %arg4[%c0_4, %c0_5] : memref<1x256xf32, #tpu.memory_space<vmem>>, vector<1x256xf32>
    %7 = vector.broadcast %6 : vector<1x256xf32> to vector<256x256xf32>
    %8 = arith.addf %5, %7 : vector<256x256xf32>
    %cst_6 = arith.constant 5.000000e-01 : f32
    %9 = vector.broadcast %cst_6 : f32 to vector<256x256xf32>
    %10 = arith.mulf %9, %8 : vector<256x256xf32>
    %cst_7 = arith.constant 0.707106769 : f32
    %11 = vector.broadcast %cst_7 : f32 to vector<256x256xf32>
    %12 = arith.mulf %8, %11 : vector<256x256xf32>
    %13 = math.absf %12 : vector<256x256xf32>
    %cst_8 = arith.constant 0.327591091 : f32
    %14 = vector.broadcast %cst_8 : f32 to vector<256x256xf32>
    %15 = arith.mulf %14, %13 : vector<256x256xf32>
    %cst_9 = arith.constant 1.000000e+00 : f32
    %16 = vector.broadcast %cst_9 : f32 to vector<256x256xf32>
    %17 = arith.addf %16, %15 : vector<256x256xf32>
    %cst_10 = arith.constant 1.000000e+00 : f32
    %18 = vector.broadcast %cst_10 : f32 to vector<256x256xf32>
    %19 = arith.divf %18, %17 : vector<256x256xf32>
    %cst_11 = arith.constant 1.06140542 : f32
    %20 = vector.broadcast %cst_11 : f32 to vector<256x256xf32>
    %21 = arith.mulf %19, %20 : vector<256x256xf32>
    %cst_12 = arith.constant -1.45315206 : f32
    %22 = vector.broadcast %cst_12 : f32 to vector<256x256xf32>
    %23 = arith.addf %22, %21 : vector<256x256xf32>
    %24 = arith.mulf %19, %23 : vector<256x256xf32>
    %cst_13 = arith.constant 1.42141378 : f32
    %25 = vector.broadcast %cst_13 : f32 to vector<256x256xf32>
    %26 = arith.addf %25, %24 : vector<256x256xf32>
    %27 = arith.mulf %19, %26 : vector<256x256xf32>
    %cst_14 = arith.constant -0.284496725 : f32
    %28 = vector.broadcast %cst_14 : f32 to vector<256x256xf32>
    %29 = arith.addf %28, %27 : vector<256x256xf32>
    %30 = arith.mulf %19, %29 : vector<256x256xf32>
    %cst_15 = arith.constant 0.254829586 : f32
    %31 = vector.broadcast %cst_15 : f32 to vector<256x256xf32>
    %32 = arith.addf %31, %30 : vector<256x256xf32>
    %33 = arith.mulf %19, %32 : vector<256x256xf32>
    %cst_16 = arith.constant 0.000000e+00 : f32
    %34 = vector.broadcast %cst_16 : f32 to vector<256x256xf32>
    %35 = arith.subf %34, %13 : vector<256x256xf32>
    %36 = arith.mulf %35, %13 : vector<256x256xf32>
    %37 = math.exp %36 : vector<256x256xf32>
    %38 = arith.mulf %33, %37 : vector<256x256xf32>
    %cst_17 = arith.constant 1.000000e+00 : f32
    %39 = vector.broadcast %cst_17 : f32 to vector<256x256xf32>
    %40 = arith.subf %39, %38 : vector<256x256xf32>
    %cst_18 = arith.constant 0.000000e+00 : f32
    %41 = vector.broadcast %cst_18 : f32 to vector<256x256xf32>
    %42 = arith.cmpf oge, %12, %41 : vector<256x256xf32>
    %cst_19 = arith.constant 0.000000e+00 : f32
    %43 = vector.broadcast %cst_19 : f32 to vector<256x256xf32>
    %44 = arith.subf %43, %40 : vector<256x256xf32>
    %45 = arith.select %42, %40, %44 : vector<256x256xi1>, vector<256x256xf32>
    %cst_20 = arith.constant 1.000000e+00 : f32
    %46 = vector.broadcast %cst_20 : f32 to vector<256x256xf32>
    %47 = arith.addf %46, %45 : vector<256x256xf32>
    %48 = arith.mulf %10, %47 : vector<256x256xf32>
    %c0_21 = arith.constant 0 : index
    %c0_22 = arith.constant 0 : index
    %49 = vector.load %arg7[%c0_21, %c0_22] : memref<256x256xf32, #tpu.memory_space<vmem>>, vector<256x256xf32>
    tpu.vector_store %arg7[%c0_21, %c0_22], %48 {strides = array<i32>} : memref<256x256xf32, #tpu.memory_space<vmem>>, vector<256x256xf32>,
    return
  }
  func.func @transform_0(%arg0: i32, %arg1: i32) -> (i32, i32) {
    %c0_i32 = arith.constant 0 : i32
    %c0_i32_0 = arith.constant 0 : i32
    return %arg0, %c0_i32 : i32, i32
  }
  func.func @transform_1(%arg0: i32, %arg1: i32) -> (i32, i32) {
    %c0_i32 = arith.constant 0 : i32
    %c0_i32_0 = arith.constant 0 : i32
    return %c0_i32, %arg1 : i32, i32
  }
  func.func @transform_2(%arg0: i32, %arg1: i32) -> (i32, i32) {
    %c0_i32 = arith.constant 0 : i32
    %c0_i32_0 = arith.constant 0 : i32
    return %c0_i32, %arg1 : i32, i32
  }
  func.func @transform_3(%arg0: i32, %arg1: i32) -> (i32, i32) {
    %c0_i32 = arith.constant 0 : i32
    %c0_i32_0 = arith.constant 0 : i32
    %c0_i32_1 = arith.constant 0 : i32
    return %c0_i32, %c0_i32_0 : i32, i32
  }
  func.func @transform_4(%arg0: i32, %arg1: i32) -> (i32, i32) {
    %c0_i32 = arith.constant 0 : i32
    %c0_i32_0 = arith.constant 0 : i32
    %c0_i32_1 = arith.constant 0 : i32
    return %c0_i32, %c0_i32_0 : i32, i32
  }
  func.func @transform_5(%arg0: i32, %arg1: i32) -> (i32, i32) {
    %c0_i32 = arith.constant 0 : i32
    return %arg0, %arg1 : i32, i32
  }
}

</mosaic_0001>

<llo_original>
// kernel: tpu_custom_call.1
$region0: #{tpu_custom_call.1}
  #allocation0 [shape = 'u32[]', space=smem, size = 0x4, offset = 0x4, fixed_abs, tag = 'smem constant byte address 0x4 - core index']
  #allocation1 [shape = 'u32[144,128]{1,0:T(1,128)}', space=vmem, size = 0x12000, scoped, tag = 'internal scratch']
  #allocation2 [shape = 'bf16[256,32]{1,0:T(16,128)(2,1)}', space=vmem, size = 0x10000, scoped, tag = 'scratch operand']
  %s0 = inlined_call_operand.vmem [shape: f32[512,32], index: 0, kind: input, shape index: {}]
  %s1 = inlined_call_operand.vmem [shape: bf16[32,512], index: 1, kind: input, shape index: {}]
  %s2 = inlined_call_operand.vmem [shape: f32[1,512], index: 2, kind: input, shape index: {}]
  %s3 = inlined_call_operand.vmem [shape: f32[1,32], index: 3, kind: input, shape index: {}]
  %s4 = inlined_call_operand.vmem [shape: f32[1,32], index: 4, kind: input, shape index: {}]
  %s5 = inlined_call_operand.hbm [shape: f32[512,512], index: 5, kind: output, shape index: {}]
  %s6 = sld [smem:[#allocation0]]
  $region95: #{tpu_custom_call.1} parent=0
    _
  %s8 = ssub.s32 1, %s6
  %s9 = scalar_select 0, %s8, %s6
  $region1: #{tpu_custom_call.1} parent=0
    #allocation3 [shape = 'u8[32768]{0}', space=vmem, size = 0x8000, scoped, tag = 'input window, operand 1']
    #allocation4 [shape = 'u8[524288]{0}', space=vmem, size = 0x80000, scoped, tag = 'output window, operand 0']
    #allocation5 [shape = 's32[2]{0}', space=sflag, size = 0x8, scoped, tag = 'scoped memory for tpu_custom_call.1']
    %10 = vsyncpa [#allocation5], 0
    %s11 = scalar_lea.sflag [#allocation5], 1
    %12 = vsyncpa %s11, 0
    loop: start=0, step=1, limit=6
    $region2: #{tpu_custom_call.1} parent=1 // loop_pre_header
      _
    $region3: #{tpu_custom_call.1} parent=1 // loop_header
      %s14 = sphi 0, %s18
      %p15 = scmp.ge.s32.totalorder %s14, 6
      %s21 = sphi 0, %s33
      %s22 = sphi 0, %s29
      %s23 = sphi 0, %s21
      %s24 = sphi 0, %s22
      %s25 = sphi 0, %s23
      %s26 = sphi 0, %s24
      %s36 = sphi 0, %s38
      %s39 = sphi 0, %s36
      %s40 = sphi 0, %s39
      %s56 = sphi 0, %s40
      %s62 = sphi 0, %s64
      %s65 = sphi 0, %s62
      %s66 = sphi 0, %s65
      %s82 = sphi 0, %s66
      %s88 = sphi 0, %s90
      %s91 = sphi 0, %s88
      %s92 = sphi 0, %s91
      %s108 = sphi 0, %s92
      %s112 = sphi 0, %s112
      %s114 = sphi 0, %s112
      %s115 = sphi 0, %s114
      %s129 = sphi 0, %s115
      %s133 = sphi 0, %s133
      %s135 = sphi 0, %s133
      %s136 = sphi 0, %s135
      %s150 = sphi 0, %s136
      %s158 = sphi 0, %s160
      %s161 = sphi 0, %s158
      %s162 = sphi 0, %s161
      %s178 = sphi 0, %s162
    $region4: #{tpu_custom_call.1} parent=1 // loop_header_branch
      %17 = sbr.rel (%p15) target = $region8
    $region5: #{tpu_custom_call.1} parent=1 // loop_body
      %s19 = ssub.s32 %s14, 1
      %s20 = ssub.s32 %s14, 2
      %s27 = sadd.s32 1, %s22
      %p28 = scmp.ge.s32.totalorder %s27, 2
      %s29 = scalar_select %p28, 0, %s27
      %s30 = sadd.s32 1, %s21
      %s31 = scalar_select %p28, %s30, %s21
      %p32 = scmp.ge.s32.totalorder %s31, 2
      %s33 = scalar_select %p32, 0, %s31
      %s34 = ssub.s32 %s21, %s33
      %p35 = scmp.eq.s32.totalorder %s34, 0
      %s37 = sadd.s32 %s36, 1
      %s38 = scalar_select %p35, %s36, %s37
      %p41 = pneg %p35
      %p42 = scmp.eq.s32.totalorder %s14, 3
      %p43 = por %p41, %p42
      %p44 = scmp.ne.s32.totalorder %s36, %s39
      %p45 = scmp.eq.s32.totalorder %s14, 0
      %p46 = por %p44, %p45
      %p47 = scmp.ne.s32.totalorder %s36, %s39
      %p48 = scmp.eq.s32.totalorder %s19, 3
      %p49 = por %p47, %p48
      %p50 = scmp.ne.s32.totalorder %s39, %s40
      %p51 = scmp.eq.s32.totalorder %s19, 0
      %p52 = por %p50, %p51
      %p53 = scmp.ne.s32.totalorder %s39, %s40
      %p54 = scmp.eq.s32.totalorder %s20, 3
      %p55 = por %p53, %p54
      %p57 = scmp.ne.s32.totalorder %s40, %s56
      %p58 = scmp.eq.s32.totalorder %s20, 0
      %p59 = por %p57, %p58
      %s60 = ssub.s32 %s22, %s29
      %p61 = scmp.eq.s32.totalorder %s60, 0
      %s63 = sadd.s32 %s62, 1
      %s64 = scalar_select %p61, %s62, %s63
      %p67 = pneg %p61
      %p68 = scmp.eq.s32.totalorder %s14, 3
      %p69 = por %p67, %p68
      %p70 = scmp.ne.s32.totalorder %s62, %s65
      %p71 = scmp.eq.s32.totalorder %s14, 0
      %p72 = por %p70, %p71
      %p73 = scmp.ne.s32.totalorder %s62, %s65
      %p74 = scmp.eq.s32.totalorder %s19, 3
      %p75 = por %p73, %p74
      %p76 = scmp.ne.s32.totalorder %s65, %s66
      %p77 = scmp.eq.s32.totalorder %s19, 0
      %p78 = por %p76, %p77
      %p79 = scmp.ne.s32.totalorder %s65, %s66
      %p80 = scmp.eq.s32.totalorder %s20, 3
      %p81 = por %p79, %p80
      %p83 = scmp.ne.s32.totalorder %s66, %s82
      %p84 = scmp.eq.s32.totalorder %s20, 0
      %p85 = por %p83, %p84
      %s86 = ssub.s32 %s22, %s29
      %p87 = scmp.eq.s32.totalorder %s86, 0
      %s89 = sadd.s32 %s88, 1
      %s90 = scalar_select %p87, %s88, %s89
      %p93 = pneg %p87
      %p94 = scmp.eq.s32.totalorder %s14, 3
      %p95 = por %p93, %p94
      %p96 = scmp.ne.s32.totalorder %s88, %s91
      %p97 = scmp.eq.s32.totalorder %s14, 0
      %p98 = por %p96, %p97
      %p99 = scmp.ne.s32.totalorder %s88, %s91
      %p100 = scmp.eq.s32.totalorder %s19, 3
      %p101 = por %p99, %p100
      %p102 = scmp.ne.s32.totalorder %s91, %s92
      %p103 = scmp.eq.s32.totalorder %s19, 0
      %p104 = por %p102, %p103
      %p105 = scmp.ne.s32.totalorder %s91, %s92
      %p106 = scmp.eq.s32.totalorder %s20, 3
      %p107 = por %p105, %p106
      %p109 = scmp.ne.s32.totalorder %s92, %s108
      %p110 = scmp.eq.s32.totalorder %s20, 0
      %p111 = por %p109, %p110
      %s113 = sadd.s32 %s112, 1
      %p116 = scmp.eq.s32.totalorder %s14, 3
      %p117 = scmp.ne.s32.totalorder %s112, %s114
      %p118 = scmp.eq.s32.totalorder %s14, 0
      %p119 = por %p117, %p118
      %p120 = scmp.ne.s32.totalorder %s112, %s114
      %p121 = scmp.eq.s32.totalorder %s19, 3
      %p122 = por %p120, %p121
      %p123 = scmp.ne.s32.totalorder %s114, %s115
      %p124 = scmp.eq.s32.totalorder %s19, 0
      %p125 = por %p123, %p124
      %p126 = scmp.ne.s32.totalorder %s114, %s115
      %p127 = scmp.eq.s32.totalorder %s20, 3
      %p128 = por %p126, %p127
      %p130 = scmp.ne.s32.totalorder %s115, %s129
      %p131 = scmp.eq.s32.totalorder %s20, 0
      %p132 = por %p130, %p131
      %s134 = sadd.s32 %s133, 1
      %p137 = scmp.eq.s32.totalorder %s14, 3
      %p138 = scmp.ne.s32.totalorder %s133, %s135
      %p139 = scmp.eq.s32.totalorder %s14, 0
      %p140 = por %p138, %p139
      %p141 = scmp.ne.s32.totalorder %s133, %s135
      %p142 = scmp.eq.s32.totalorder %s19, 3
      %p143 = por %p141, %p142
      %p144 = scmp.ne.s32.totalorder %s135, %s136
      %p145 = scmp.eq.s32.totalorder %s19, 0
      %p146 = por %p144, %p145
      %p147 = scmp.ne.s32.totalorder %s135, %s136
      %p148 = scmp.eq.s32.totalorder %s20, 3
      %p149 = por %p147, %p148
      %p151 = scmp.ne.s32.totalorder %s136, %s150
      %p152 = scmp.eq.s32.totalorder %s20, 0
      %p153 = por %p151, %p152
      %s154 = ssub.s32 %s21, %s33
      %s155 = ssub.s32 %s22, %s29
      %s156 = sor.u32 %s154, %s155
      %p157 = scmp.eq.s32.totalorder %s156, 0
      %s159 = sadd.s32 %s158, 1
      %s160 = scalar_select %p157, %s158, %s159
      %p163 = pneg %p157
      %p164 = scmp.eq.s32.totalorder %s14, 3
      %p165 = por %p163, %p164
      %p166 = scmp.ne.s32.totalorder %s158, %s161
      %p167 = scmp.eq.s32.totalorder %s14, 0
      %p168 = por %p166, %p167
      %p169 = scmp.ne.s32.totalorder %s158, %s161
      %p170 = scmp.eq.s32.totalorder %s19, 3
      %p171 = por %p169, %p170
      %p172 = scmp.ne.s32.totalorder %s161, %s162
      %p173 = scmp.eq.s32.totalorder %s19, 0
      %p174 = por %p172, %p173
      %p175 = scmp.ne.s32.totalorder %s161, %s162
      %p176 = scmp.eq.s32.totalorder %s20, 3
      %p177 = por %p175, %p176
      %p179 = scmp.ne.s32.totalorder %s162, %s178
      %p180 = scmp.eq.s32.totalorder %s20, 0
      %p181 = por %p179, %p180
      %p182 = scmp.le.s32.totalorder 1, %s14
      %p183 = scmp.lt.s32.totalorder %s14, 5
      %p184 = pnand %p182, %p183
      %p185 = pneg %p184
      // Predicated region
      $region9: #{tpu_custom_call.1} parent=5 // pred_check
        _
      $region10: #{tpu_custom_call.1} parent=5 // pred_check_branch
        %187 = sbr.rel (%p184) target = $region12
      $region11: #{tpu_custom_call.1} parent=5 // pred_region
        %s188 = ssub.s32 %s14, 1
        // Predicated region
        $region13: #{tpu_custom_call.1} parent=11 // pred_check
          %p189 = pneg %p125
        $region14: #{tpu_custom_call.1} parent=11 // pred_check_branch
          %191 = sbr.rel (%p189) target = $region16
        $region15: #{tpu_custom_call.1} parent=11 // pred_region
          _
        $region16: #{tpu_custom_call.1} parent=11 // pred_fallthru
          _
        // Predicated region
        $region17: #{tpu_custom_call.1} parent=11 // pred_check
          %p192 = pneg %p146
        $region18: #{tpu_custom_call.1} parent=11 // pred_check_branch
          %194 = sbr.rel (%p192) target = $region20
        $region19: #{tpu_custom_call.1} parent=11 // pred_region
          _
        $region20: #{tpu_custom_call.1} parent=11 // pred_fallthru
          _
      $region12: #{tpu_custom_call.1} parent=5 // pred_fallthru
        _
      %p195 = scmp.lt.s32.totalorder %s14, 4
      // Predicated region
      $region21: #{tpu_custom_call.1} parent=5 // pred_check
        %p196 = pneg %p195
      $region22: #{tpu_custom_call.1} parent=5 // pred_check_branch
        %198 = sbr.rel (%p196) target = $region24
      $region23: #{tpu_custom_call.1} parent=5 // pred_region
        // Predicated region
        $region25: #{tpu_custom_call.1} parent=23 // pred_check
          %p199 = pneg %p46
        $region26: #{tpu_custom_call.1} parent=23 // pred_check_branch
          %201 = sbr.rel (%p199) target = $region28
        $region27: #{tpu_custom_call.1} parent=23 // pred_region
          %s202 = smul.u32 32, %s21
          %p203 = scmp.lt.s32.totalorder %s202, 63
          %s204 = scalar_select %p203, %s202, 63
          %s205 = smul.addr %s204, 8
          %s206 = scalar_lea.vmem %s0, %s205
          %s207 = smul.u32 32, %s21
        $region28: #{tpu_custom_call.1} parent=23 // pred_fallthru
          _
        // Predicated region
        $region29: #{tpu_custom_call.1} parent=23 // pred_check
          %p208 = pneg %p72
        $region30: #{tpu_custom_call.1} parent=23 // pred_check_branch
          %210 = sbr.rel (%p208) target = $region32
        $region31: #{tpu_custom_call.1} parent=23 // pred_region
          %s211 = sand.u32 %s62, 1
          %s212 = sand.u32 %s62, 1
          %s213 = smul.addr %s212, 32
          %s214 = scalar_lea.vmem [#allocation3], %s213
          %s215 = smul.u32 2, %s22
          %s216 = smul.addr %s215, 4
          %s217 = scalar_lea.vmem %s1, %s216
          // Predicated region
          $region33: #{tpu_custom_call.1} parent=31 // pred_check
            _
          $region34: #{tpu_custom_call.1} parent=31 // pred_check_branch
            %219 = sbr.rel (0) target = $region36
          $region35: #{tpu_custom_call.1} parent=31 // pred_region
            // Predicated region
            $region37: #{tpu_custom_call.1} parent=35 // pred_check
              _
            $region38: #{tpu_custom_call.1} parent=35 // pred_check_branch
              %221 = sbr.rel (0) target = $region40
            $region39: #{tpu_custom_call.1} parent=35 // pred_region
              // Predicated region
              $region52: #{tpu_custom_call.1} parent=39 // pred_check
                _
              $region53: #{tpu_custom_call.1} parent=39 // pred_check_branch
                %242 = sbr.rel (0) target = $region55
              $region54: #{tpu_custom_call.1} parent=39 // pred_region
                loop: start=0, step=1, limit=1
                $region56: #{tpu_custom_call.1} parent=54 // loop_pre_header
                  _
                $region57: #{tpu_custom_call.1} parent=54 // loop_header
                  %s244 = sphi 0, %s248
                  %p245 = scmp.ge.s32.totalorder %s244, 1
                  %s249 = sphi %s217, %s217
                  %s250 = sphi %s214, %s214
                $region58: #{tpu_custom_call.1} parent=54 // loop_header_branch
                  %247 = sbr.rel (%p245) target = $region62
                $region59: #{tpu_custom_call.1} parent=54 // loop_body
                  %v251 = vld [vmem:[%s249] sm:$0xff]
                  %252 = vst [vmem:[%s250] sm:$0xff] %v251
                  %v253 = vld [vmem:[%s249 + $0x10] sm:$0xff]
                  %254 = vst [vmem:[%s250 + $0x8] sm:$0xff] %v253
                  %v255 = vld [vmem:[%s249 + $0x20] sm:$0xff]
                  %256 = vst [vmem:[%s250 + $0x10] sm:$0xff] %v255
                  %v257 = vld [vmem:[%s249 + $0x30] sm:$0xff]
                  %258 = vst [vmem:[%s250 + $0x18] sm:$0xff] %v257
                $region60: #{tpu_custom_call.1} parent=54 // loop_footer
                  %s248 = sadd.s32 1, %s244
                $region61: #{tpu_custom_call.1} parent=54 // loop_footer_branch
                  %243 = sbr.rel target = $region57
                $region62: #{tpu_custom_call.1} parent=54 // loop_exit
                  _
              $region55: #{tpu_custom_call.1} parent=39 // pred_fallthru
                _
              // Predicated region
              $region63: #{tpu_custom_call.1} parent=39 // pred_check
                _
              $region64: #{tpu_custom_call.1} parent=39 // pred_check_branch
                %260 = sbr.rel target = $region66
              $region65: #{tpu_custom_call.1} parent=39 // pred_region
                _
              $region66: #{tpu_custom_call.1} parent=39 // pred_fallthru
                _
            $region40: #{tpu_custom_call.1} parent=35 // pred_fallthru
              _
            // Predicated region
            $region41: #{tpu_custom_call.1} parent=35 // pred_check
              _
            $region42: #{tpu_custom_call.1} parent=35 // pred_check_branch
              %223 = sbr.rel target = $region44
            $region43: #{tpu_custom_call.1} parent=35 // pred_region
              loop: start=0, step=1, limit=1
              $region45: #{tpu_custom_call.1} parent=43 // loop_pre_header
                _
              $region46: #{tpu_custom_call.1} parent=43 // loop_header
                %s226 = sphi 0, %s230
                %p227 = scmp.ge.s32.totalorder %s226, 1
                %s231 = sphi %s217, %s217
                %s232 = sphi %s214, %s214
              $region47: #{tpu_custom_call.1} parent=43 // loop_header_branch
                %229 = sbr.rel (%p227) target = $region51
              $region48: #{tpu_custom_call.1} parent=43 // loop_body
                %v233 = vld [vmem:[%s231] sm:$0xff]
                %234 = vst [vmem:[%s232] sm:$0xff] %v233
                %v235 = vld [vmem:[%s231 + $0x10] sm:$0xff]
                %236 = vst [vmem:[%s232 + $0x8] sm:$0xff] %v235
                %v237 = vld [vmem:[%s231 + $0x20] sm:$0xff]
                %238 = vst [vmem:[%s232 + $0x10] sm:$0xff] %v237
                %v239 = vld [vmem:[%s231 + $0x30] sm:$0xff]
                %240 = vst [vmem:[%s232 + $0x18] sm:$0xff] %v239
              $region49: #{tpu_custom_call.1} parent=43 // loop_footer
                %s230 = sadd.s32 1, %s226
              $region50: #{tpu_custom_call.1} parent=43 // loop_footer_branch
                %225 = sbr.rel target = $region46
              $region51: #{tpu_custom_call.1} parent=43 // loop_exit
                _
            $region44: #{tpu_custom_call.1} parent=35 // pred_fallthru
              _
          $region36: #{tpu_custom_call.1} parent=31 // pred_fallthru
            _
          %261 = vnop
        $region32: #{tpu_custom_call.1} parent=23 // pred_fallthru
          _
        // Predicated region
        $region67: #{tpu_custom_call.1} parent=23 // pred_check
          %p262 = pneg %p98
        $region68: #{tpu_custom_call.1} parent=23 // pred_check_branch
          %264 = sbr.rel (%p262) target = $region70
        $region69: #{tpu_custom_call.1} parent=23 // pred_region
          %s265 = smul.u32 2, %s22
          %p266 = scmp.lt.s32.totalorder %s265, 3
          %s267 = scalar_select %p266, %s265, 3
          %s268 = scalar_lea.vmem %s2, %s267
          %s269 = smul.u32 2, %s22
        $region70: #{tpu_custom_call.1} parent=23 // pred_fallthru
          _
      $region24: #{tpu_custom_call.1} parent=5 // pred_fallthru
        _
      %p270 = scmp.le.s32.totalorder 1, %s14
      %p271 = scmp.lt.s32.totalorder %s14, 5
      %p272 = pnand %p270, %p271
      %p273 = pneg %p272
      // Predicated region
      $region71: #{tpu_custom_call.1} parent=5 // pred_check
        _
      $region72: #{tpu_custom_call.1} parent=5 // pred_check_branch
        %275 = sbr.rel (%p272) target = $region74
      $region73: #{tpu_custom_call.1} parent=5 // pred_region
        %s276 = ssub.s32 %s14, 1
        %s277 = sand.u32 %s65, 1
        %s278 = sand.u32 %s65, 1
        %s279 = smul.addr %s278, 32
        %s280 = scalar_lea.vmem [#allocation3], %s279
        // Predicated region
        $region75: #{tpu_custom_call.1} parent=73 // pred_check
          %p281 = pneg %p78
        $region76: #{tpu_custom_call.1} parent=73 // pred_check_branch
          %283 = sbr.rel (%p281) target = $region78
        $region77: #{tpu_custom_call.1} parent=73 // pred_region
          _
        $region78: #{tpu_custom_call.1} parent=73 // pred_fallthru
          _
        %s284 = smul.u32 32, %s23
        %p285 = scmp.lt.s32.totalorder %s284, 63
        %s286 = scalar_select %p285, %s284, 63
        %s287 = smul.addr %s286, 8
        %s288 = scalar_lea.vmem %s0, %s287
        %p289 = pneg %p52
        %p290 = pneg %p49
        %s291 = sand.u32 %s65, 1
        %s292 = sand.u32 %s65, 1
        %s293 = smul.addr %s292, 32
        %s294 = scalar_lea.vmem [#allocation3], %s293
        %p295 = pneg %p78
        %p296 = pneg %p75
        %s297 = smul.u32 2, %s24
        %p298 = scmp.lt.s32.totalorder %s297, 3
        %s299 = scalar_select %p298, %s297, 3
        %s300 = scalar_lea.vmem %s2, %s299
        %p301 = pneg %p104
        %p302 = pneg %p101
        %p303 = pneg %p125
        %p304 = pneg %p122
        %p305 = pneg %p146
        %p306 = pneg %p143
        %p307 = pneg %p174
        %p308 = pneg %p171
        %s309 = sand.u32 %s161, 1
        %s310 = scalar_lea.sflag [#allocation5], %s309
        %s311 = sand.u32 %s161, 1
        %s312 = smul.addr %s311, 512
        %s313 = scalar_lea.vmem [#allocation4], %s312
        %s314 = smul.u32 32, %s23
        %p315 = scmp.lt.s32.totalorder %s314, 63
        %s316 = scalar_select %p315, %s314, 63
        %s317 = smul.addr %s316, 8
        %s318 = scalar_lea.vmem %s0, %s317
        %s319 = smul.u32 32, %s23
        %s320 = smul.u32 2, %s24
        %s321 = smul.u32 2, %s24
        %p322 = scmp.lt.s32.totalorder %s321, 3
        %s323 = scalar_select %p322, %s321, 3
        %s324 = scalar_lea.vmem %s2, %s323
        %s325 = smul.u32 2, %s24
        %s326 = smul.u32 32, %s23
        %s327 = smul.u32 2, %s24
        %p329 = scmp.eq.s32.totalorder %s24, 0
        // Predicated region
        $region79: #{tpu_custom_call.1} parent=73 // pred_check
          %p330 = pneg %p329
        $region80: #{tpu_custom_call.1} parent=73 // pred_check_branch
          %332 = sbr.rel (%p330) target = $region82
        $region81: #{tpu_custom_call.1} parent=73 // pred_region
          %v333 = vld [vmem:[%s318] sm:$0xff]
          %v334 = vld [vmem:[%s318 + $0x8] sm:$0xff]
          %v335 = vld [vmem:[%s318 + $0x10] sm:$0xff]
          %v336 = vld [vmem:[%s318 + $0x18] sm:$0xff]
          %v337 = vld [vmem:[%s318 + $0x20] sm:$0xff]
          %v338 = vld [vmem:[%s318 + $0x28] sm:$0xff]
          %v339 = vld [vmem:[%s318 + $0x30] sm:$0xff]
          %v340 = vld [vmem:[%s318 + $0x38] sm:$0xff]
          %v341 = vld [vmem:[%s318 + $0x40] sm:$0xff]
          %v342 = vld [vmem:[%s318 + $0x48] sm:$0xff]
          %v343 = vld [vmem:[%s318 + $0x50] sm:$0xff]
          %v344 = vld [vmem:[%s318 + $0x58] sm:$0xff]
          %v345 = vld [vmem:[%s318 + $0x60] sm:$0xff]
          %v346 = vld [vmem:[%s318 + $0x68] sm:$0xff]
          %v347 = vld [vmem:[%s318 + $0x70] sm:$0xff]
          %v348 = vld [vmem:[%s318 + $0x78] sm:$0xff]
          %v349 = vld [vmem:[%s318 + $0x80] sm:$0xff]
          %v350 = vld [vmem:[%s318 + $0x88] sm:$0xff]
          %v351 = vld [vmem:[%s318 + $0x90] sm:$0xff]
          %v352 = vld [vmem:[%s318 + $0x98] sm:$0xff]
          %v353 = vld [vmem:[%s318 + $0xa0] sm:$0xff]
          %v354 = vld [vmem:[%s318 + $0xa8] sm:$0xff]
          %v355 = vld [vmem:[%s318 + $0xb0] sm:$0xff]
          %v356 = vld [vmem:[%s318 + $0xb8] sm:$0xff]
          %v357 = vld [vmem:[%s318 + $0xc0] sm:$0xff]
          %v358 = vld [vmem:[%s318 + $0xc8] sm:$0xff]
          %v359 = vld [vmem:[%s318 + $0xd0] sm:$0xff]
          %v360 = vld [vmem:[%s318 + $0xd8] sm:$0xff]
          %v361 = vld [vmem:[%s318 + $0xe0] sm:$0xff]
          %v362 = vld [vmem:[%s318 + $0xe8] sm:$0xff]
          %v363 = vld [vmem:[%s318 + $0xf0] sm:$0xff]
          %v364 = vld [vmem:[%s318 + $0xf8] sm:$0xff]
          %vm365 = vcmask 261120
          %v366 = vsel %vm365, %v333, 0.0
          %367 = vadd.xlane.f32.xlu0 %v366
          %v368 = vpop.xlane.xlu0 %367
          %v369 = vsel %vm365, %v334, 0.0
          %370 = vadd.xlane.f32.xlu0 %v369
          %v371 = vpop.xlane.xlu0 %370
          %v372 = vsel %vm365, %v335, 0.0
          %373 = vadd.xlane.f32.xlu0 %v372
          %v374 = vpop.xlane.xlu0 %373
          %v375 = vsel %vm365, %v336, 0.0
          %376 = vadd.xlane.f32.xlu0 %v375
          %v377 = vpop.xlane.xlu0 %376
          %v378 = vsel %vm365, %v337, 0.0
          %379 = vadd.xlane.f32.xlu0 %v378
          %v380 = vpop.xlane.xlu0 %379
          %v381 = vsel %vm365, %v338, 0.0
          %382 = vadd.xlane.f32.xlu0 %v381
          %v383 = vpop.xlane.xlu0 %382
          %v384 = vsel %vm365, %v339, 0.0
          %385 = vadd.xlane.f32.xlu0 %v384
          %v386 = vpop.xlane.xlu0 %385
          %v387 = vsel %vm365, %v340, 0.0
          %388 = vadd.xlane.f32.xlu0 %v387
          %v389 = vpop.xlane.xlu0 %388
          %v390 = vsel %vm365, %v341, 0.0
          %391 = vadd.xlane.f32.xlu0 %v390
          %v392 = vpop.xlane.xlu0 %391
          %v393 = vsel %vm365, %v342, 0.0
          %394 = vadd.xlane.f32.xlu0 %v393
          %v395 = vpop.xlane.xlu0 %394
          %v396 = vsel %vm365, %v343, 0.0
          %397 = vadd.xlane.f32.xlu0 %v396
          %v398 = vpop.xlane.xlu0 %397
          %v399 = vsel %vm365, %v344, 0.0
          %400 = vadd.xlane.f32.xlu0 %v399
          %v401 = vpop.xlane.xlu0 %400
          %v402 = vsel %vm365, %v345, 0.0
          %403 = vadd.xlane.f32.xlu0 %v402
          %v404 = vpop.xlane.xlu0 %403
          %v405 = vsel %vm365, %v346, 0.0
          %406 = vadd.xlane.f32.xlu0 %v405
          %v407 = vpop.xlane.xlu0 %406
          %v408 = vsel %vm365, %v347, 0.0
          %409 = vadd.xlane.f32.xlu0 %v408
          %v410 = vpop.xlane.xlu0 %409
          %v411 = vsel %vm365, %v348, 0.0
          %412 = vadd.xlane.f32.xlu0 %v411
          %v413 = vpop.xlane.xlu0 %412
          %v414 = vsel %vm365, %v349, 0.0
          %415 = vadd.xlane.f32.xlu0 %v414
          %v416 = vpop.xlane.xlu0 %415
          %v417 = vsel %vm365, %v350, 0.0
          %418 = vadd.xlane.f32.xlu0 %v417
          %v419 = vpop.xlane.xlu0 %418
          %v420 = vsel %vm365, %v351, 0.0
          %421 = vadd.xlane.f32.xlu0 %v420
          %v422 = vpop.xlane.xlu0 %421
          %v423 = vsel %vm365, %v352, 0.0
          %424 = vadd.xlane.f32.xlu0 %v423
          %v425 = vpop.xlane.xlu0 %424
          %v426 = vsel %vm365, %v353, 0.0
          %427 = vadd.xlane.f32.xlu0 %v426
          %v428 = vpop.xlane.xlu0 %427
          %v429 = vsel %vm365, %v354, 0.0
          %430 = vadd.xlane.f32.xlu0 %v429
          %v431 = vpop.xlane.xlu0 %430
          %v432 = vsel %vm365, %v355, 0.0
          %433 = vadd.xlane.f32.xlu0 %v432
          %v434 = vpop.xlane.xlu0 %433
          %v435 = vsel %vm365, %v356, 0.0
          %436 = vadd.xlane.f32.xlu0 %v435
          %v437 = vpop.xlane.xlu0 %436
          %v438 = vsel %vm365, %v357, 0.0
          %439 = vadd.xlane.f32.xlu0 %v438
          %v440 = vpop.xlane.xlu0 %439
          %v441 = vsel %vm365, %v358, 0.0
          %442 = vadd.xlane.f32.xlu0 %v441
          %v443 = vpop.xlane.xlu0 %442
          %v444 = vsel %vm365, %v359, 0.0
          %445 = vadd.xlane.f32.xlu0 %v444
          %v446 = vpop.xlane.xlu0 %445
          %v447 = vsel %vm365, %v360, 0.0
          %448 = vadd.xlane.f32.xlu0 %v447
          %v449 = vpop.xlane.xlu0 %448
          %v450 = vsel %vm365, %v361, 0.0
          %451 = vadd.xlane.f32.xlu0 %v450
          %v452 = vpop.xlane.xlu0 %451
          %v453 = vsel %vm365, %v362, 0.0
          %454 = vadd.xlane.f32.xlu0 %v453
          %v455 = vpop.xlane.xlu0 %454
          %v456 = vsel %vm365, %v363, 0.0
          %457 = vadd.xlane.f32.xlu0 %v456
          %v458 = vpop.xlane.xlu0 %457
          %v459 = vsel %vm365, %v364, 0.0
          %460 = vadd.xlane.f32.xlu0 %v459
          %v461 = vpop.xlane.xlu0 %460
          %v462 = vrcp.pop 32.0
          %v463 = vmul.f32 %v368, %v462
          %v464 = vmul.f32 %v371, %v462
          %v465 = vmul.f32 %v374, %v462
          %v466 = vmul.f32 %v377, %v462
          %v467 = vmul.f32 %v380, %v462
          %v468 = vmul.f32 %v383, %v462
          %v469 = vmul.f32 %v386, %v462
          %v470 = vmul.f32 %v389, %v462
          %v471 = vmul.f32 %v392, %v462
          %v472 = vmul.f32 %v395, %v462
          %v473 = vmul.f32 %v398, %v462
          %v474 = vmul.f32 %v401, %v462
          %v475 = vmul.f32 %v404, %v462
          %v476 = vmul.f32 %v407, %v462
          %v477 = vmul.f32 %v410, %v462
          %v478 = vmul.f32 %v413, %v462
          %v479 = vmul.f32 %v416, %v462
          %v480 = vmul.f32 %v419, %v462
          %v481 = vmul.f32 %v422, %v462
          %v482 = vmul.f32 %v425, %v462
          %v483 = vmul.f32 %v428, %v462
          %v484 = vmul.f32 %v431, %v462
          %v485 = vmul.f32 %v434, %v462
          %v486 = vmul.f32 %v437, %v462
          %v487 = vmul.f32 %v440, %v462
          %v488 = vmul.f32 %v443, %v462
          %v489 = vmul.f32 %v446, %v462
          %v490 = vmul.f32 %v449, %v462
          %v491 = vmul.f32 %v452, %v462
          %v492 = vmul.f32 %v455, %v462
          %v493 = vmul.f32 %v458, %v462
          %v494 = vmul.f32 %v461, %v462
          %v495 = vsub.f32 %v333, %v463
          %v496 = vsub.f32 %v334, %v464
          %v497 = vsub.f32 %v335, %v465
          %v498 = vsub.f32 %v336, %v466
          %v499 = vsub.f32 %v337, %v467
          %v500 = vsub.f32 %v338, %v468
          %v501 = vsub.f32 %v339, %v469
          %v502 = vsub.f32 %v340, %v470
          %v503 = vsub.f32 %v341, %v471
          %v504 = vsub.f32 %v342, %v472
          %v505 = vsub.f32 %v343, %v473
          %v506 = vsub.f32 %v344, %v474
          %v507 = vsub.f32 %v345, %v475
          %v508 = vsub.f32 %v346, %v476
          %v509 = vsub.f32 %v347, %v477
          %v510 = vsub.f32 %v348, %v478
          %v511 = vsub.f32 %v349, %v479
          %v512 = vsub.f32 %v350, %v480
          %v513 = vsub.f32 %v351, %v481
          %v514 = vsub.f32 %v352, %v482
          %v515 = vsub.f32 %v353, %v483
          %v516 = vsub.f32 %v354, %v484
          %v517 = vsub.f32 %v355, %v485
          %v518 = vsub.f32 %v356, %v486
          %v519 = vsub.f32 %v357, %v487
          %v520 = vsub.f32 %v358, %v488
          %v521 = vsub.f32 %v359, %v489
          %v522 = vsub.f32 %v360, %v490
          %v523 = vsub.f32 %v361, %v491
          %v524 = vsub.f32 %v362, %v492
          %v525 = vsub.f32 %v363, %v493
          %v526 = vsub.f32 %v364, %v494
          %v527 = vmul.f32 %v495, %v495
          %v528 = vmul.f32 %v496, %v496
          %v529 = vmul.f32 %v497, %v497
          %v530 = vmul.f32 %v498, %v498
          %v531 = vmul.f32 %v499, %v499
          %v532 = vmul.f32 %v500, %v500
          %v533 = vmul.f32 %v501, %v501
          %v534 = vmul.f32 %v502, %v502
          %v535 = vmul.f32 %v503, %v503
          %v536 = vmul.f32 %v504, %v504
          %v537 = vmul.f32 %v505, %v505
          %v538 = vmul.f32 %v506, %v506
          %v539 = vmul.f32 %v507, %v507
          %v540 = vmul.f32 %v508, %v508
          %v541 = vmul.f32 %v509, %v509
          %v542 = vmul.f32 %v510, %v510
          %v543 = vmul.f32 %v511, %v511
          %v544 = vmul.f32 %v512, %v512
          %v545 = vmul.f32 %v513, %v513
          %v546 = vmul.f32 %v514, %v514
          %v547 = vmul.f32 %v515, %v515
          %v548 = vmul.f32 %v516, %v516
          %v549 = vmul.f32 %v517, %v517
          %v550 = vmul.f32 %v518, %v518
          %v551 = vmul.f32 %v519, %v519
          %v552 = vmul.f32 %v520, %v520
          %v553 = vmul.f32 %v521, %v521
          %v554 = vmul.f32 %v522, %v522
          %v555 = vmul.f32 %v523, %v523
          %v556 = vmul.f32 %v524, %v524
          %v557 = vmul.f32 %v525, %v525
          %v558 = vmul.f32 %v526, %v526
          %v559 = vsel %vm365, %v527, 0.0
          %560 = vadd.xlane.f32.xlu0 %v559
          %v561 = vpop.xlane.xlu0 %560
          %v562 = vsel %vm365, %v528, 0.0
          %563 = vadd.xlane.f32.xlu0 %v562
          %v564 = vpop.xlane.xlu0 %563
          %v565 = vsel %vm365, %v529, 0.0
          %566 = vadd.xlane.f32.xlu0 %v565
          %v567 = vpop.xlane.xlu0 %566
          %v568 = vsel %vm365, %v530, 0.0
          %569 = vadd.xlane.f32.xlu0 %v568
          %v570 = vpop.xlane.xlu0 %569
          %v571 = vsel %vm365, %v531, 0.0
          %572 = vadd.xlane.f32.xlu0 %v571
          %v573 = vpop.xlane.xlu0 %572
          %v574 = vsel %vm365, %v532, 0.0
          %575 = vadd.xlane.f32.xlu0 %v574
          %v576 = vpop.xlane.xlu0 %575
          %v577 = vsel %vm365, %v533, 0.0
          %578 = vadd.xlane.f32.xlu0 %v577
          %v579 = vpop.xlane.xlu0 %578
          %v580 = vsel %vm365, %v534, 0.0
          %581 = vadd.xlane.f32.xlu0 %v580
          %v582 = vpop.xlane.xlu0 %581
          %v583 = vsel %vm365, %v535, 0.0
          %584 = vadd.xlane.f32.xlu0 %v583
          %v585 = vpop.xlane.xlu0 %584
          %v586 = vsel %vm365, %v536, 0.0
          %587 = vadd.xlane.f32.xlu0 %v586
          %v588 = vpop.xlane.xlu0 %587
          %v589 = vsel %vm365, %v537, 0.0
          %590 = vadd.xlane.f32.xlu0 %v589
          %v591 = vpop.xlane.xlu0 %590
          %v592 = vsel %vm365, %v538, 0.0
          %593 = vadd.xlane.f32.xlu0 %v592
          %v594 = vpop.xlane.xlu0 %593
          %v595 = vsel %vm365, %v539, 0.0
          %596 = vadd.xlane.f32.xlu0 %v595
          %v597 = vpop.xlane.xlu0 %596
          %v598 = vsel %vm365, %v540, 0.0
          %599 = vadd.xlane.f32.xlu0 %v598
          %v600 = vpop.xlane.xlu0 %599
          %v601 = vsel %vm365, %v541, 0.0
          %602 = vadd.xlane.f32.xlu0 %v601
          %v603 = vpop.xlane.xlu0 %602
          %v604 = vsel %vm365, %v542, 0.0
          %605 = vadd.xlane.f32.xlu0 %v604
          %v606 = vpop.xlane.xlu0 %605
          %v607 = vsel %vm365, %v543, 0.0
          %608 = vadd.xlane.f32.xlu0 %v607
          %v609 = vpop.xlane.xlu0 %608
          %v610 = vsel %vm365, %v544, 0.0
          %611 = vadd.xlane.f32.xlu0 %v610
          %v612 = vpop.xlane.xlu0 %611
          %v613 = vsel %vm365, %v545, 0.0
          %614 = vadd.xlane.f32.xlu0 %v613
          %v615 = vpop.xlane.xlu0 %614
          %v616 = vsel %vm365, %v546, 0.0
          %617 = vadd.xlane.f32.xlu0 %v616
          %v618 = vpop.xlane.xlu0 %617
          %v619 = vsel %vm365, %v547, 0.0
          %620 = vadd.xlane.f32.xlu0 %v619
          %v621 = vpop.xlane.xlu0 %620
          %v622 = vsel %vm365, %v548, 0.0
          %623 = vadd.xlane.f32.xlu0 %v622
          %v624 = vpop.xlane.xlu0 %623
          %v625 = vsel %vm365, %v549, 0.0
          %626 = vadd.xlane.f32.xlu0 %v625
          %v627 = vpop.xlane.xlu0 %626
          %v628 = vsel %vm365, %v550, 0.0
          %629 = vadd.xlane.f32.xlu0 %v628
          %v630 = vpop.xlane.xlu0 %629
          %v631 = vsel %vm365, %v551, 0.0
          %632 = vadd.xlane.f32.xlu0 %v631
          %v633 = vpop.xlane.xlu0 %632
          %v634 = vsel %vm365, %v552, 0.0
          %635 = vadd.xlane.f32.xlu0 %v634
          %v636 = vpop.xlane.xlu0 %635
          %v637 = vsel %vm365, %v553, 0.0
          %638 = vadd.xlane.f32.xlu0 %v637
          %v639 = vpop.xlane.xlu0 %638
          %v640 = vsel %vm365, %v554, 0.0
          %641 = vadd.xlane.f32.xlu0 %v640
          %v642 = vpop.xlane.xlu0 %641
          %v643 = vsel %vm365, %v555, 0.0
          %644 = vadd.xlane.f32.xlu0 %v643
          %v645 = vpop.xlane.xlu0 %644
          %v646 = vsel %vm365, %v556, 0.0
          %647 = vadd.xlane.f32.xlu0 %v646
          %v648 = vpop.xlane.xlu0 %647
          %v649 = vsel %vm365, %v557, 0.0
          %650 = vadd.xlane.f32.xlu0 %v649
          %v651 = vpop.xlane.xlu0 %650
          %v652 = vsel %vm365, %v558, 0.0
          %653 = vadd.xlane.f32.xlu0 %v652
          %v654 = vpop.xlane.xlu0 %653
          %v655 = vmul.f32 %v561, %v462
          %v656 = vmul.f32 %v564, %v462
          %v657 = vmul.f32 %v567, %v462
          %v658 = vmul.f32 %v570, %v462
          %v659 = vmul.f32 %v573, %v462
          %v660 = vmul.f32 %v576, %v462
          %v661 = vmul.f32 %v579, %v462
          %v662 = vmul.f32 %v582, %v462
          %v663 = vmul.f32 %v585, %v462
          %v664 = vmul.f32 %v588, %v462
          %v665 = vmul.f32 %v591, %v462
          %v666 = vmul.f32 %v594, %v462
          %v667 = vmul.f32 %v597, %v462
          %v668 = vmul.f32 %v600, %v462
          %v669 = vmul.f32 %v603, %v462
          %v670 = vmul.f32 %v606, %v462
          %v671 = vmul.f32 %v609, %v462
          %v672 = vmul.f32 %v612, %v462
          %v673 = vmul.f32 %v615, %v462
          %v674 = vmul.f32 %v618, %v462
          %v675 = vmul.f32 %v621, %v462
          %v676 = vmul.f32 %v624, %v462
          %v677 = vmul.f32 %v627, %v462
          %v678 = vmul.f32 %v630, %v462
          %v679 = vmul.f32 %v633, %v462
          %v680 = vmul.f32 %v636, %v462
          %v681 = vmul.f32 %v639, %v462
          %v682 = vmul.f32 %v642, %v462
          %v683 = vmul.f32 %v645, %v462
          %v684 = vmul.f32 %v648, %v462
          %v685 = vmul.f32 %v651, %v462
          %v686 = vmul.f32 %v654, %v462
          %v687 = vadd.f32 %v655, 1e-05
          %v688 = vadd.f32 %v656, 1e-05
          %v689 = vadd.f32 %v657, 1e-05
          %v690 = vadd.f32 %v658, 1e-05
          %v691 = vadd.f32 %v659, 1e-05
          %v692 = vadd.f32 %v660, 1e-05
          %v693 = vadd.f32 %v661, 1e-05
          %v694 = vadd.f32 %v662, 1e-05
          %v695 = vadd.f32 %v663, 1e-05
          %v696 = vadd.f32 %v664, 1e-05
          %v697 = vadd.f32 %v665, 1e-05
          %v698 = vadd.f32 %v666, 1e-05
          %v699 = vadd.f32 %v667, 1e-05
          %v700 = vadd.f32 %v668, 1e-05
          %v701 = vadd.f32 %v669, 1e-05
          %v702 = vadd.f32 %v670, 1e-05
          %v703 = vadd.f32 %v671, 1e-05
          %v704 = vadd.f32 %v672, 1e-05
          %v705 = vadd.f32 %v673, 1e-05
          %v706 = vadd.f32 %v674, 1e-05
          %v707 = vadd.f32 %v675, 1e-05
          %v708 = vadd.f32 %v676, 1e-05
          %v709 = vadd.f32 %v677, 1e-05
          %v710 = vadd.f32 %v678, 1e-05
          %v711 = vadd.f32 %v679, 1e-05
          %v712 = vadd.f32 %v680, 1e-05
          %v713 = vadd.f32 %v681, 1e-05
          %v714 = vadd.f32 %v682, 1e-05
          %v715 = vadd.f32 %v683, 1e-05
          %v716 = vadd.f32 %v684, 1e-05
          %v717 = vadd.f32 %v685, 1e-05
          %v718 = vadd.f32 %v686, 1e-05
          %v719 = vrsqrt.pop %v687
          %v720 = vrsqrt.pop %v688
          %v721 = vrsqrt.pop %v689
          %v722 = vrsqrt.pop %v690
          %v723 = vrsqrt.pop %v691
          %v724 = vrsqrt.pop %v692
          %v725 = vrsqrt.pop %v693
          %v726 = vrsqrt.pop %v694
          %v727 = vrsqrt.pop %v695
          %v728 = vrsqrt.pop %v696
          %v729 = vrsqrt.pop %v697
          %v730 = vrsqrt.pop %v698
          %v731 = vrsqrt.pop %v699
          %v732 = vrsqrt.pop %v700
          %v733 = vrsqrt.pop %v701
          %v734 = vrsqrt.pop %v702
          %v735 = vrsqrt.pop %v703
          %v736 = vrsqrt.pop %v704
          %v737 = vrsqrt.pop %v705
          %v738 = vrsqrt.pop %v706
          %v739 = vrsqrt.pop %v707
          %v740 = vrsqrt.pop %v708
          %v741 = vrsqrt.pop %v709
          %v742 = vrsqrt.pop %v710
          %v743 = vrsqrt.pop %v711
          %v744 = vrsqrt.pop %v712
          %v745 = vrsqrt.pop %v713
          %v746 = vrsqrt.pop %v714
          %v747 = vrsqrt.pop %v715
          %v748 = vrsqrt.pop %v716
          %v749 = vrsqrt.pop %v717
          %v750 = vrsqrt.pop %v718
          %v751 = vmul.f32 %v495, %v719
          %v752 = vmul.f32 %v496, %v720
          %v753 = vmul.f32 %v497, %v721
          %v754 = vmul.f32 %v498, %v722
          %v755 = vmul.f32 %v499, %v723
          %v756 = vmul.f32 %v500, %v724
          %v757 = vmul.f32 %v501, %v725
          %v758 = vmul.f32 %v502, %v726
          %v759 = vmul.f32 %v503, %v727
          %v760 = vmul.f32 %v504, %v728
          %v761 = vmul.f32 %v505, %v729
          %v762 = vmul.f32 %v506, %v730
          %v763 = vmul.f32 %v507, %v731
          %v764 = vmul.f32 %v508, %v732
          %v765 = vmul.f32 %v509, %v733
          %v766 = vmul.f32 %v510, %v734
          %v767 = vmul.f32 %v511, %v735
          %v768 = vmul.f32 %v512, %v736
          %v769 = vmul.f32 %v513, %v737
          %v770 = vmul.f32 %v514, %v738
          %v771 = vmul.f32 %v515, %v739
          %v772 = vmul.f32 %v516, %v740
          %v773 = vmul.f32 %v517, %v741
          %v774 = vmul.f32 %v518, %v742
          %v775 = vmul.f32 %v519, %v743
          %v776 = vmul.f32 %v520, %v744
          %v777 = vmul.f32 %v521, %v745
          %v778 = vmul.f32 %v522, %v746
          %v779 = vmul.f32 %v523, %v747
          %v780 = vmul.f32 %v524, %v748
          %v781 = vmul.f32 %v525, %v749
          %v782 = vmul.f32 %v526, %v750
          %v783 = vld [vmem:[%s3] sm:$0x1]
          %v785 = vlaneseq
          %v786 = vshrl.u32 %v785, 7
          %v787 = vsub.s32 0, %v786
          %v788 = vrot.slane %v783, %v787
          %v790 = vmul.f32 %v751, %v788
          %v791 = vmul.f32 %v752, %v788
          %v792 = vmul.f32 %v753, %v788
          %v793 = vmul.f32 %v754, %v788
          %v794 = vmul.f32 %v755, %v788
          %v795 = vmul.f32 %v756, %v788
          %v796 = vmul.f32 %v757, %v788
          %v797 = vmul.f32 %v758, %v788
          %v798 = vmul.f32 %v759, %v788
          %v799 = vmul.f32 %v760, %v788
          %v800 = vmul.f32 %v761, %v788
          %v801 = vmul.f32 %v762, %v788
          %v802 = vmul.f32 %v763, %v788
          %v803 = vmul.f32 %v764, %v788
          %v804 = vmul.f32 %v765, %v788
          %v805 = vmul.f32 %v766, %v788
          %v806 = vmul.f32 %v767, %v788
          %v807 = vmul.f32 %v768, %v788
          %v808 = vmul.f32 %v769, %v788
          %v809 = vmul.f32 %v770, %v788
          %v810 = vmul.f32 %v771, %v788
          %v811 = vmul.f32 %v772, %v788
          %v812 = vmul.f32 %v773, %v788
          %v813 = vmul.f32 %v774, %v788
          %v814 = vmul.f32 %v775, %v788
          %v815 = vmul.f32 %v776, %v788
          %v816 = vmul.f32 %v777, %v788
          %v817 = vmul.f32 %v778, %v788
          %v818 = vmul.f32 %v779, %v788
          %v819 = vmul.f32 %v780, %v788
          %v820 = vmul.f32 %v781, %v788
          %v821 = vmul.f32 %v782, %v788
          %v822 = vld [vmem:[%s4] sm:$0x1]
          %v824 = vlaneseq
          %v825 = vshrl.u32 %v824, 7
          %v826 = vsub.s32 0, %v825
          %v827 = vrot.slane %v822, %v826
          %v829 = vadd.f32 %v790, %v827
          %v830 = vadd.f32 %v791, %v827
          %v831 = vadd.f32 %v792, %v827
          %v832 = vadd.f32 %v793, %v827
          %v833 = vadd.f32 %v794, %v827
          %v834 = vadd.f32 %v795, %v827
          %v835 = vadd.f32 %v796, %v827
          %v836 = vadd.f32 %v797, %v827
          %v837 = vadd.f32 %v798, %v827
          %v838 = vadd.f32 %v799, %v827
          %v839 = vadd.f32 %v800, %v827
          %v840 = vadd.f32 %v801, %v827
          %v841 = vadd.f32 %v802, %v827
          %v842 = vadd.f32 %v803, %v827
          %v843 = vadd.f32 %v804, %v827
          %v844 = vadd.f32 %v805, %v827
          %v845 = vadd.f32 %v806, %v827
          %v846 = vadd.f32 %v807, %v827
          %v847 = vadd.f32 %v808, %v827
          %v848 = vadd.f32 %v809, %v827
          %v849 = vadd.f32 %v810, %v827
          %v850 = vadd.f32 %v811, %v827
          %v851 = vadd.f32 %v812, %v827
          %v852 = vadd.f32 %v813, %v827
          %v853 = vadd.f32 %v814, %v827
          %v854 = vadd.f32 %v815, %v827
          %v855 = vadd.f32 %v816, %v827
          %v856 = vadd.f32 %v817, %v827
          %v857 = vadd.f32 %v818, %v827
          %v858 = vadd.f32 %v819, %v827
          %v859 = vadd.f32 %v820, %v827
          %v860 = vadd.f32 %v821, %v827
          %v861 = vpack.c.bf16 %v830, %v829
          %v862 = vpack.c.bf16 %v832, %v831
          %v863 = vpack.c.bf16 %v834, %v833
          %v864 = vpack.c.bf16 %v836, %v835
          %v865 = vpack.c.bf16 %v838, %v837
          %v866 = vpack.c.bf16 %v840, %v839
          %v867 = vpack.c.bf16 %v842, %v841
          %v868 = vpack.c.bf16 %v844, %v843
          %v869 = vpack.c.bf16 %v846, %v845
          %v870 = vpack.c.bf16 %v848, %v847
          %v871 = vpack.c.bf16 %v850, %v849
          %v872 = vpack.c.bf16 %v852, %v851
          %v873 = vpack.c.bf16 %v854, %v853
          %v874 = vpack.c.bf16 %v856, %v855
          %v875 = vpack.c.bf16 %v858, %v857
          %v876 = vpack.c.bf16 %v860, %v859
          %877 = vst.msk [vmem:[#allocation2] sm:$0xff] %vm365, %v861
          %878 = vst.msk [vmem:[#allocation2 + $0x8] sm:$0xff] %vm365, %v862
          %879 = vst.msk [vmem:[#allocation2 + $0x10] sm:$0xff] %vm365, %v863
          %880 = vst.msk [vmem:[#allocation2 + $0x18] sm:$0xff] %vm365, %v864
          %881 = vst.msk [vmem:[#allocation2 + $0x20] sm:$0xff] %vm365, %v865
          %882 = vst.msk [vmem:[#allocation2 + $0x28] sm:$0xff] %vm365, %v866
          %883 = vst.msk [vmem:[#allocation2 + $0x30] sm:$0xff] %vm365, %v867
          %884 = vst.msk [vmem:[#allocation2 + $0x38] sm:$0xff] %vm365, %v868
          %885 = vst.msk [vmem:[#allocation2 + $0x40] sm:$0xff] %vm365, %v869
          %886 = vst.msk [vmem:[#allocation2 + $0x48] sm:$0xff] %vm365, %v870
          %887 = vst.msk [vmem:[#allocation2 + $0x50] sm:$0xff] %vm365, %v871
          %888 = vst.msk [vmem:[#allocation2 + $0x58] sm:$0xff] %vm365, %v872
          %889 = vst.msk [vmem:[#allocation2 + $0x60] sm:$0xff] %vm365, %v873
          %890 = vst.msk [vmem:[#allocation2 + $0x68] sm:$0xff] %vm365, %v874
          %891 = vst.msk [vmem:[#allocation2 + $0x70] sm:$0xff] %vm365, %v875
          %892 = vst.msk [vmem:[#allocation2 + $0x78] sm:$0xff] %vm365, %v876
        $region82: #{tpu_custom_call.1} parent=73 // pred_fallthru
          _
        %v893 = vld [vmem:[#allocation2] sm:$0xff]
        %v894 = vld [vmem:[#allocation2 + $0x8] sm:$0xff]
        %v895 = vld [vmem:[#allocation2 + $0x10] sm:$0xff]
        %v896 = vld [vmem:[#allocation2 + $0x18] sm:$0xff]
        %v897 = vld [vmem:[#allocation2 + $0x20] sm:$0xff]
        %v898 = vld [vmem:[#allocation2 + $0x28] sm:$0xff]
        %v899 = vld [vmem:[#allocation2 + $0x30] sm:$0xff]
        %v900 = vld [vmem:[#allocation2 + $0x38] sm:$0xff]
        %v901 = vld [vmem:[#allocation2 + $0x40] sm:$0xff]
        %v902 = vld [vmem:[#allocation2 + $0x48] sm:$0xff]
        %v903 = vld [vmem:[#allocation2 + $0x50] sm:$0xff]
        %v904 = vld [vmem:[#allocation2 + $0x58] sm:$0xff]
        %v905 = vld [vmem:[#allocation2 + $0x60] sm:$0xff]
        %v906 = vld [vmem:[#allocation2 + $0x68] sm:$0xff]
        %v907 = vld [vmem:[#allocation2 + $0x70] sm:$0xff]
        %v908 = vld [vmem:[#allocation2 + $0x78] sm:$0xff]
        %v909 = vld [vmem:[%s280] sm:$0xff]
        %v910 = vld [vmem:[%s280 + $0x8] sm:$0xff]
        %v911 = vld [vmem:[%s280 + $0x10] sm:$0xff]
        %v912 = vld [vmem:[%s280 + $0x18] sm:$0xff]
        %v913 = vld [vmem:[%s324] sm:$0x3]
        %v915 = vlaneseq
        %v916 = vshrl.u32 %v915, 7
        %v917 = vsub.s32 0, %v916
        %v918 = vrot.slane %v913, %v917
        %v919 = vlaneseq
        %v920 = vshrl.u32 %v919, 7
        %v921 = vsub.s32 1, %v920
        %v922 = vrot.slane %v913, %v921
        %v929 = vunpack.c.l.b16 %v909
        %v930 = vunpack.c.h.b16 %v909
        %v931 = vunpack.c.l.b16 %v910
        %v932 = vunpack.c.h.b16 %v910
        %v933 = vunpack.c.l.b16 %v911
        %v934 = vunpack.c.h.b16 %v911
        %v935 = vunpack.c.l.b16 %v912
        %v936 = vunpack.c.h.b16 %v912
        %v937 = vpack.c.b16 %v931, %v929
        %v938 = vpack.c.b16 %v932, %v930
        %v939 = vpack.c.b16 %v935, %v933
        %v940 = vpack.c.b16 %v936, %v934
        %vm945 = vcmask 261120
        %v947 = vsel %vm945, %v893, 0
        %v950 = vsel %vm945, %v894, 0
        %v953 = vsel %vm945, %v895, 0
        %v956 = vsel %vm945, %v896, 0
        %v959 = vsel %vm945, %v897, 0
        %v962 = vsel %vm945, %v898, 0
        %v965 = vsel %vm945, %v899, 0
        %v968 = vsel %vm945, %v900, 0
        %v971 = vsel %vm945, %v901, 0
        %v974 = vsel %vm945, %v902, 0
        %v977 = vsel %vm945, %v903, 0
        %v980 = vsel %vm945, %v904, 0
        %v983 = vsel %vm945, %v905, 0
        %v986 = vsel %vm945, %v906, 0
        %v989 = vsel %vm945, %v907, 0
        %v992 = vsel %vm945, %v908, 0
        %994 = vmatprep.subr.bf16.mxu0 %v938
        %995 = vmatpush1.bf16.msra.mxu0 %v937
        %996 = vmatprep.subr.bf16.mxu0 %v940
        %997 = vmatpush1.bf16.msra.mxu0 %v939
        %998 = vmatprep.subr.bf16.mxu0 0
        %999 = vmatpush1.bf16.msra.mxu0 0
        %1000 = vmatprep.subr.bf16.mxu0 0
        %1001 = vmatpush1.bf16.msra.mxu0 0
        %1002 = vmatprep.subr.bf16.mxu0 0
        %1003 = vmatpush1.bf16.msra.mxu0 0
        %1004 = vmatprep.subr.bf16.mxu0 0
        %1005 = vmatpush1.bf16.msra.mxu0 0
        %1006 = vmatprep.subr.bf16.mxu0 0
        %1007 = vmatpush1.bf16.msra.mxu0 0
        %1008 = vmatprep.subr.bf16.mxu0 0
        %1009 = vmatpush1.bf16.msra.mxu0 0
        %1010 = vmatprep.subr.bf16.mxu0 0
        %1011 = vmatpush1.bf16.msra.mxu0 0
        %1012 = vmatprep.subr.bf16.mxu0 0
        %1013 = vmatpush1.bf16.msra.mxu0 0
        %1014 = vmatprep.subr.bf16.mxu0 0
        %1015 = vmatpush1.bf16.msra.mxu0 0
        %1016 = vmatprep.subr.bf16.mxu0 0
        %1017 = vmatpush1.bf16.msra.mxu0 0
        %1018 = vmatprep.subr.bf16.mxu0 0
        %1019 = vmatpush1.bf16.msra.mxu0 0
        %1020 = vmatprep.subr.bf16.mxu0 0
        %1021 = vmatpush1.bf16.msra.mxu0 0
        %1022 = vmatprep.subr.bf16.mxu0 0
        %1023 = vmatpush1.bf16.msra.mxu0 0
        %1024 = vmatprep.subr.bf16.mxu0 0
        %1025 = vmatpush1.bf16.msra.mxu0 0
        %1026 = vmatprep.mubr.bf16.mxu0 0
        %1027 = vmatmul.mubr.bf16.gmra.mrb[0].mxu0 %v947
        %v1028 = vpop.f32.mrb[0].mxu0
        %v1029 = vadd.f32 %v918, %v1028
        %v1030 = vpop.f32.mrb[0].mxu0
        %v1031 = vadd.f32 %v922, %v1030
        %v1032 = vpop.f32.mrb[0].mxu0
        %v1033 = vadd.f32 %v918, %v1032
        %v1034 = vpop.f32.mrb[0].mxu0
        %v1035 = vadd.f32 %v922, %v1034
        %1036 = vmatprep.mubr.bf16.mxu0 0
        %1037 = vmatmul.mubr.bf16.gmra.mrb[0].mxu0 %v950
        %v1038 = vpop.f32.mrb[0].mxu0
        %v1039 = vadd.f32 %v918, %v1038
        %v1040 = vpop.f32.mrb[0].mxu0
        %v1041 = vadd.f32 %v922, %v1040
        %v1042 = vpop.f32.mrb[0].mxu0
        %v1043 = vadd.f32 %v918, %v1042
        %v1044 = vpop.f32.mrb[0].mxu0
        %v1045 = vadd.f32 %v922, %v1044
        %1046 = vmatprep.mubr.bf16.mxu0 0
        %1047 = vmatmul.mubr.bf16.gmra.mrb[0].mxu0 %v953
        %v1048 = vpop.f32.mrb[0].mxu0
        %v1049 = vadd.f32 %v918, %v1048
        %v1050 = vpop.f32.mrb[0].mxu0
        %v1051 = vadd.f32 %v922, %v1050
        %v1052 = vpop.f32.mrb[0].mxu0
        %v1053 = vadd.f32 %v918, %v1052
        %v1054 = vpop.f32.mrb[0].mxu0
        %v1055 = vadd.f32 %v922, %v1054
        %1056 = vmatprep.mubr.bf16.mxu0 0
        %1057 = vmatmul.mubr.bf16.gmra.mrb[0].mxu0 %v956
        %v1058 = vpop.f32.mrb[0].mxu0
        %v1059 = vadd.f32 %v918, %v1058
        %v1060 = vpop.f32.mrb[0].mxu0
        %v1061 = vadd.f32 %v922, %v1060
        %v1062 = vpop.f32.mrb[0].mxu0
        %v1063 = vadd.f32 %v918, %v1062
        %v1064 = vpop.f32.mrb[0].mxu0
        %v1065 = vadd.f32 %v922, %v1064
        %1066 = vmatprep.mubr.bf16.mxu0 0
        %1067 = vmatmul.mubr.bf16.gmra.mrb[0].mxu0 %v959
        %v1068 = vpop.f32.mrb[0].mxu0
        %v1069 = vadd.f32 %v918, %v1068
        %v1070 = vpop.f32.mrb[0].mxu0
        %v1071 = vadd.f32 %v922, %v1070
        %v1072 = vpop.f32.mrb[0].mxu0
        %v1073 = vadd.f32 %v918, %v1072
        %v1074 = vpop.f32.mrb[0].mxu0
        %v1075 = vadd.f32 %v922, %v1074
        %1076 = vmatprep.mubr.bf16.mxu0 0
        %1077 = vmatmul.mubr.bf16.gmra.mrb[0].mxu0 %v962
        %v1078 = vpop.f32.mrb[0].mxu0
        %v1079 = vadd.f32 %v918, %v1078
        %v1080 = vpop.f32.mrb[0].mxu0
        %v1081 = vadd.f32 %v922, %v1080
        %v1082 = vpop.f32.mrb[0].mxu0
        %v1083 = vadd.f32 %v918, %v1082
        %v1084 = vpop.f32.mrb[0].mxu0
        %v1085 = vadd.f32 %v922, %v1084
        %1086 = vmatprep.mubr.bf16.mxu0 0
        %1087 = vmatmul.mubr.bf16.gmra.mrb[0].mxu0 %v965
        %v1088 = vpop.f32.mrb[0].mxu0
        %v1089 = vadd.f32 %v918, %v1088
        %v1090 = vpop.f32.mrb[0].mxu0
        %v1091 = vadd.f32 %v922, %v1090
        %v1092 = vpop.f32.mrb[0].mxu0
        %v1093 = vadd.f32 %v918, %v1092
        %v1094 = vpop.f32.mrb[0].mxu0
        %v1095 = vadd.f32 %v922, %v1094
        %1096 = vmatprep.mubr.bf16.mxu0 0
        %1097 = vmatmul.mubr.bf16.gmra.mrb[0].mxu0 %v968
        %v1098 = vpop.f32.mrb[0].mxu0
        %v1099 = vadd.f32 %v918, %v1098
        %v1100 = vpop.f32.mrb[0].mxu0
        %v1101 = vadd.f32 %v922, %v1100
        %v1102 = vpop.f32.mrb[0].mxu0
        %v1103 = vadd.f32 %v918, %v1102
        %v1104 = vpop.f32.mrb[0].mxu0
        %v1105 = vadd.f32 %v922, %v1104
        %1106 = vmatprep.mubr.bf16.mxu0 0
        %1107 = vmatmul.mubr.bf16.gmra.mrb[0].mxu0 %v971
        %v1108 = vpop.f32.mrb[0].mxu0
        %v1109 = vadd.f32 %v918, %v1108
        %v1110 = vpop.f32.mrb[0].mxu0
        %v1111 = vadd.f32 %v922, %v1110
        %v1112 = vpop.f32.mrb[0].mxu0
        %v1113 = vadd.f32 %v918, %v1112
        %v1114 = vpop.f32.mrb[0].mxu0
        %v1115 = vadd.f32 %v922, %v1114
        %1116 = vmatprep.mubr.bf16.mxu0 0
        %1117 = vmatmul.mubr.bf16.gmra.mrb[0].mxu0 %v974
        %v1118 = vpop.f32.mrb[0].mxu0
        %v1119 = vadd.f32 %v918, %v1118
        %v1120 = vpop.f32.mrb[0].mxu0
        %v1121 = vadd.f32 %v922, %v1120
        %v1122 = vpop.f32.mrb[0].mxu0
        %v1123 = vadd.f32 %v918, %v1122
        %v1124 = vpop.f32.mrb[0].mxu0
        %v1125 = vadd.f32 %v922, %v1124
        %1126 = vmatprep.mubr.bf16.mxu0 0
        %1127 = vmatmul.mubr.bf16.gmra.mrb[0].mxu0 %v977
        %v1128 = vpop.f32.mrb[0].mxu0
        %v1129 = vadd.f32 %v918, %v1128
        %v1130 = vpop.f32.mrb[0].mxu0
        %v1131 = vadd.f32 %v922, %v1130
        %v1132 = vpop.f32.mrb[0].mxu0
        %v1133 = vadd.f32 %v918, %v1132
        %v1134 = vpop.f32.mrb[0].mxu0
        %v1135 = vadd.f32 %v922, %v1134
        %1136 = vmatprep.mubr.bf16.mxu0 0
        %1137 = vmatmul.mubr.bf16.gmra.mrb[0].mxu0 %v980
        %v1138 = vpop.f32.mrb[0].mxu0
        %v1139 = vadd.f32 %v918, %v1138
        %v1140 = vpop.f32.mrb[0].mxu0
        %v1141 = vadd.f32 %v922, %v1140
        %v1142 = vpop.f32.mrb[0].mxu0
        %v1143 = vadd.f32 %v918, %v1142
        %v1144 = vpop.f32.mrb[0].mxu0
        %v1145 = vadd.f32 %v922, %v1144
        %1146 = vmatprep.mubr.bf16.mxu0 0
        %1147 = vmatmul.mubr.bf16.gmra.mrb[0].mxu0 %v983
        %v1148 = vpop.f32.mrb[0].mxu0
        %v1149 = vadd.f32 %v918, %v1148
        %v1150 = vpop.f32.mrb[0].mxu0
        %v1151 = vadd.f32 %v922, %v1150
        %v1152 = vpop.f32.mrb[0].mxu0
        %v1153 = vadd.f32 %v918, %v1152
        %v1154 = vpop.f32.mrb[0].mxu0
        %v1155 = vadd.f32 %v922, %v1154
        %1156 = vmatprep.mubr.bf16.mxu0 0
        %1157 = vmatmul.mubr.bf16.gmra.mrb[0].mxu0 %v986
        %v1158 = vpop.f32.mrb[0].mxu0
        %v1159 = vadd.f32 %v918, %v1158
        %v1160 = vpop.f32.mrb[0].mxu0
        %v1161 = vadd.f32 %v922, %v1160
        %v1162 = vpop.f32.mrb[0].mxu0
        %v1163 = vadd.f32 %v918, %v1162
        %v1164 = vpop.f32.mrb[0].mxu0
        %v1165 = vadd.f32 %v922, %v1164
        %1166 = vmatprep.mubr.bf16.mxu0 0
        %1167 = vmatmul.mubr.bf16.gmra.mrb[0].mxu0 %v989
        %v1168 = vpop.f32.mrb[0].mxu0
        %v1169 = vadd.f32 %v918, %v1168
        %v1170 = vpop.f32.mrb[0].mxu0
        %v1171 = vadd.f32 %v922, %v1170
        %v1172 = vpop.f32.mrb[0].mxu0
        %v1173 = vadd.f32 %v918, %v1172
        %v1174 = vpop.f32.mrb[0].mxu0
        %v1175 = vadd.f32 %v922, %v1174
        %1176 = vmatprep.mubr.bf16.mxu0 0
        %1177 = vmatmul.mubr.bf16.gmra.mrb[0].mxu0 %v992
        %v1178 = vpop.f32.mrb[0].mxu0
        %v1179 = vadd.f32 %v918, %v1178
        %v1180 = vpop.f32.mrb[0].mxu0
        %v1181 = vadd.f32 %v922, %v1180
        %v1182 = vpop.f32.mrb[0].mxu0
        %v1183 = vadd.f32 %v918, %v1182
        %v1184 = vpop.f32.mrb[0].mxu0
        %v1185 = vadd.f32 %v922, %v1184
        %1186 = vdwg.mxu0
        %v1187 = vmul.f32 %v1029, 0.5
        %v1188 = vmul.f32 %v1031, 0.5
        %v1189 = vmul.f32 %v1033, 0.5
        %v1190 = vmul.f32 %v1035, 0.5
        %v1191 = vmul.f32 %v1039, 0.5
        %v1192 = vmul.f32 %v1041, 0.5
        %v1193 = vmul.f32 %v1043, 0.5
        %v1194 = vmul.f32 %v1045, 0.5
        %v1195 = vmul.f32 %v1049, 0.5
        %v1196 = vmul.f32 %v1051, 0.5
        %v1197 = vmul.f32 %v1053, 0.5
        %v1198 = vmul.f32 %v1055, 0.5
        %v1199 = vmul.f32 %v1059, 0.5
        %v1200 = vmul.f32 %v1061, 0.5
        %v1201 = vmul.f32 %v1063, 0.5
        %v1202 = vmul.f32 %v1065, 0.5
        %v1203 = vmul.f32 %v1069, 0.5
        %v1204 = vmul.f32 %v1071, 0.5
        %v1205 = vmul.f32 %v1073, 0.5
        %v1206 = vmul.f32 %v1075, 0.5
        %v1207 = vmul.f32 %v1079, 0.5
        %v1208 = vmul.f32 %v1081, 0.5
        %v1209 = vmul.f32 %v1083, 0.5
        %v1210 = vmul.f32 %v1085, 0.5
        %v1211 = vmul.f32 %v1089, 0.5
        %v1212 = vmul.f32 %v1091, 0.5
        %v1213 = vmul.f32 %v1093, 0.5
        %v1214 = vmul.f32 %v1095, 0.5
        %v1215 = vmul.f32 %v1099, 0.5
        %v1216 = vmul.f32 %v1101, 0.5
        %v1217 = vmul.f32 %v1103, 0.5
        %v1218 = vmul.f32 %v1105, 0.5
        %v1219 = vmul.f32 %v1109, 0.5
        %v1220 = vmul.f32 %v1111, 0.5
        %v1221 = vmul.f32 %v1113, 0.5
        %v1222 = vmul.f32 %v1115, 0.5
        %v1223 = vmul.f32 %v1119, 0.5
        %v1224 = vmul.f32 %v1121, 0.5
        %v1225 = vmul.f32 %v1123, 0.5
        %v1226 = vmul.f32 %v1125, 0.5
        %v1227 = vmul.f32 %v1129, 0.5
        %v1228 = vmul.f32 %v1131, 0.5
        %v1229 = vmul.f32 %v1133, 0.5
        %v1230 = vmul.f32 %v1135, 0.5
        %v1231 = vmul.f32 %v1139, 0.5
        %v1232 = vmul.f32 %v1141, 0.5
        %v1233 = vmul.f32 %v1143, 0.5
        %v1234 = vmul.f32 %v1145, 0.5
        %v1235 = vmul.f32 %v1149, 0.5
        %v1236 = vmul.f32 %v1151, 0.5
        %v1237 = vmul.f32 %v1153, 0.5
        %v1238 = vmul.f32 %v1155, 0.5
        %v1239 = vmul.f32 %v1159, 0.5
        %v1240 = vmul.f32 %v1161, 0.5
        %v1241 = vmul.f32 %v1163, 0.5
        %v1242 = vmul.f32 %v1165, 0.5
        %v1243 = vmul.f32 %v1169, 0.5
        %v1244 = vmul.f32 %v1171, 0.5
        %v1245 = vmul.f32 %v1173, 0.5
        %v1246 = vmul.f32 %v1175, 0.5
        %v1247 = vmul.f32 %v1179, 0.5
        %v1248 = vmul.f32 %v1181, 0.5
        %v1249 = vmul.f32 %v1183, 0.5
        %v1250 = vmul.f32 %v1185, 0.5
        %v1251 = vmul.f32 %v1029, 0.70710677
        %v1252 = vmul.f32 %v1031, 0.70710677
        %v1253 = vmul.f32 %v1033, 0.70710677
        %v1254 = vmul.f32 %v1035, 0.70710677
        %v1255 = vmul.f32 %v1039, 0.70710677
        %v1256 = vmul.f32 %v1041, 0.70710677
        %v1257 = vmul.f32 %v1043, 0.70710677
        %v1258 = vmul.f32 %v1045, 0.70710677
        %v1259 = vmul.f32 %v1049, 0.70710677
        %v1260 = vmul.f32 %v1051, 0.70710677
        %v1261 = vmul.f32 %v1053, 0.70710677
        %v1262 = vmul.f32 %v1055, 0.70710677
        %v1263 = vmul.f32 %v1059, 0.70710677
        %v1264 = vmul.f32 %v1061, 0.70710677
        %v1265 = vmul.f32 %v1063, 0.70710677
        %v1266 = vmul.f32 %v1065, 0.70710677
        %v1267 = vmul.f32 %v1069, 0.70710677
        %v1268 = vmul.f32 %v1071, 0.70710677
        %v1269 = vmul.f32 %v1073, 0.70710677
        %v1270 = vmul.f32 %v1075, 0.70710677
        %v1271 = vmul.f32 %v1079, 0.70710677
        %v1272 = vmul.f32 %v1081, 0.70710677
        %v1273 = vmul.f32 %v1083, 0.70710677
        %v1274 = vmul.f32 %v1085, 0.70710677
        %v1275 = vmul.f32 %v1089, 0.70710677
        %v1276 = vmul.f32 %v1091, 0.70710677
        %v1277 = vmul.f32 %v1093, 0.70710677
        %v1278 = vmul.f32 %v1095, 0.70710677
        %v1279 = vmul.f32 %v1099, 0.70710677
        %v1280 = vmul.f32 %v1101, 0.70710677
        %v1281 = vmul.f32 %v1103, 0.70710677
        %v1282 = vmul.f32 %v1105, 0.70710677
        %v1283 = vmul.f32 %v1109, 0.70710677
        %v1284 = vmul.f32 %v1111, 0.70710677
        %v1285 = vmul.f32 %v1113, 0.70710677
        %v1286 = vmul.f32 %v1115, 0.70710677
        %v1287 = vmul.f32 %v1119, 0.70710677
        %v1288 = vmul.f32 %v1121, 0.70710677
        %v1289 = vmul.f32 %v1123, 0.70710677
        %v1290 = vmul.f32 %v1125, 0.70710677
        %v1291 = vmul.f32 %v1129, 0.70710677
        %v1292 = vmul.f32 %v1131, 0.70710677
        %v1293 = vmul.f32 %v1133, 0.70710677
        %v1294 = vmul.f32 %v1135, 0.70710677
        %v1295 = vmul.f32 %v1139, 0.70710677
        %v1296 = vmul.f32 %v1141, 0.70710677
        %v1297 = vmul.f32 %v1143, 0.70710677
        %v1298 = vmul.f32 %v1145, 0.70710677
        %v1299 = vmul.f32 %v1149, 0.70710677
        %v1300 = vmul.f32 %v1151, 0.70710677
        %v1301 = vmul.f32 %v1153, 0.70710677
        %v1302 = vmul.f32 %v1155, 0.70710677
        %v1303 = vmul.f32 %v1159, 0.70710677
        %v1304 = vmul.f32 %v1161, 0.70710677
        %v1305 = vmul.f32 %v1163, 0.70710677
        %v1306 = vmul.f32 %v1165, 0.70710677
        %v1307 = vmul.f32 %v1169, 0.70710677
        %v1308 = vmul.f32 %v1171, 0.70710677
        %v1309 = vmul.f32 %v1173, 0.70710677
        %v1310 = vmul.f32 %v1175, 0.70710677
        %v1311 = vmul.f32 %v1179, 0.70710677
        %v1312 = vmul.f32 %v1181, 0.70710677
        %v1313 = vmul.f32 %v1183, 0.70710677
        %v1314 = vmul.f32 %v1185, 0.70710677
        %v1315 = vand.u32 2147483647, %v1251
        %v1316 = vand.u32 2147483647, %v1252
        %v1317 = vand.u32 2147483647, %v1253
        %v1318 = vand.u32 2147483647, %v1254
        %v1319 = vand.u32 2147483647, %v1255
        %v1320 = vand.u32 2147483647, %v1256
        %v1321 = vand.u32 2147483647, %v1257
        %v1322 = vand.u32 2147483647, %v1258
        %v1323 = vand.u32 2147483647, %v1259
        %v1324 = vand.u32 2147483647, %v1260
        %v1325 = vand.u32 2147483647, %v1261
        %v1326 = vand.u32 2147483647, %v1262
        %v1327 = vand.u32 2147483647, %v1263
        %v1328 = vand.u32 2147483647, %v1264
        %v1329 = vand.u32 2147483647, %v1265
        %v1330 = vand.u32 2147483647, %v1266
        %v1331 = vand.u32 2147483647, %v1267
        %v1332 = vand.u32 2147483647, %v1268
        %v1333 = vand.u32 2147483647, %v1269
        %v1334 = vand.u32 2147483647, %v1270
        %v1335 = vand.u32 2147483647, %v1271
        %v1336 = vand.u32 2147483647, %v1272
        %v1337 = vand.u32 2147483647, %v1273
        %v1338 = vand.u32 2147483647, %v1274
        %v1339 = vand.u32 2147483647, %v1275
        %v1340 = vand.u32 2147483647, %v1276
        %v1341 = vand.u32 2147483647, %v1277
        %v1342 = vand.u32 2147483647, %v1278
        %v1343 = vand.u32 2147483647, %v1279
        %v1344 = vand.u32 2147483647, %v1280
        %v1345 = vand.u32 2147483647, %v1281
        %v1346 = vand.u32 2147483647, %v1282
        %v1347 = vand.u32 2147483647, %v1283
        %v1348 = vand.u32 2147483647, %v1284
        %v1349 = vand.u32 2147483647, %v1285
        %v1350 = vand.u32 2147483647, %v1286
        %v1351 = vand.u32 2147483647, %v1287
        %v1352 = vand.u32 2147483647, %v1288
        %v1353 = vand.u32 2147483647, %v1289
        %v1354 = vand.u32 2147483647, %v1290
        %v1355 = vand.u32 2147483647, %v1291
        %v1356 = vand.u32 2147483647, %v1292
        %v1357 = vand.u32 2147483647, %v1293
        %v1358 = vand.u32 2147483647, %v1294
        %v1359 = vand.u32 2147483647, %v1295
        %v1360 = vand.u32 2147483647, %v1296
        %v1361 = vand.u32 2147483647, %v1297
        %v1362 = vand.u32 2147483647, %v1298
        %v1363 = vand.u32 2147483647, %v1299
        %v1364 = vand.u32 2147483647, %v1300
        %v1365 = vand.u32 2147483647, %v1301
        %v1366 = vand.u32 2147483647, %v1302
        %v1367 = vand.u32 2147483647, %v1303
        %v1368 = vand.u32 2147483647, %v1304
        %v1369 = vand.u32 2147483647, %v1305
        %v1370 = vand.u32 2147483647, %v1306
        %v1371 = vand.u32 2147483647, %v1307
        %v1372 = vand.u32 2147483647, %v1308
        %v1373 = vand.u32 2147483647, %v1309
        %v1374 = vand.u32 2147483647, %v1310
        %v1375 = vand.u32 2147483647, %v1311
        %v1376 = vand.u32 2147483647, %v1312
        %v1377 = vand.u32 2147483647, %v1313
        %v1378 = vand.u32 2147483647, %v1314
        %v1379 = vmul.f32 %v1315, 0.3275911
        %v1380 = vmul.f32 %v1316, 0.3275911
        %v1381 = vmul.f32 %v1317, 0.3275911
        %v1382 = vmul.f32 %v1318, 0.3275911
        %v1383 = vmul.f32 %v1319, 0.3275911
        %v1384 = vmul.f32 %v1320, 0.3275911
        %v1385 = vmul.f32 %v1321, 0.3275911
        %v1386 = vmul.f32 %v1322, 0.3275911
        %v1387 = vmul.f32 %v1323, 0.3275911
        %v1388 = vmul.f32 %v1324, 0.3275911
        %v1389 = vmul.f32 %v1325, 0.3275911
        %v1390 = vmul.f32 %v1326, 0.3275911
        %v1391 = vmul.f32 %v1327, 0.3275911
        %v1392 = vmul.f32 %v1328, 0.3275911
        %v1393 = vmul.f32 %v1329, 0.3275911
        %v1394 = vmul.f32 %v1330, 0.3275911
        %v1395 = vmul.f32 %v1331, 0.3275911
        %v1396 = vmul.f32 %v1332, 0.3275911
        %v1397 = vmul.f32 %v1333, 0.3275911
        %v1398 = vmul.f32 %v1334, 0.3275911
        %v1399 = vmul.f32 %v1335, 0.3275911
        %v1400 = vmul.f32 %v1336, 0.3275911
        %v1401 = vmul.f32 %v1337, 0.3275911
        %v1402 = vmul.f32 %v1338, 0.3275911
        %v1403 = vmul.f32 %v1339, 0.3275911
        %v1404 = vmul.f32 %v1340, 0.3275911
        %v1405 = vmul.f32 %v1341, 0.3275911
        %v1406 = vmul.f32 %v1342, 0.3275911
        %v1407 = vmul.f32 %v1343, 0.3275911
        %v1408 = vmul.f32 %v1344, 0.3275911
        %v1409 = vmul.f32 %v1345, 0.3275911
        %v1410 = vmul.f32 %v1346, 0.3275911
        %v1411 = vmul.f32 %v1347, 0.3275911
        %v1412 = vmul.f32 %v1348, 0.3275911
        %v1413 = vmul.f32 %v1349, 0.3275911
        %v1414 = vmul.f32 %v1350, 0.3275911
        %v1415 = vmul.f32 %v1351, 0.3275911
        %v1416 = vmul.f32 %v1352, 0.3275911
        %v1417 = vmul.f32 %v1353, 0.3275911
        %v1418 = vmul.f32 %v1354, 0.3275911
        %v1419 = vmul.f32 %v1355, 0.3275911
        %v1420 = vmul.f32 %v1356, 0.3275911
        %v1421 = vmul.f32 %v1357, 0.3275911
        %v1422 = vmul.f32 %v1358, 0.3275911
        %v1423 = vmul.f32 %v1359, 0.3275911
        %v1424 = vmul.f32 %v1360, 0.3275911
        %v1425 = vmul.f32 %v1361, 0.3275911
        %v1426 = vmul.f32 %v1362, 0.3275911
        %v1427 = vmul.f32 %v1363, 0.3275911
        %v1428 = vmul.f32 %v1364, 0.3275911
        %v1429 = vmul.f32 %v1365, 0.3275911
        %v1430 = vmul.f32 %v1366, 0.3275911
        %v1431 = vmul.f32 %v1367, 0.3275911
        %v1432 = vmul.f32 %v1368, 0.3275911
        %v1433 = vmul.f32 %v1369, 0.3275911
        %v1434 = vmul.f32 %v1370, 0.3275911
        %v1435 = vmul.f32 %v1371, 0.3275911
        %v1436 = vmul.f32 %v1372, 0.3275911
        %v1437 = vmul.f32 %v1373, 0.3275911
        %v1438 = vmul.f32 %v1374, 0.3275911
        %v1439 = vmul.f32 %v1375, 0.3275911
        %v1440 = vmul.f32 %v1376, 0.3275911
        %v1441 = vmul.f32 %v1377, 0.3275911
        %v1442 = vmul.f32 %v1378, 0.3275911
        %v1443 = vadd.f32 %v1379, 1.0
        %v1444 = vadd.f32 %v1380, 1.0
        %v1445 = vadd.f32 %v1381, 1.0
        %v1446 = vadd.f32 %v1382, 1.0
        %v1447 = vadd.f32 %v1383, 1.0
        %v1448 = vadd.f32 %v1384, 1.0
        %v1449 = vadd.f32 %v1385, 1.0
        %v1450 = vadd.f32 %v1386, 1.0
        %v1451 = vadd.f32 %v1387, 1.0
        %v1452 = vadd.f32 %v1388, 1.0
        %v1453 = vadd.f32 %v1389, 1.0
        %v1454 = vadd.f32 %v1390, 1.0
        %v1455 = vadd.f32 %v1391, 1.0
        %v1456 = vadd.f32 %v1392, 1.0
        %v1457 = vadd.f32 %v1393, 1.0
        %v1458 = vadd.f32 %v1394, 1.0
        %v1459 = vadd.f32 %v1395, 1.0
        %v1460 = vadd.f32 %v1396, 1.0
        %v1461 = vadd.f32 %v1397, 1.0
        %v1462 = vadd.f32 %v1398, 1.0
        %v1463 = vadd.f32 %v1399, 1.0
        %v1464 = vadd.f32 %v1400, 1.0
        %v1465 = vadd.f32 %v1401, 1.0
        %v1466 = vadd.f32 %v1402, 1.0
        %v1467 = vadd.f32 %v1403, 1.0
        %v1468 = vadd.f32 %v1404, 1.0
        %v1469 = vadd.f32 %v1405, 1.0
        %v1470 = vadd.f32 %v1406, 1.0
        %v1471 = vadd.f32 %v1407, 1.0
        %v1472 = vadd.f32 %v1408, 1.0
        %v1473 = vadd.f32 %v1409, 1.0
        %v1474 = vadd.f32 %v1410, 1.0
        %v1475 = vadd.f32 %v1411, 1.0
        %v1476 = vadd.f32 %v1412, 1.0
        %v1477 = vadd.f32 %v1413, 1.0
        %v1478 = vadd.f32 %v1414, 1.0
        %v1479 = vadd.f32 %v1415, 1.0
        %v1480 = vadd.f32 %v1416, 1.0
        %v1481 = vadd.f32 %v1417, 1.0
        %v1482 = vadd.f32 %v1418, 1.0
        %v1483 = vadd.f32 %v1419, 1.0
        %v1484 = vadd.f32 %v1420, 1.0
        %v1485 = vadd.f32 %v1421, 1.0
        %v1486 = vadd.f32 %v1422, 1.0
        %v1487 = vadd.f32 %v1423, 1.0
        %v1488 = vadd.f32 %v1424, 1.0
        %v1489 = vadd.f32 %v1425, 1.0
        %v1490 = vadd.f32 %v1426, 1.0
        %v1491 = vadd.f32 %v1427, 1.0
        %v1492 = vadd.f32 %v1428, 1.0
        %v1493 = vadd.f32 %v1429, 1.0
        %v1494 = vadd.f32 %v1430, 1.0
        %v1495 = vadd.f32 %v1431, 1.0
        %v1496 = vadd.f32 %v1432, 1.0
        %v1497 = vadd.f32 %v1433, 1.0
        %v1498 = vadd.f32 %v1434, 1.0
        %v1499 = vadd.f32 %v1435, 1.0
        %v1500 = vadd.f32 %v1436, 1.0
        %v1501 = vadd.f32 %v1437, 1.0
        %v1502 = vadd.f32 %v1438, 1.0
        %v1503 = vadd.f32 %v1439, 1.0
        %v1504 = vadd.f32 %v1440, 1.0
        %v1505 = vadd.f32 %v1441, 1.0
        %v1506 = vadd.f32 %v1442, 1.0
        %v1507 = vrcp.pop %v1443
        %v1508 = vmul.f32 1.0, %v1507
        %v1509 = vrcp.pop %v1444
        %v1510 = vmul.f32 1.0, %v1509
        %v1511 = vrcp.pop %v1445
        %v1512 = vmul.f32 1.0, %v1511
        %v1513 = vrcp.pop %v1446
        %v1514 = vmul.f32 1.0, %v1513
        %v1515 = vrcp.pop %v1447
        %v1516 = vmul.f32 1.0, %v1515
        %v1517 = vrcp.pop %v1448
        %v1518 = vmul.f32 1.0, %v1517
        %v1519 = vrcp.pop %v1449
        %v1520 = vmul.f32 1.0, %v1519
        %v1521 = vrcp.pop %v1450
        %v1522 = vmul.f32 1.0, %v1521
        %v1523 = vrcp.pop %v1451
        %v1524 = vmul.f32 1.0, %v1523
        %v1525 = vrcp.pop %v1452
        %v1526 = vmul.f32 1.0, %v1525
        %v1527 = vrcp.pop %v1453
        %v1528 = vmul.f32 1.0, %v1527
        %v1529 = vrcp.pop %v1454
        %v1530 = vmul.f32 1.0, %v1529
        %v1531 = vrcp.pop %v1455
        %v1532 = vmul.f32 1.0, %v1531
        %v1533 = vrcp.pop %v1456
        %v1534 = vmul.f32 1.0, %v1533
        %v1535 = vrcp.pop %v1457
        %v1536 = vmul.f32 1.0, %v1535
        %v1537 = vrcp.pop %v1458
        %v1538 = vmul.f32 1.0, %v1537
        %v1539 = vrcp.pop %v1459
        %v1540 = vmul.f32 1.0, %v1539
        %v1541 = vrcp.pop %v1460
        %v1542 = vmul.f32 1.0, %v1541
        %v1543 = vrcp.pop %v1461
        %v1544 = vmul.f32 1.0, %v1543
        %v1545 = vrcp.pop %v1462
        %v1546 = vmul.f32 1.0, %v1545
        %v1547 = vrcp.pop %v1463
        %v1548 = vmul.f32 1.0, %v1547
        %v1549 = vrcp.pop %v1464
        %v1550 = vmul.f32 1.0, %v1549
        %v1551 = vrcp.pop %v1465
        %v1552 = vmul.f32 1.0, %v1551
        %v1553 = vrcp.pop %v1466
        %v1554 = vmul.f32 1.0, %v1553
        %v1555 = vrcp.pop %v1467
        %v1556 = vmul.f32 1.0, %v1555
        %v1557 = vrcp.pop %v1468
        %v1558 = vmul.f32 1.0, %v1557
        %v1559 = vrcp.pop %v1469
        %v1560 = vmul.f32 1.0, %v1559
        %v1561 = vrcp.pop %v1470
        %v1562 = vmul.f32 1.0, %v1561
        %v1563 = vrcp.pop %v1471
        %v1564 = vmul.f32 1.0, %v1563
        %v1565 = vrcp.pop %v1472
        %v1566 = vmul.f32 1.0, %v1565
        %v1567 = vrcp.pop %v1473
        %v1568 = vmul.f32 1.0, %v1567
        %v1569 = vrcp.pop %v1474
        %v1570 = vmul.f32 1.0, %v1569
        %v1571 = vrcp.pop %v1475
        %v1572 = vmul.f32 1.0, %v1571
        %v1573 = vrcp.pop %v1476
        %v1574 = vmul.f32 1.0, %v1573
        %v1575 = vrcp.pop %v1477
        %v1576 = vmul.f32 1.0, %v1575
        %v1577 = vrcp.pop %v1478
        %v1578 = vmul.f32 1.0, %v1577
        %v1579 = vrcp.pop %v1479
        %v1580 = vmul.f32 1.0, %v1579
        %v1581 = vrcp.pop %v1480
        %v1582 = vmul.f32 1.0, %v1581
        %v1583 = vrcp.pop %v1481
        %v1584 = vmul.f32 1.0, %v1583
        %v1585 = vrcp.pop %v1482
        %v1586 = vmul.f32 1.0, %v1585
        %v1587 = vrcp.pop %v1483
        %v1588 = vmul.f32 1.0, %v1587
        %v1589 = vrcp.pop %v1484
        %v1590 = vmul.f32 1.0, %v1589
        %v1591 = vrcp.pop %v1485
        %v1592 = vmul.f32 1.0, %v1591
        %v1593 = vrcp.pop %v1486
        %v1594 = vmul.f32 1.0, %v1593
        %v1595 = vrcp.pop %v1487
        %v1596 = vmul.f32 1.0, %v1595
        %v1597 = vrcp.pop %v1488
        %v1598 = vmul.f32 1.0, %v1597
        %v1599 = vrcp.pop %v1489
        %v1600 = vmul.f32 1.0, %v1599
        %v1601 = vrcp.pop %v1490
        %v1602 = vmul.f32 1.0, %v1601
        %v1603 = vrcp.pop %v1491
        %v1604 = vmul.f32 1.0, %v1603
        %v1605 = vrcp.pop %v1492
        %v1606 = vmul.f32 1.0, %v1605
        %v1607 = vrcp.pop %v1493
        %v1608 = vmul.f32 1.0, %v1607
        %v1609 = vrcp.pop %v1494
        %v1610 = vmul.f32 1.0, %v1609
        %v1611 = vrcp.pop %v1495
        %v1612 = vmul.f32 1.0, %v1611
        %v1613 = vrcp.pop %v1496
        %v1614 = vmul.f32 1.0, %v1613
        %v1615 = vrcp.pop %v1497
        %v1616 = vmul.f32 1.0, %v1615
        %v1617 = vrcp.pop %v1498
        %v1618 = vmul.f32 1.0, %v1617
        %v1619 = vrcp.pop %v1499
        %v1620 = vmul.f32 1.0, %v1619
        %v1621 = vrcp.pop %v1500
        %v1622 = vmul.f32 1.0, %v1621
        %v1623 = vrcp.pop %v1501
        %v1624 = vmul.f32 1.0, %v1623
        %v1625 = vrcp.pop %v1502
        %v1626 = vmul.f32 1.0, %v1625
        %v1627 = vrcp.pop %v1503
        %v1628 = vmul.f32 1.0, %v1627
        %v1629 = vrcp.pop %v1504
        %v1630 = vmul.f32 1.0, %v1629
        %v1631 = vrcp.pop %v1505
        %v1632 = vmul.f32 1.0, %v1631
        %v1633 = vrcp.pop %v1506
        %v1634 = vmul.f32 1.0, %v1633
        %v1635 = vmul.f32 %v1508, 1.0614054
        %v1636 = vmul.f32 %v1510, 1.0614054
        %v1637 = vmul.f32 %v1512, 1.0614054
        %v1638 = vmul.f32 %v1514, 1.0614054
        %v1639 = vmul.f32 %v1516, 1.0614054
        %v1640 = vmul.f32 %v1518, 1.0614054
        %v1641 = vmul.f32 %v1520, 1.0614054
        %v1642 = vmul.f32 %v1522, 1.0614054
        %v1643 = vmul.f32 %v1524, 1.0614054
        %v1644 = vmul.f32 %v1526, 1.0614054
        %v1645 = vmul.f32 %v1528, 1.0614054
        %v1646 = vmul.f32 %v1530, 1.0614054
        %v1647 = vmul.f32 %v1532, 1.0614054
        %v1648 = vmul.f32 %v1534, 1.0614054
        %v1649 = vmul.f32 %v1536, 1.0614054
        %v1650 = vmul.f32 %v1538, 1.0614054
        %v1651 = vmul.f32 %v1540, 1.0614054
        %v1652 = vmul.f32 %v1542, 1.0614054
        %v1653 = vmul.f32 %v1544, 1.0614054
        %v1654 = vmul.f32 %v1546, 1.0614054
        %v1655 = vmul.f32 %v1548, 1.0614054
        %v1656 = vmul.f32 %v1550, 1.0614054
        %v1657 = vmul.f32 %v1552, 1.0614054
        %v1658 = vmul.f32 %v1554, 1.0614054
        %v1659 = vmul.f32 %v1556, 1.0614054
        %v1660 = vmul.f32 %v1558, 1.0614054
        %v1661 = vmul.f32 %v1560, 1.0614054
        %v1662 = vmul.f32 %v1562, 1.0614054
        %v1663 = vmul.f32 %v1564, 1.0614054
        %v1664 = vmul.f32 %v1566, 1.0614054
        %v1665 = vmul.f32 %v1568, 1.0614054
        %v1666 = vmul.f32 %v1570, 1.0614054
        %v1667 = vmul.f32 %v1572, 1.0614054
        %v1668 = vmul.f32 %v1574, 1.0614054
        %v1669 = vmul.f32 %v1576, 1.0614054
        %v1670 = vmul.f32 %v1578, 1.0614054
        %v1671 = vmul.f32 %v1580, 1.0614054
        %v1672 = vmul.f32 %v1582, 1.0614054
        %v1673 = vmul.f32 %v1584, 1.0614054
        %v1674 = vmul.f32 %v1586, 1.0614054
        %v1675 = vmul.f32 %v1588, 1.0614054
        %v1676 = vmul.f32 %v1590, 1.0614054
        %v1677 = vmul.f32 %v1592, 1.0614054
        %v1678 = vmul.f32 %v1594, 1.0614054
        %v1679 = vmul.f32 %v1596, 1.0614054
        %v1680 = vmul.f32 %v1598, 1.0614054
        %v1681 = vmul.f32 %v1600, 1.0614054
        %v1682 = vmul.f32 %v1602, 1.0614054
        %v1683 = vmul.f32 %v1604, 1.0614054
        %v1684 = vmul.f32 %v1606, 1.0614054
        %v1685 = vmul.f32 %v1608, 1.0614054
        %v1686 = vmul.f32 %v1610, 1.0614054
        %v1687 = vmul.f32 %v1612, 1.0614054
        %v1688 = vmul.f32 %v1614, 1.0614054
        %v1689 = vmul.f32 %v1616, 1.0614054
        %v1690 = vmul.f32 %v1618, 1.0614054
        %v1691 = vmul.f32 %v1620, 1.0614054
        %v1692 = vmul.f32 %v1622, 1.0614054
        %v1693 = vmul.f32 %v1624, 1.0614054
        %v1694 = vmul.f32 %v1626, 1.0614054
        %v1695 = vmul.f32 %v1628, 1.0614054
        %v1696 = vmul.f32 %v1630, 1.0614054
        %v1697 = vmul.f32 %v1632, 1.0614054
        %v1698 = vmul.f32 %v1634, 1.0614054
        %v1699 = vadd.f32 %v1635, -1.4531521
        %v1700 = vadd.f32 %v1636, -1.4531521
        %v1701 = vadd.f32 %v1637, -1.4531521
        %v1702 = vadd.f32 %v1638, -1.4531521
        %v1703 = vadd.f32 %v1639, -1.4531521
        %v1704 = vadd.f32 %v1640, -1.4531521
        %v1705 = vadd.f32 %v1641, -1.4531521
        %v1706 = vadd.f32 %v1642, -1.4531521
        %v1707 = vadd.f32 %v1643, -1.4531521
        %v1708 = vadd.f32 %v1644, -1.4531521
        %v1709 = vadd.f32 %v1645, -1.4531521
        %v1710 = vadd.f32 %v1646, -1.4531521
        %v1711 = vadd.f32 %v1647, -1.4531521
        %v1712 = vadd.f32 %v1648, -1.4531521
        %v1713 = vadd.f32 %v1649, -1.4531521
        %v1714 = vadd.f32 %v1650, -1.4531521
        %v1715 = vadd.f32 %v1651, -1.4531521
        %v1716 = vadd.f32 %v1652, -1.4531521
        %v1717 = vadd.f32 %v1653, -1.4531521
        %v1718 = vadd.f32 %v1654, -1.4531521
        %v1719 = vadd.f32 %v1655, -1.4531521
        %v1720 = vadd.f32 %v1656, -1.4531521
        %v1721 = vadd.f32 %v1657, -1.4531521
        %v1722 = vadd.f32 %v1658, -1.4531521
        %v1723 = vadd.f32 %v1659, -1.4531521
        %v1724 = vadd.f32 %v1660, -1.4531521
        %v1725 = vadd.f32 %v1661, -1.4531521
        %v1726 = vadd.f32 %v1662, -1.4531521
        %v1727 = vadd.f32 %v1663, -1.4531521
        %v1728 = vadd.f32 %v1664, -1.4531521
        %v1729 = vadd.f32 %v1665, -1.4531521
        %v1730 = vadd.f32 %v1666, -1.4531521
        %v1731 = vadd.f32 %v1667, -1.4531521
        %v1732 = vadd.f32 %v1668, -1.4531521
        %v1733 = vadd.f32 %v1669, -1.4531521
        %v1734 = vadd.f32 %v1670, -1.4531521
        %v1735 = vadd.f32 %v1671, -1.4531521
        %v1736 = vadd.f32 %v1672, -1.4531521
        %v1737 = vadd.f32 %v1673, -1.4531521
        %v1738 = vadd.f32 %v1674, -1.4531521
        %v1739 = vadd.f32 %v1675, -1.4531521
        %v1740 = vadd.f32 %v1676, -1.4531521
        %v1741 = vadd.f32 %v1677, -1.4531521
        %v1742 = vadd.f32 %v1678, -1.4531521
        %v1743 = vadd.f32 %v1679, -1.4531521
        %v1744 = vadd.f32 %v1680, -1.4531521
        %v1745 = vadd.f32 %v1681, -1.4531521
        %v1746 = vadd.f32 %v1682, -1.4531521
        %v1747 = vadd.f32 %v1683, -1.4531521
        %v1748 = vadd.f32 %v1684, -1.4531521
        %v1749 = vadd.f32 %v1685, -1.4531521
        %v1750 = vadd.f32 %v1686, -1.4531521
        %v1751 = vadd.f32 %v1687, -1.4531521
        %v1752 = vadd.f32 %v1688, -1.4531521
        %v1753 = vadd.f32 %v1689, -1.4531521
        %v1754 = vadd.f32 %v1690, -1.4531521
        %v1755 = vadd.f32 %v1691, -1.4531521
        %v1756 = vadd.f32 %v1692, -1.4531521
        %v1757 = vadd.f32 %v1693, -1.4531521
        %v1758 = vadd.f32 %v1694, -1.4531521
        %v1759 = vadd.f32 %v1695, -1.4531521
        %v1760 = vadd.f32 %v1696, -1.4531521
        %v1761 = vadd.f32 %v1697, -1.4531521
        %v1762 = vadd.f32 %v1698, -1.4531521
        %v1763 = vmul.f32 %v1508, %v1699
        %v1764 = vmul.f32 %v1510, %v1700
        %v1765 = vmul.f32 %v1512, %v1701
        %v1766 = vmul.f32 %v1514, %v1702
        %v1767 = vmul.f32 %v1516, %v1703
        %v1768 = vmul.f32 %v1518, %v1704
        %v1769 = vmul.f32 %v1520, %v1705
        %v1770 = vmul.f32 %v1522, %v1706
        %v1771 = vmul.f32 %v1524, %v1707
        %v1772 = vmul.f32 %v1526, %v1708
        %v1773 = vmul.f32 %v1528, %v1709
        %v1774 = vmul.f32 %v1530, %v1710
        %v1775 = vmul.f32 %v1532, %v1711
        %v1776 = vmul.f32 %v1534, %v1712
        %v1777 = vmul.f32 %v1536, %v1713
        %v1778 = vmul.f32 %v1538, %v1714
        %v1779 = vmul.f32 %v1540, %v1715
        %v1780 = vmul.f32 %v1542, %v1716
        %v1781 = vmul.f32 %v1544, %v1717
        %v1782 = vmul.f32 %v1546, %v1718
        %v1783 = vmul.f32 %v1548, %v1719
        %v1784 = vmul.f32 %v1550, %v1720
        %v1785 = vmul.f32 %v1552, %v1721
        %v1786 = vmul.f32 %v1554, %v1722
        %v1787 = vmul.f32 %v1556, %v1723
        %v1788 = vmul.f32 %v1558, %v1724
        %v1789 = vmul.f32 %v1560, %v1725
        %v1790 = vmul.f32 %v1562, %v1726
        %v1791 = vmul.f32 %v1564, %v1727
        %v1792 = vmul.f32 %v1566, %v1728
        %v1793 = vmul.f32 %v1568, %v1729
        %v1794 = vmul.f32 %v1570, %v1730
        %v1795 = vmul.f32 %v1572, %v1731
        %v1796 = vmul.f32 %v1574, %v1732
        %v1797 = vmul.f32 %v1576, %v1733
        %v1798 = vmul.f32 %v1578, %v1734
        %v1799 = vmul.f32 %v1580, %v1735
        %v1800 = vmul.f32 %v1582, %v1736
        %v1801 = vmul.f32 %v1584, %v1737
        %v1802 = vmul.f32 %v1586, %v1738
        %v1803 = vmul.f32 %v1588, %v1739
        %v1804 = vmul.f32 %v1590, %v1740
        %v1805 = vmul.f32 %v1592, %v1741
        %v1806 = vmul.f32 %v1594, %v1742
        %v1807 = vmul.f32 %v1596, %v1743
        %v1808 = vmul.f32 %v1598, %v1744
        %v1809 = vmul.f32 %v1600, %v1745
        %v1810 = vmul.f32 %v1602, %v1746
        %v1811 = vmul.f32 %v1604, %v1747
        %v1812 = vmul.f32 %v1606, %v1748
        %v1813 = vmul.f32 %v1608, %v1749
        %v1814 = vmul.f32 %v1610, %v1750
        %v1815 = vmul.f32 %v1612, %v1751
        %v1816 = vmul.f32 %v1614, %v1752
        %v1817 = vmul.f32 %v1616, %v1753
        %v1818 = vmul.f32 %v1618, %v1754
        %v1819 = vmul.f32 %v1620, %v1755
        %v1820 = vmul.f32 %v1622, %v1756
        %v1821 = vmul.f32 %v1624, %v1757
        %v1822 = vmul.f32 %v1626, %v1758
        %v1823 = vmul.f32 %v1628, %v1759
        %v1824 = vmul.f32 %v1630, %v1760
        %v1825 = vmul.f32 %v1632, %v1761
        %v1826 = vmul.f32 %v1634, %v1762
        %v1827 = vadd.f32 %v1763, 1.4214138
        %v1828 = vadd.f32 %v1764, 1.4214138
        %v1829 = vadd.f32 %v1765, 1.4214138
        %v1830 = vadd.f32 %v1766, 1.4214138
        %v1831 = vadd.f32 %v1767, 1.4214138
        %v1832 = vadd.f32 %v1768, 1.4214138
        %v1833 = vadd.f32 %v1769, 1.4214138
        %v1834 = vadd.f32 %v1770, 1.4214138
        %v1835 = vadd.f32 %v1771, 1.4214138
        %v1836 = vadd.f32 %v1772, 1.4214138
        %v1837 = vadd.f32 %v1773, 1.4214138
        %v1838 = vadd.f32 %v1774, 1.4214138
        %v1839 = vadd.f32 %v1775, 1.4214138
        %v1840 = vadd.f32 %v1776, 1.4214138
        %v1841 = vadd.f32 %v1777, 1.4214138
        %v1842 = vadd.f32 %v1778, 1.4214138
        %v1843 = vadd.f32 %v1779, 1.4214138
        %v1844 = vadd.f32 %v1780, 1.4214138
        %v1845 = vadd.f32 %v1781, 1.4214138
        %v1846 = vadd.f32 %v1782, 1.4214138
        %v1847 = vadd.f32 %v1783, 1.4214138
        %v1848 = vadd.f32 %v1784, 1.4214138
        %v1849 = vadd.f32 %v1785, 1.4214138
        %v1850 = vadd.f32 %v1786, 1.4214138
        %v1851 = vadd.f32 %v1787, 1.4214138
        %v1852 = vadd.f32 %v1788, 1.4214138
        %v1853 = vadd.f32 %v1789, 1.4214138
        %v1854 = vadd.f32 %v1790, 1.4214138
        %v1855 = vadd.f32 %v1791, 1.4214138
        %v1856 = vadd.f32 %v1792, 1.4214138
        %v1857 = vadd.f32 %v1793, 1.4214138
        %v1858 = vadd.f32 %v1794, 1.4214138
        %v1859 = vadd.f32 %v1795, 1.4214138
        %v1860 = vadd.f32 %v1796, 1.4214138
        %v1861 = vadd.f32 %v1797, 1.4214138
        %v1862 = vadd.f32 %v1798, 1.4214138
        %v1863 = vadd.f32 %v1799, 1.4214138
        %v1864 = vadd.f32 %v1800, 1.4214138
        %v1865 = vadd.f32 %v1801, 1.4214138
        %v1866 = vadd.f32 %v1802, 1.4214138
        %v1867 = vadd.f32 %v1803, 1.4214138
        %v1868 = vadd.f32 %v1804, 1.4214138
        %v1869 = vadd.f32 %v1805, 1.4214138
        %v1870 = vadd.f32 %v1806, 1.4214138
        %v1871 = vadd.f32 %v1807, 1.4214138
        %v1872 = vadd.f32 %v1808, 1.4214138
        %v1873 = vadd.f32 %v1809, 1.4214138
        %v1874 = vadd.f32 %v1810, 1.4214138
        %v1875 = vadd.f32 %v1811, 1.4214138
        %v1876 = vadd.f32 %v1812, 1.4214138
        %v1877 = vadd.f32 %v1813, 1.4214138
        %v1878 = vadd.f32 %v1814, 1.4214138
        %v1879 = vadd.f32 %v1815, 1.4214138
        %v1880 = vadd.f32 %v1816, 1.4214138
        %v1881 = vadd.f32 %v1817, 1.4214138
        %v1882 = vadd.f32 %v1818, 1.4214138
        %v1883 = vadd.f32 %v1819, 1.4214138
        %v1884 = vadd.f32 %v1820, 1.4214138
        %v1885 = vadd.f32 %v1821, 1.4214138
        %v1886 = vadd.f32 %v1822, 1.4214138
        %v1887 = vadd.f32 %v1823, 1.4214138
        %v1888 = vadd.f32 %v1824, 1.4214138
        %v1889 = vadd.f32 %v1825, 1.4214138
        %v1890 = vadd.f32 %v1826, 1.4214138
        %v1891 = vmul.f32 %v1508, %v1827
        %v1892 = vmul.f32 %v1510, %v1828
        %v1893 = vmul.f32 %v1512, %v1829
        %v1894 = vmul.f32 %v1514, %v1830
        %v1895 = vmul.f32 %v1516, %v1831
        %v1896 = vmul.f32 %v1518, %v1832
        %v1897 = vmul.f32 %v1520, %v1833
        %v1898 = vmul.f32 %v1522, %v1834
        %v1899 = vmul.f32 %v1524, %v1835
        %v1900 = vmul.f32 %v1526, %v1836
        %v1901 = vmul.f32 %v1528, %v1837
        %v1902 = vmul.f32 %v1530, %v1838
        %v1903 = vmul.f32 %v1532, %v1839
        %v1904 = vmul.f32 %v1534, %v1840
        %v1905 = vmul.f32 %v1536, %v1841
        %v1906 = vmul.f32 %v1538, %v1842
        %v1907 = vmul.f32 %v1540, %v1843
        %v1908 = vmul.f32 %v1542, %v1844
        %v1909 = vmul.f32 %v1544, %v1845
        %v1910 = vmul.f32 %v1546, %v1846
        %v1911 = vmul.f32 %v1548, %v1847
        %v1912 = vmul.f32 %v1550, %v1848
        %v1913 = vmul.f32 %v1552, %v1849
        %v1914 = vmul.f32 %v1554, %v1850
        %v1915 = vmul.f32 %v1556, %v1851
        %v1916 = vmul.f32 %v1558, %v1852
        %v1917 = vmul.f32 %v1560, %v1853
        %v1918 = vmul.f32 %v1562, %v1854
        %v1919 = vmul.f32 %v1564, %v1855
        %v1920 = vmul.f32 %v1566, %v1856
        %v1921 = vmul.f32 %v1568, %v1857
        %v1922 = vmul.f32 %v1570, %v1858
        %v1923 = vmul.f32 %v1572, %v1859
        %v1924 = vmul.f32 %v1574, %v1860
        %v1925 = vmul.f32 %v1576, %v1861
        %v1926 = vmul.f32 %v1578, %v1862
        %v1927 = vmul.f32 %v1580, %v1863
        %v1928 = vmul.f32 %v1582, %v1864
        %v1929 = vmul.f32 %v1584, %v1865
        %v1930 = vmul.f32 %v1586, %v1866
        %v1931 = vmul.f32 %v1588, %v1867
        %v1932 = vmul.f32 %v1590, %v1868
        %v1933 = vmul.f32 %v1592, %v1869
        %v1934 = vmul.f32 %v1594, %v1870
        %v1935 = vmul.f32 %v1596, %v1871
        %v1936 = vmul.f32 %v1598, %v1872
        %v1937 = vmul.f32 %v1600, %v1873
        %v1938 = vmul.f32 %v1602, %v1874
        %v1939 = vmul.f32 %v1604, %v1875
        %v1940 = vmul.f32 %v1606, %v1876
        %v1941 = vmul.f32 %v1608, %v1877
        %v1942 = vmul.f32 %v1610, %v1878
        %v1943 = vmul.f32 %v1612, %v1879
        %v1944 = vmul.f32 %v1614, %v1880
        %v1945 = vmul.f32 %v1616, %v1881
        %v1946 = vmul.f32 %v1618, %v1882
        %v1947 = vmul.f32 %v1620, %v1883
        %v1948 = vmul.f32 %v1622, %v1884
        %v1949 = vmul.f32 %v1624, %v1885
        %v1950 = vmul.f32 %v1626, %v1886
        %v1951 = vmul.f32 %v1628, %v1887
        %v1952 = vmul.f32 %v1630, %v1888
        %v1953 = vmul.f32 %v1632, %v1889
        %v1954 = vmul.f32 %v1634, %v1890
        %v1955 = vadd.f32 %v1891, -0.28449672
        %v1956 = vadd.f32 %v1892, -0.28449672
        %v1957 = vadd.f32 %v1893, -0.28449672
        %v1958 = vadd.f32 %v1894, -0.28449672
        %v1959 = vadd.f32 %v1895, -0.28449672
        %v1960 = vadd.f32 %v1896, -0.28449672
        %v1961 = vadd.f32 %v1897, -0.28449672
        %v1962 = vadd.f32 %v1898, -0.28449672
        %v1963 = vadd.f32 %v1899, -0.28449672
        %v1964 = vadd.f32 %v1900, -0.28449672
        %v1965 = vadd.f32 %v1901, -0.28449672
        %v1966 = vadd.f32 %v1902, -0.28449672
        %v1967 = vadd.f32 %v1903, -0.28449672
        %v1968 = vadd.f32 %v1904, -0.28449672
        %v1969 = vadd.f32 %v1905, -0.28449672
        %v1970 = vadd.f32 %v1906, -0.28449672
        %v1971 = vadd.f32 %v1907, -0.28449672
        %v1972 = vadd.f32 %v1908, -0.28449672
        %v1973 = vadd.f32 %v1909, -0.28449672
        %v1974 = vadd.f32 %v1910, -0.28449672
        %v1975 = vadd.f32 %v1911, -0.28449672
        %v1976 = vadd.f32 %v1912, -0.28449672
        %v1977 = vadd.f32 %v1913, -0.28449672
        %v1978 = vadd.f32 %v1914, -0.28449672
        %v1979 = vadd.f32 %v1915, -0.28449672
        %v1980 = vadd.f32 %v1916, -0.28449672
        %v1981 = vadd.f32 %v1917, -0.28449672
        %v1982 = vadd.f32 %v1918, -0.28449672
        %v1983 = vadd.f32 %v1919, -0.28449672
        %v1984 = vadd.f32 %v1920, -0.28449672
        %v1985 = vadd.f32 %v1921, -0.28449672
        %v1986 = vadd.f32 %v1922, -0.28449672
        %v1987 = vadd.f32 %v1923, -0.28449672
        %v1988 = vadd.f32 %v1924, -0.28449672
        %v1989 = vadd.f32 %v1925, -0.28449672
        %v1990 = vadd.f32 %v1926, -0.28449672
        %v1991 = vadd.f32 %v1927, -0.28449672
        %v1992 = vadd.f32 %v1928, -0.28449672
        %v1993 = vadd.f32 %v1929, -0.28449672
        %v1994 = vadd.f32 %v1930, -0.28449672
        %v1995 = vadd.f32 %v1931, -0.28449672
        %v1996 = vadd.f32 %v1932, -0.28449672
        %v1997 = vadd.f32 %v1933, -0.28449672
        %v1998 = vadd.f32 %v1934, -0.28449672
        %v1999 = vadd.f32 %v1935, -0.28449672
        %v2000 = vadd.f32 %v1936, -0.28449672
        %v2001 = vadd.f32 %v1937, -0.28449672
        %v2002 = vadd.f32 %v1938, -0.28449672
        %v2003 = vadd.f32 %v1939, -0.28449672
        %v2004 = vadd.f32 %v1940, -0.28449672
        %v2005 = vadd.f32 %v1941, -0.28449672
        %v2006 = vadd.f32 %v1942, -0.28449672
        %v2007 = vadd.f32 %v1943, -0.28449672
        %v2008 = vadd.f32 %v1944, -0.28449672
        %v2009 = vadd.f32 %v1945, -0.28449672
        %v2010 = vadd.f32 %v1946, -0.28449672
        %v2011 = vadd.f32 %v1947, -0.28449672
        %v2012 = vadd.f32 %v1948, -0.28449672
        %v2013 = vadd.f32 %v1949, -0.28449672
        %v2014 = vadd.f32 %v1950, -0.28449672
        %v2015 = vadd.f32 %v1951, -0.28449672
        %v2016 = vadd.f32 %v1952, -0.28449672
        %v2017 = vadd.f32 %v1953, -0.28449672
        %v2018 = vadd.f32 %v1954, -0.28449672
        %v2019 = vmul.f32 %v1508, %v1955
        %v2020 = vmul.f32 %v1510, %v1956
        %v2021 = vmul.f32 %v1512, %v1957
        %v2022 = vmul.f32 %v1514, %v1958
        %v2023 = vmul.f32 %v1516, %v1959
        %v2024 = vmul.f32 %v1518, %v1960
        %v2025 = vmul.f32 %v1520, %v1961
        %v2026 = vmul.f32 %v1522, %v1962
        %v2027 = vmul.f32 %v1524, %v1963
        %v2028 = vmul.f32 %v1526, %v1964
        %v2029 = vmul.f32 %v1528, %v1965
        %v2030 = vmul.f32 %v1530, %v1966
        %v2031 = vmul.f32 %v1532, %v1967
        %v2032 = vmul.f32 %v1534, %v1968
        %v2033 = vmul.f32 %v1536, %v1969
        %v2034 = vmul.f32 %v1538, %v1970
        %v2035 = vmul.f32 %v1540, %v1971
        %v2036 = vmul.f32 %v1542, %v1972
        %v2037 = vmul.f32 %v1544, %v1973
        %v2038 = vmul.f32 %v1546, %v1974
        %v2039 = vmul.f32 %v1548, %v1975
        %v2040 = vmul.f32 %v1550, %v1976
        %v2041 = vmul.f32 %v1552, %v1977
        %v2042 = vmul.f32 %v1554, %v1978
        %v2043 = vmul.f32 %v1556, %v1979
        %v2044 = vmul.f32 %v1558, %v1980
        %v2045 = vmul.f32 %v1560, %v1981
        %v2046 = vmul.f32 %v1562, %v1982
        %v2047 = vmul.f32 %v1564, %v1983
        %v2048 = vmul.f32 %v1566, %v1984
        %v2049 = vmul.f32 %v1568, %v1985
        %v2050 = vmul.f32 %v1570, %v1986
        %v2051 = vmul.f32 %v1572, %v1987
        %v2052 = vmul.f32 %v1574, %v1988
        %v2053 = vmul.f32 %v1576, %v1989
        %v2054 = vmul.f32 %v1578, %v1990
        %v2055 = vmul.f32 %v1580, %v1991
        %v2056 = vmul.f32 %v1582, %v1992
        %v2057 = vmul.f32 %v1584, %v1993
        %v2058 = vmul.f32 %v1586, %v1994
        %v2059 = vmul.f32 %v1588, %v1995
        %v2060 = vmul.f32 %v1590, %v1996
        %v2061 = vmul.f32 %v1592, %v1997
        %v2062 = vmul.f32 %v1594, %v1998
        %v2063 = vmul.f32 %v1596, %v1999
        %v2064 = vmul.f32 %v1598, %v2000
        %v2065 = vmul.f32 %v1600, %v2001
        %v2066 = vmul.f32 %v1602, %v2002
        %v2067 = vmul.f32 %v1604, %v2003
        %v2068 = vmul.f32 %v1606, %v2004
        %v2069 = vmul.f32 %v1608, %v2005
        %v2070 = vmul.f32 %v1610, %v2006
        %v2071 = vmul.f32 %v1612, %v2007
        %v2072 = vmul.f32 %v1614, %v2008
        %v2073 = vmul.f32 %v1616, %v2009
        %v2074 = vmul.f32 %v1618, %v2010
        %v2075 = vmul.f32 %v1620, %v2011
        %v2076 = vmul.f32 %v1622, %v2012
        %v2077 = vmul.f32 %v1624, %v2013
        %v2078 = vmul.f32 %v1626, %v2014
        %v2079 = vmul.f32 %v1628, %v2015
        %v2080 = vmul.f32 %v1630, %v2016
        %v2081 = vmul.f32 %v1632, %v2017
        %v2082 = vmul.f32 %v1634, %v2018
        %v2083 = vadd.f32 %v2019, 0.2548296
        %v2084 = vadd.f32 %v2020, 0.2548296
        %v2085 = vadd.f32 %v2021, 0.2548296
        %v2086 = vadd.f32 %v2022, 0.2548296
        %v2087 = vadd.f32 %v2023, 0.2548296
        %v2088 = vadd.f32 %v2024, 0.2548296
        %v2089 = vadd.f32 %v2025, 0.2548296
        %v2090 = vadd.f32 %v2026, 0.2548296
        %v2091 = vadd.f32 %v2027, 0.2548296
        %v2092 = vadd.f32 %v2028, 0.2548296
        %v2093 = vadd.f32 %v2029, 0.2548296
        %v2094 = vadd.f32 %v2030, 0.2548296
        %v2095 = vadd.f32 %v2031, 0.2548296
        %v2096 = vadd.f32 %v2032, 0.2548296
        %v2097 = vadd.f32 %v2033, 0.2548296
        %v2098 = vadd.f32 %v2034, 0.2548296
        %v2099 = vadd.f32 %v2035, 0.2548296
        %v2100 = vadd.f32 %v2036, 0.2548296
        %v2101 = vadd.f32 %v2037, 0.2548296
        %v2102 = vadd.f32 %v2038, 0.2548296
        %v2103 = vadd.f32 %v2039, 0.2548296
        %v2104 = vadd.f32 %v2040, 0.2548296
        %v2105 = vadd.f32 %v2041, 0.2548296
        %v2106 = vadd.f32 %v2042, 0.2548296
        %v2107 = vadd.f32 %v2043, 0.2548296
        %v2108 = vadd.f32 %v2044, 0.2548296
        %v2109 = vadd.f32 %v2045, 0.2548296
        %v2110 = vadd.f32 %v2046, 0.2548296
        %v2111 = vadd.f32 %v2047, 0.2548296
        %v2112 = vadd.f32 %v2048, 0.2548296
        %v2113 = vadd.f32 %v2049, 0.2548296
        %v2114 = vadd.f32 %v2050, 0.2548296
        %v2115 = vadd.f32 %v2051, 0.2548296
        %v2116 = vadd.f32 %v2052, 0.2548296
        %v2117 = vadd.f32 %v2053, 0.2548296
        %v2118 = vadd.f32 %v2054, 0.2548296
        %v2119 = vadd.f32 %v2055, 0.2548296
        %v2120 = vadd.f32 %v2056, 0.2548296
        %v2121 = vadd.f32 %v2057, 0.2548296
        %v2122 = vadd.f32 %v2058, 0.2548296
        %v2123 = vadd.f32 %v2059, 0.2548296
        %v2124 = vadd.f32 %v2060, 0.2548296
        %v2125 = vadd.f32 %v2061, 0.2548296
        %v2126 = vadd.f32 %v2062, 0.2548296
        %v2127 = vadd.f32 %v2063, 0.2548296
        %v2128 = vadd.f32 %v2064, 0.2548296
        %v2129 = vadd.f32 %v2065, 0.2548296
        %v2130 = vadd.f32 %v2066, 0.2548296
        %v2131 = vadd.f32 %v2067, 0.2548296
        %v2132 = vadd.f32 %v2068, 0.2548296
        %v2133 = vadd.f32 %v2069, 0.2548296
        %v2134 = vadd.f32 %v2070, 0.2548296
        %v2135 = vadd.f32 %v2071, 0.2548296
        %v2136 = vadd.f32 %v2072, 0.2548296
        %v2137 = vadd.f32 %v2073, 0.2548296
        %v2138 = vadd.f32 %v2074, 0.2548296
        %v2139 = vadd.f32 %v2075, 0.2548296
        %v2140 = vadd.f32 %v2076, 0.2548296
        %v2141 = vadd.f32 %v2077, 0.2548296
        %v2142 = vadd.f32 %v2078, 0.2548296
        %v2143 = vadd.f32 %v2079, 0.2548296
        %v2144 = vadd.f32 %v2080, 0.2548296
        %v2145 = vadd.f32 %v2081, 0.2548296
        %v2146 = vadd.f32 %v2082, 0.2548296
        %v2147 = vmul.f32 %v1508, %v2083
        %v2148 = vmul.f32 %v1510, %v2084
        %v2149 = vmul.f32 %v1512, %v2085
        %v2150 = vmul.f32 %v1514, %v2086
        %v2151 = vmul.f32 %v1516, %v2087
        %v2152 = vmul.f32 %v1518, %v2088
        %v2153 = vmul.f32 %v1520, %v2089
        %v2154 = vmul.f32 %v1522, %v2090
        %v2155 = vmul.f32 %v1524, %v2091
        %v2156 = vmul.f32 %v1526, %v2092
        %v2157 = vmul.f32 %v1528, %v2093
        %v2158 = vmul.f32 %v1530, %v2094
        %v2159 = vmul.f32 %v1532, %v2095
        %v2160 = vmul.f32 %v1534, %v2096
        %v2161 = vmul.f32 %v1536, %v2097
        %v2162 = vmul.f32 %v1538, %v2098
        %v2163 = vmul.f32 %v1540, %v2099
        %v2164 = vmul.f32 %v1542, %v2100
        %v2165 = vmul.f32 %v1544, %v2101
        %v2166 = vmul.f32 %v1546, %v2102
        %v2167 = vmul.f32 %v1548, %v2103
        %v2168 = vmul.f32 %v1550, %v2104
        %v2169 = vmul.f32 %v1552, %v2105
        %v2170 = vmul.f32 %v1554, %v2106
        %v2171 = vmul.f32 %v1556, %v2107
        %v2172 = vmul.f32 %v1558, %v2108
        %v2173 = vmul.f32 %v1560, %v2109
        %v2174 = vmul.f32 %v1562, %v2110
        %v2175 = vmul.f32 %v1564, %v2111
        %v2176 = vmul.f32 %v1566, %v2112
        %v2177 = vmul.f32 %v1568, %v2113
        %v2178 = vmul.f32 %v1570, %v2114
        %v2179 = vmul.f32 %v1572, %v2115
        %v2180 = vmul.f32 %v1574, %v2116
        %v2181 = vmul.f32 %v1576, %v2117
        %v2182 = vmul.f32 %v1578, %v2118
        %v2183 = vmul.f32 %v1580, %v2119
        %v2184 = vmul.f32 %v1582, %v2120
        %v2185 = vmul.f32 %v1584, %v2121
        %v2186 = vmul.f32 %v1586, %v2122
        %v2187 = vmul.f32 %v1588, %v2123
        %v2188 = vmul.f32 %v1590, %v2124
        %v2189 = vmul.f32 %v1592, %v2125
        %v2190 = vmul.f32 %v1594, %v2126
        %v2191 = vmul.f32 %v1596, %v2127
        %v2192 = vmul.f32 %v1598, %v2128
        %v2193 = vmul.f32 %v1600, %v2129
        %v2194 = vmul.f32 %v1602, %v2130
        %v2195 = vmul.f32 %v1604, %v2131
        %v2196 = vmul.f32 %v1606, %v2132
        %v2197 = vmul.f32 %v1608, %v2133
        %v2198 = vmul.f32 %v1610, %v2134
        %v2199 = vmul.f32 %v1612, %v2135
        %v2200 = vmul.f32 %v1614, %v2136
        %v2201 = vmul.f32 %v1616, %v2137
        %v2202 = vmul.f32 %v1618, %v2138
        %v2203 = vmul.f32 %v1620, %v2139
        %v2204 = vmul.f32 %v1622, %v2140
        %v2205 = vmul.f32 %v1624, %v2141
        %v2206 = vmul.f32 %v1626, %v2142
        %v2207 = vmul.f32 %v1628, %v2143
        %v2208 = vmul.f32 %v1630, %v2144
        %v2209 = vmul.f32 %v1632, %v2145
        %v2210 = vmul.f32 %v1634, %v2146
        %v2211 = vsub.f32 0.0, %v1315
        %v2212 = vsub.f32 0.0, %v1316
        %v2213 = vsub.f32 0.0, %v1317
        %v2214 = vsub.f32 0.0, %v1318
        %v2215 = vsub.f32 0.0, %v1319
        %v2216 = vsub.f32 0.0, %v1320
        %v2217 = vsub.f32 0.0, %v1321
        %v2218 = vsub.f32 0.0, %v1322
        %v2219 = vsub.f32 0.0, %v1323
        %v2220 = vsub.f32 0.0, %v1324
        %v2221 = vsub.f32 0.0, %v1325
        %v2222 = vsub.f32 0.0, %v1326
        %v2223 = vsub.f32 0.0, %v1327
        %v2224 = vsub.f32 0.0, %v1328
        %v2225 = vsub.f32 0.0, %v1329
        %v2226 = vsub.f32 0.0, %v1330
        %v2227 = vsub.f32 0.0, %v1331
        %v2228 = vsub.f32 0.0, %v1332
        %v2229 = vsub.f32 0.0, %v1333
        %v2230 = vsub.f32 0.0, %v1334
        %v2231 = vsub.f32 0.0, %v1335
        %v2232 = vsub.f32 0.0, %v1336
        %v2233 = vsub.f32 0.0, %v1337
        %v2234 = vsub.f32 0.0, %v1338
        %v2235 = vsub.f32 0.0, %v1339
        %v2236 = vsub.f32 0.0, %v1340
        %v2237 = vsub.f32 0.0, %v1341
        %v2238 = vsub.f32 0.0, %v1342
        %v2239 = vsub.f32 0.0, %v1343
        %v2240 = vsub.f32 0.0, %v1344
        %v2241 = vsub.f32 0.0, %v1345
        %v2242 = vsub.f32 0.0, %v1346
        %v2243 = vsub.f32 0.0, %v1347
        %v2244 = vsub.f32 0.0, %v1348
        %v2245 = vsub.f32 0.0, %v1349
        %v2246 = vsub.f32 0.0, %v1350
        %v2247 = vsub.f32 0.0, %v1351
        %v2248 = vsub.f32 0.0, %v1352
        %v2249 = vsub.f32 0.0, %v1353
        %v2250 = vsub.f32 0.0, %v1354
        %v2251 = vsub.f32 0.0, %v1355
        %v2252 = vsub.f32 0.0, %v1356
        %v2253 = vsub.f32 0.0, %v1357
        %v2254 = vsub.f32 0.0, %v1358
        %v2255 = vsub.f32 0.0, %v1359
        %v2256 = vsub.f32 0.0, %v1360
        %v2257 = vsub.f32 0.0, %v1361
        %v2258 = vsub.f32 0.0, %v1362
        %v2259 = vsub.f32 0.0, %v1363
        %v2260 = vsub.f32 0.0, %v1364
        %v2261 = vsub.f32 0.0, %v1365
        %v2262 = vsub.f32 0.0, %v1366
        %v2263 = vsub.f32 0.0, %v1367
        %v2264 = vsub.f32 0.0, %v1368
        %v2265 = vsub.f32 0.0, %v1369
        %v2266 = vsub.f32 0.0, %v1370
        %v2267 = vsub.f32 0.0, %v1371
        %v2268 = vsub.f32 0.0, %v1372
        %v2269 = vsub.f32 0.0, %v1373
        %v2270 = vsub.f32 0.0, %v1374
        %v2271 = vsub.f32 0.0, %v1375
        %v2272 = vsub.f32 0.0, %v1376
        %v2273 = vsub.f32 0.0, %v1377
        %v2274 = vsub.f32 0.0, %v1378
        %v2275 = vmul.f32 %v2211, %v1315
        %v2276 = vmul.f32 %v2212, %v1316
        %v2277 = vmul.f32 %v2213, %v1317
        %v2278 = vmul.f32 %v2214, %v1318
        %v2279 = vmul.f32 %v2215, %v1319
        %v2280 = vmul.f32 %v2216, %v1320
        %v2281 = vmul.f32 %v2217, %v1321
        %v2282 = vmul.f32 %v2218, %v1322
        %v2283 = vmul.f32 %v2219, %v1323
        %v2284 = vmul.f32 %v2220, %v1324
        %v2285 = vmul.f32 %v2221, %v1325
        %v2286 = vmul.f32 %v2222, %v1326
        %v2287 = vmul.f32 %v2223, %v1327
        %v2288 = vmul.f32 %v2224, %v1328
        %v2289 = vmul.f32 %v2225, %v1329
        %v2290 = vmul.f32 %v2226, %v1330
        %v2291 = vmul.f32 %v2227, %v1331
        %v2292 = vmul.f32 %v2228, %v1332
        %v2293 = vmul.f32 %v2229, %v1333
        %v2294 = vmul.f32 %v2230, %v1334
        %v2295 = vmul.f32 %v2231, %v1335
        %v2296 = vmul.f32 %v2232, %v1336
        %v2297 = vmul.f32 %v2233, %v1337
        %v2298 = vmul.f32 %v2234, %v1338
        %v2299 = vmul.f32 %v2235, %v1339
        %v2300 = vmul.f32 %v2236, %v1340
        %v2301 = vmul.f32 %v2237, %v1341
        %v2302 = vmul.f32 %v2238, %v1342
        %v2303 = vmul.f32 %v2239, %v1343
        %v2304 = vmul.f32 %v2240, %v1344
        %v2305 = vmul.f32 %v2241, %v1345
        %v2306 = vmul.f32 %v2242, %v1346
        %v2307 = vmul.f32 %v2243, %v1347
        %v2308 = vmul.f32 %v2244, %v1348
        %v2309 = vmul.f32 %v2245, %v1349
        %v2310 = vmul.f32 %v2246, %v1350
        %v2311 = vmul.f32 %v2247, %v1351
        %v2312 = vmul.f32 %v2248, %v1352
        %v2313 = vmul.f32 %v2249, %v1353
        %v2314 = vmul.f32 %v2250, %v1354
        %v2315 = vmul.f32 %v2251, %v1355
        %v2316 = vmul.f32 %v2252, %v1356
        %v2317 = vmul.f32 %v2253, %v1357
        %v2318 = vmul.f32 %v2254, %v1358
        %v2319 = vmul.f32 %v2255, %v1359
        %v2320 = vmul.f32 %v2256, %v1360
        %v2321 = vmul.f32 %v2257, %v1361
        %v2322 = vmul.f32 %v2258, %v1362
        %v2323 = vmul.f32 %v2259, %v1363
        %v2324 = vmul.f32 %v2260, %v1364
        %v2325 = vmul.f32 %v2261, %v1365
        %v2326 = vmul.f32 %v2262, %v1366
        %v2327 = vmul.f32 %v2263, %v1367
        %v2328 = vmul.f32 %v2264, %v1368
        %v2329 = vmul.f32 %v2265, %v1369
        %v2330 = vmul.f32 %v2266, %v1370
        %v2331 = vmul.f32 %v2267, %v1371
        %v2332 = vmul.f32 %v2268, %v1372
        %v2333 = vmul.f32 %v2269, %v1373
        %v2334 = vmul.f32 %v2270, %v1374
        %v2335 = vmul.f32 %v2271, %v1375
        %v2336 = vmul.f32 %v2272, %v1376
        %v2337 = vmul.f32 %v2273, %v1377
        %v2338 = vmul.f32 %v2274, %v1378
        %v2339 = vmul.f32 %v2275, 1.442695
        %v2340 = vpow.pop %v2339
        %v2341 = vmul.f32 %v2276, 1.442695
        %v2342 = vpow.pop %v2341
        %v2343 = vmul.f32 %v2277, 1.442695
        %v2344 = vpow.pop %v2343
        %v2345 = vmul.f32 %v2278, 1.442695
        %v2346 = vpow.pop %v2345
        %v2347 = vmul.f32 %v2279, 1.442695
        %v2348 = vpow.pop %v2347
        %v2349 = vmul.f32 %v2280, 1.442695
        %v2350 = vpow.pop %v2349
        %v2351 = vmul.f32 %v2281, 1.442695
        %v2352 = vpow.pop %v2351
        %v2353 = vmul.f32 %v2282, 1.442695
        %v2354 = vpow.pop %v2353
        %v2355 = vmul.f32 %v2283, 1.442695
        %v2356 = vpow.pop %v2355
        %v2357 = vmul.f32 %v2284, 1.442695
        %v2358 = vpow.pop %v2357
        %v2359 = vmul.f32 %v2285, 1.442695
        %v2360 = vpow.pop %v2359
        %v2361 = vmul.f32 %v2286, 1.442695
        %v2362 = vpow.pop %v2361
        %v2363 = vmul.f32 %v2287, 1.442695
        %v2364 = vpow.pop %v2363
        %v2365 = vmul.f32 %v2288, 1.442695
        %v2366 = vpow.pop %v2365
        %v2367 = vmul.f32 %v2289, 1.442695
        %v2368 = vpow.pop %v2367
        %v2369 = vmul.f32 %v2290, 1.442695
        %v2370 = vpow.pop %v2369
        %v2371 = vmul.f32 %v2291, 1.442695
        %v2372 = vpow.pop %v2371
        %v2373 = vmul.f32 %v2292, 1.442695
        %v2374 = vpow.pop %v2373
        %v2375 = vmul.f32 %v2293, 1.442695
        %v2376 = vpow.pop %v2375
        %v2377 = vmul.f32 %v2294, 1.442695
        %v2378 = vpow.pop %v2377
        %v2379 = vmul.f32 %v2295, 1.442695
        %v2380 = vpow.pop %v2379
        %v2381 = vmul.f32 %v2296, 1.442695
        %v2382 = vpow.pop %v2381
        %v2383 = vmul.f32 %v2297, 1.442695
        %v2384 = vpow.pop %v2383
        %v2385 = vmul.f32 %v2298, 1.442695
        %v2386 = vpow.pop %v2385
        %v2387 = vmul.f32 %v2299, 1.442695
        %v2388 = vpow.pop %v2387
        %v2389 = vmul.f32 %v2300, 1.442695
        %v2390 = vpow.pop %v2389
        %v2391 = vmul.f32 %v2301, 1.442695
        %v2392 = vpow.pop %v2391
        %v2393 = vmul.f32 %v2302, 1.442695
        %v2394 = vpow.pop %v2393
        %v2395 = vmul.f32 %v2303, 1.442695
        %v2396 = vpow.pop %v2395
        %v2397 = vmul.f32 %v2304, 1.442695
        %v2398 = vpow.pop %v2397
        %v2399 = vmul.f32 %v2305, 1.442695
        %v2400 = vpow.pop %v2399
        %v2401 = vmul.f32 %v2306, 1.442695
        %v2402 = vpow.pop %v2401
        %v2403 = vmul.f32 %v2307, 1.442695
        %v2404 = vpow.pop %v2403
        %v2405 = vmul.f32 %v2308, 1.442695
        %v2406 = vpow.pop %v2405
        %v2407 = vmul.f32 %v2309, 1.442695
        %v2408 = vpow.pop %v2407
        %v2409 = vmul.f32 %v2310, 1.442695
        %v2410 = vpow.pop %v2409
        %v2411 = vmul.f32 %v2311, 1.442695
        %v2412 = vpow.pop %v2411
        %v2413 = vmul.f32 %v2312, 1.442695
        %v2414 = vpow.pop %v2413
        %v2415 = vmul.f32 %v2313, 1.442695
        %v2416 = vpow.pop %v2415
        %v2417 = vmul.f32 %v2314, 1.442695
        %v2418 = vpow.pop %v2417
        %v2419 = vmul.f32 %v2315, 1.442695
        %v2420 = vpow.pop %v2419
        %v2421 = vmul.f32 %v2316, 1.442695
        %v2422 = vpow.pop %v2421
        %v2423 = vmul.f32 %v2317, 1.442695
        %v2424 = vpow.pop %v2423
        %v2425 = vmul.f32 %v2318, 1.442695
        %v2426 = vpow.pop %v2425
        %v2427 = vmul.f32 %v2319, 1.442695
        %v2428 = vpow.pop %v2427
        %v2429 = vmul.f32 %v2320, 1.442695
        %v2430 = vpow.pop %v2429
        %v2431 = vmul.f32 %v2321, 1.442695
        %v2432 = vpow.pop %v2431
        %v2433 = vmul.f32 %v2322, 1.442695
        %v2434 = vpow.pop %v2433
        %v2435 = vmul.f32 %v2323, 1.442695
        %v2436 = vpow.pop %v2435
        %v2437 = vmul.f32 %v2324, 1.442695
        %v2438 = vpow.pop %v2437
        %v2439 = vmul.f32 %v2325, 1.442695
        %v2440 = vpow.pop %v2439
        %v2441 = vmul.f32 %v2326, 1.442695
        %v2442 = vpow.pop %v2441
        %v2443 = vmul.f32 %v2327, 1.442695
        %v2444 = vpow.pop %v2443
        %v2445 = vmul.f32 %v2328, 1.442695
        %v2446 = vpow.pop %v2445
        %v2447 = vmul.f32 %v2329, 1.442695
        %v2448 = vpow.pop %v2447
        %v2449 = vmul.f32 %v2330, 1.442695
        %v2450 = vpow.pop %v2449
        %v2451 = vmul.f32 %v2331, 1.442695
        %v2452 = vpow.pop %v2451
        %v2453 = vmul.f32 %v2332, 1.442695
        %v2454 = vpow.pop %v2453
        %v2455 = vmul.f32 %v2333, 1.442695
        %v2456 = vpow.pop %v2455
        %v2457 = vmul.f32 %v2334, 1.442695
        %v2458 = vpow.pop %v2457
        %v2459 = vmul.f32 %v2335, 1.442695
        %v2460 = vpow.pop %v2459
        %v2461 = vmul.f32 %v2336, 1.442695
        %v2462 = vpow.pop %v2461
        %v2463 = vmul.f32 %v2337, 1.442695
        %v2464 = vpow.pop %v2463
        %v2465 = vmul.f32 %v2338, 1.442695
        %v2466 = vpow.pop %v2465
        %v2467 = vmul.f32 %v2147, %v2340
        %v2468 = vmul.f32 %v2148, %v2342
        %v2469 = vmul.f32 %v2149, %v2344
        %v2470 = vmul.f32 %v2150, %v2346
        %v2471 = vmul.f32 %v2151, %v2348
        %v2472 = vmul.f32 %v2152, %v2350
        %v2473 = vmul.f32 %v2153, %v2352
        %v2474 = vmul.f32 %v2154, %v2354
        %v2475 = vmul.f32 %v2155, %v2356
        %v2476 = vmul.f32 %v2156, %v2358
        %v2477 = vmul.f32 %v2157, %v2360
        %v2478 = vmul.f32 %v2158, %v2362
        %v2479 = vmul.f32 %v2159, %v2364
        %v2480 = vmul.f32 %v2160, %v2366
        %v2481 = vmul.f32 %v2161, %v2368
        %v2482 = vmul.f32 %v2162, %v2370
        %v2483 = vmul.f32 %v2163, %v2372
        %v2484 = vmul.f32 %v2164, %v2374
        %v2485 = vmul.f32 %v2165, %v2376
        %v2486 = vmul.f32 %v2166, %v2378
        %v2487 = vmul.f32 %v2167, %v2380
        %v2488 = vmul.f32 %v2168, %v2382
        %v2489 = vmul.f32 %v2169, %v2384
        %v2490 = vmul.f32 %v2170, %v2386
        %v2491 = vmul.f32 %v2171, %v2388
        %v2492 = vmul.f32 %v2172, %v2390
        %v2493 = vmul.f32 %v2173, %v2392
        %v2494 = vmul.f32 %v2174, %v2394
        %v2495 = vmul.f32 %v2175, %v2396
        %v2496 = vmul.f32 %v2176, %v2398
        %v2497 = vmul.f32 %v2177, %v2400
        %v2498 = vmul.f32 %v2178, %v2402
        %v2499 = vmul.f32 %v2179, %v2404
        %v2500 = vmul.f32 %v2180, %v2406
        %v2501 = vmul.f32 %v2181, %v2408
        %v2502 = vmul.f32 %v2182, %v2410
        %v2503 = vmul.f32 %v2183, %v2412
        %v2504 = vmul.f32 %v2184, %v2414
        %v2505 = vmul.f32 %v2185, %v2416
        %v2506 = vmul.f32 %v2186, %v2418
        %v2507 = vmul.f32 %v2187, %v2420
        %v2508 = vmul.f32 %v2188, %v2422
        %v2509 = vmul.f32 %v2189, %v2424
        %v2510 = vmul.f32 %v2190, %v2426
        %v2511 = vmul.f32 %v2191, %v2428
        %v2512 = vmul.f32 %v2192, %v2430
        %v2513 = vmul.f32 %v2193, %v2432
        %v2514 = vmul.f32 %v2194, %v2434
        %v2515 = vmul.f32 %v2195, %v2436
        %v2516 = vmul.f32 %v2196, %v2438
        %v2517 = vmul.f32 %v2197, %v2440
        %v2518 = vmul.f32 %v2198, %v2442
        %v2519 = vmul.f32 %v2199, %v2444
        %v2520 = vmul.f32 %v2200, %v2446
        %v2521 = vmul.f32 %v2201, %v2448
        %v2522 = vmul.f32 %v2202, %v2450
        %v2523 = vmul.f32 %v2203, %v2452
        %v2524 = vmul.f32 %v2204, %v2454
        %v2525 = vmul.f32 %v2205, %v2456
        %v2526 = vmul.f32 %v2206, %v2458
        %v2527 = vmul.f32 %v2207, %v2460
        %v2528 = vmul.f32 %v2208, %v2462
        %v2529 = vmul.f32 %v2209, %v2464
        %v2530 = vmul.f32 %v2210, %v2466
        %v2531 = vsub.f32 1.0, %v2467
        %v2532 = vsub.f32 1.0, %v2468
        %v2533 = vsub.f32 1.0, %v2469
        %v2534 = vsub.f32 1.0, %v2470
        %v2535 = vsub.f32 1.0, %v2471
        %v2536 = vsub.f32 1.0, %v2472
        %v2537 = vsub.f32 1.0, %v2473
        %v2538 = vsub.f32 1.0, %v2474
        %v2539 = vsub.f32 1.0, %v2475
        %v2540 = vsub.f32 1.0, %v2476
        %v2541 = vsub.f32 1.0, %v2477
        %v2542 = vsub.f32 1.0, %v2478
        %v2543 = vsub.f32 1.0, %v2479
        %v2544 = vsub.f32 1.0, %v2480
        %v2545 = vsub.f32 1.0, %v2481
        %v2546 = vsub.f32 1.0, %v2482
        %v2547 = vsub.f32 1.0, %v2483
        %v2548 = vsub.f32 1.0, %v2484
        %v2549 = vsub.f32 1.0, %v2485
        %v2550 = vsub.f32 1.0, %v2486
        %v2551 = vsub.f32 1.0, %v2487
        %v2552 = vsub.f32 1.0, %v2488
        %v2553 = vsub.f32 1.0, %v2489
        %v2554 = vsub.f32 1.0, %v2490
        %v2555 = vsub.f32 1.0, %v2491
        %v2556 = vsub.f32 1.0, %v2492
        %v2557 = vsub.f32 1.0, %v2493
        %v2558 = vsub.f32 1.0, %v2494
        %v2559 = vsub.f32 1.0, %v2495
        %v2560 = vsub.f32 1.0, %v2496
        %v2561 = vsub.f32 1.0, %v2497
        %v2562 = vsub.f32 1.0, %v2498
        %v2563 = vsub.f32 1.0, %v2499
        %v2564 = vsub.f32 1.0, %v2500
        %v2565 = vsub.f32 1.0, %v2501
        %v2566 = vsub.f32 1.0, %v2502
        %v2567 = vsub.f32 1.0, %v2503
        %v2568 = vsub.f32 1.0, %v2504
        %v2569 = vsub.f32 1.0, %v2505
        %v2570 = vsub.f32 1.0, %v2506
        %v2571 = vsub.f32 1.0, %v2507
        %v2572 = vsub.f32 1.0, %v2508
        %v2573 = vsub.f32 1.0, %v2509
        %v2574 = vsub.f32 1.0, %v2510
        %v2575 = vsub.f32 1.0, %v2511
        %v2576 = vsub.f32 1.0, %v2512
        %v2577 = vsub.f32 1.0, %v2513
        %v2578 = vsub.f32 1.0, %v2514
        %v2579 = vsub.f32 1.0, %v2515
        %v2580 = vsub.f32 1.0, %v2516
        %v2581 = vsub.f32 1.0, %v2517
        %v2582 = vsub.f32 1.0, %v2518
        %v2583 = vsub.f32 1.0, %v2519
        %v2584 = vsub.f32 1.0, %v2520
        %v2585 = vsub.f32 1.0, %v2521
        %v2586 = vsub.f32 1.0, %v2522
        %v2587 = vsub.f32 1.0, %v2523
        %v2588 = vsub.f32 1.0, %v2524
        %v2589 = vsub.f32 1.0, %v2525
        %v2590 = vsub.f32 1.0, %v2526
        %v2591 = vsub.f32 1.0, %v2527
        %v2592 = vsub.f32 1.0, %v2528
        %v2593 = vsub.f32 1.0, %v2529
        %v2594 = vsub.f32 1.0, %v2530
        %vm2595 = vcmp.ge.f32.partialorder %v1251, 0.0
        %vm2596 = vcmp.ge.f32.partialorder %v1252, 0.0
        %vm2597 = vcmp.ge.f32.partialorder %v1253, 0.0
        %vm2598 = vcmp.ge.f32.partialorder %v1254, 0.0
        %vm2599 = vcmp.ge.f32.partialorder %v1255, 0.0
        %vm2600 = vcmp.ge.f32.partialorder %v1256, 0.0
        %vm2601 = vcmp.ge.f32.partialorder %v1257, 0.0
        %vm2602 = vcmp.ge.f32.partialorder %v1258, 0.0
        %vm2603 = vcmp.ge.f32.partialorder %v1259, 0.0
        %vm2604 = vcmp.ge.f32.partialorder %v1260, 0.0
        %vm2605 = vcmp.ge.f32.partialorder %v1261, 0.0
        %vm2606 = vcmp.ge.f32.partialorder %v1262, 0.0
        %vm2607 = vcmp.ge.f32.partialorder %v1263, 0.0
        %vm2608 = vcmp.ge.f32.partialorder %v1264, 0.0
        %vm2609 = vcmp.ge.f32.partialorder %v1265, 0.0
        %vm2610 = vcmp.ge.f32.partialorder %v1266, 0.0
        %vm2611 = vcmp.ge.f32.partialorder %v1267, 0.0
        %vm2612 = vcmp.ge.f32.partialorder %v1268, 0.0
        %vm2613 = vcmp.ge.f32.partialorder %v1269, 0.0
        %vm2614 = vcmp.ge.f32.partialorder %v1270, 0.0
        %vm2615 = vcmp.ge.f32.partialorder %v1271, 0.0
        %vm2616 = vcmp.ge.f32.partialorder %v1272, 0.0
        %vm2617 = vcmp.ge.f32.partialorder %v1273, 0.0
        %vm2618 = vcmp.ge.f32.partialorder %v1274, 0.0
        %vm2619 = vcmp.ge.f32.partialorder %v1275, 0.0
        %vm2620 = vcmp.ge.f32.partialorder %v1276, 0.0
        %vm2621 = vcmp.ge.f32.partialorder %v1277, 0.0
        %vm2622 = vcmp.ge.f32.partialorder %v1278, 0.0
        %vm2623 = vcmp.ge.f32.partialorder %v1279, 0.0
        %vm2624 = vcmp.ge.f32.partialorder %v1280, 0.0
        %vm2625 = vcmp.ge.f32.partialorder %v1281, 0.0
        %vm2626 = vcmp.ge.f32.partialorder %v1282, 0.0
        %vm2627 = vcmp.ge.f32.partialorder %v1283, 0.0
        %vm2628 = vcmp.ge.f32.partialorder %v1284, 0.0
        %vm2629 = vcmp.ge.f32.partialorder %v1285, 0.0
        %vm2630 = vcmp.ge.f32.partialorder %v1286, 0.0
        %vm2631 = vcmp.ge.f32.partialorder %v1287, 0.0
        %vm2632 = vcmp.ge.f32.partialorder %v1288, 0.0
        %vm2633 = vcmp.ge.f32.partialorder %v1289, 0.0
        %vm2634 = vcmp.ge.f32.partialorder %v1290, 0.0
        %vm2635 = vcmp.ge.f32.partialorder %v1291, 0.0
        %vm2636 = vcmp.ge.f32.partialorder %v1292, 0.0
        %vm2637 = vcmp.ge.f32.partialorder %v1293, 0.0
        %vm2638 = vcmp.ge.f32.partialorder %v1294, 0.0
        %vm2639 = vcmp.ge.f32.partialorder %v1295, 0.0
        %vm2640 = vcmp.ge.f32.partialorder %v1296, 0.0
        %vm2641 = vcmp.ge.f32.partialorder %v1297, 0.0
        %vm2642 = vcmp.ge.f32.partialorder %v1298, 0.0
        %vm2643 = vcmp.ge.f32.partialorder %v1299, 0.0
        %vm2644 = vcmp.ge.f32.partialorder %v1300, 0.0
        %vm2645 = vcmp.ge.f32.partialorder %v1301, 0.0
        %vm2646 = vcmp.ge.f32.partialorder %v1302, 0.0
        %vm2647 = vcmp.ge.f32.partialorder %v1303, 0.0
        %vm2648 = vcmp.ge.f32.partialorder %v1304, 0.0
        %vm2649 = vcmp.ge.f32.partialorder %v1305, 0.0
        %vm2650 = vcmp.ge.f32.partialorder %v1306, 0.0
        %vm2651 = vcmp.ge.f32.partialorder %v1307, 0.0
        %vm2652 = vcmp.ge.f32.partialorder %v1308, 0.0
        %vm2653 = vcmp.ge.f32.partialorder %v1309, 0.0
        %vm2654 = vcmp.ge.f32.partialorder %v1310, 0.0
        %vm2655 = vcmp.ge.f32.partialorder %v1311, 0.0
        %vm2656 = vcmp.ge.f32.partialorder %v1312, 0.0
        %vm2657 = vcmp.ge.f32.partialorder %v1313, 0.0
        %vm2658 = vcmp.ge.f32.partialorder %v1314, 0.0
        %v2659 = vsub.f32 0.0, %v2531
        %v2660 = vsub.f32 0.0, %v2532
        %v2661 = vsub.f32 0.0, %v2533
        %v2662 = vsub.f32 0.0, %v2534
        %v2663 = vsub.f32 0.0, %v2535
        %v2664 = vsub.f32 0.0, %v2536
        %v2665 = vsub.f32 0.0, %v2537
        %v2666 = vsub.f32 0.0, %v2538
        %v2667 = vsub.f32 0.0, %v2539
        %v2668 = vsub.f32 0.0, %v2540
        %v2669 = vsub.f32 0.0, %v2541
        %v2670 = vsub.f32 0.0, %v2542
        %v2671 = vsub.f32 0.0, %v2543
        %v2672 = vsub.f32 0.0, %v2544
        %v2673 = vsub.f32 0.0, %v2545
        %v2674 = vsub.f32 0.0, %v2546
        %v2675 = vsub.f32 0.0, %v2547
        %v2676 = vsub.f32 0.0, %v2548
        %v2677 = vsub.f32 0.0, %v2549
        %v2678 = vsub.f32 0.0, %v2550
        %v2679 = vsub.f32 0.0, %v2551
        %v2680 = vsub.f32 0.0, %v2552
        %v2681 = vsub.f32 0.0, %v2553
        %v2682 = vsub.f32 0.0, %v2554
        %v2683 = vsub.f32 0.0, %v2555
        %v2684 = vsub.f32 0.0, %v2556
        %v2685 = vsub.f32 0.0, %v2557
        %v2686 = vsub.f32 0.0, %v2558
        %v2687 = vsub.f32 0.0, %v2559
        %v2688 = vsub.f32 0.0, %v2560
        %v2689 = vsub.f32 0.0, %v2561
        %v2690 = vsub.f32 0.0, %v2562
        %v2691 = vsub.f32 0.0, %v2563
        %v2692 = vsub.f32 0.0, %v2564
        %v2693 = vsub.f32 0.0, %v2565
        %v2694 = vsub.f32 0.0, %v2566
        %v2695 = vsub.f32 0.0, %v2567
        %v2696 = vsub.f32 0.0, %v2568
        %v2697 = vsub.f32 0.0, %v2569
        %v2698 = vsub.f32 0.0, %v2570
        %v2699 = vsub.f32 0.0, %v2571
        %v2700 = vsub.f32 0.0, %v2572
        %v2701 = vsub.f32 0.0, %v2573
        %v2702 = vsub.f32 0.0, %v2574
        %v2703 = vsub.f32 0.0, %v2575
        %v2704 = vsub.f32 0.0, %v2576
        %v2705 = vsub.f32 0.0, %v2577
        %v2706 = vsub.f32 0.0, %v2578
        %v2707 = vsub.f32 0.0, %v2579
        %v2708 = vsub.f32 0.0, %v2580
        %v2709 = vsub.f32 0.0, %v2581
        %v2710 = vsub.f32 0.0, %v2582
        %v2711 = vsub.f32 0.0, %v2583
        %v2712 = vsub.f32 0.0, %v2584
        %v2713 = vsub.f32 0.0, %v2585
        %v2714 = vsub.f32 0.0, %v2586
        %v2715 = vsub.f32 0.0, %v2587
        %v2716 = vsub.f32 0.0, %v2588
        %v2717 = vsub.f32 0.0, %v2589
        %v2718 = vsub.f32 0.0, %v2590
        %v2719 = vsub.f32 0.0, %v2591
        %v2720 = vsub.f32 0.0, %v2592
        %v2721 = vsub.f32 0.0, %v2593
        %v2722 = vsub.f32 0.0, %v2594
        %v2723 = vsel %vm2595, %v2531, %v2659
        %v2724 = vsel %vm2596, %v2532, %v2660
        %v2725 = vsel %vm2597, %v2533, %v2661
        %v2726 = vsel %vm2598, %v2534, %v2662
        %v2727 = vsel %vm2599, %v2535, %v2663
        %v2728 = vsel %vm2600, %v2536, %v2664
        %v2729 = vsel %vm2601, %v2537, %v2665
        %v2730 = vsel %vm2602, %v2538, %v2666
        %v2731 = vsel %vm2603, %v2539, %v2667
        %v2732 = vsel %vm2604, %v2540, %v2668
        %v2733 = vsel %vm2605, %v2541, %v2669
        %v2734 = vsel %vm2606, %v2542, %v2670
        %v2735 = vsel %vm2607, %v2543, %v2671
        %v2736 = vsel %vm2608, %v2544, %v2672
        %v2737 = vsel %vm2609, %v2545, %v2673
        %v2738 = vsel %vm2610, %v2546, %v2674
        %v2739 = vsel %vm2611, %v2547, %v2675
        %v2740 = vsel %vm2612, %v2548, %v2676
        %v2741 = vsel %vm2613, %v2549, %v2677
        %v2742 = vsel %vm2614, %v2550, %v2678
        %v2743 = vsel %vm2615, %v2551, %v2679
        %v2744 = vsel %vm2616, %v2552, %v2680
        %v2745 = vsel %vm2617, %v2553, %v2681
        %v2746 = vsel %vm2618, %v2554, %v2682
        %v2747 = vsel %vm2619, %v2555, %v2683
        %v2748 = vsel %vm2620, %v2556, %v2684
        %v2749 = vsel %vm2621, %v2557, %v2685
        %v2750 = vsel %vm2622, %v2558, %v2686
        %v2751 = vsel %vm2623, %v2559, %v2687
        %v2752 = vsel %vm2624, %v2560, %v2688
        %v2753 = vsel %vm2625, %v2561, %v2689
        %v2754 = vsel %vm2626, %v2562, %v2690
        %v2755 = vsel %vm2627, %v2563, %v2691
        %v2756 = vsel %vm2628, %v2564, %v2692
        %v2757 = vsel %vm2629, %v2565, %v2693
        %v2758 = vsel %vm2630, %v2566, %v2694
        %v2759 = vsel %vm2631, %v2567, %v2695
        %v2760 = vsel %vm2632, %v2568, %v2696
        %v2761 = vsel %vm2633, %v2569, %v2697
        %v2762 = vsel %vm2634, %v2570, %v2698
        %v2763 = vsel %vm2635, %v2571, %v2699
        %v2764 = vsel %vm2636, %v2572, %v2700
        %v2765 = vsel %vm2637, %v2573, %v2701
        %v2766 = vsel %vm2638, %v2574, %v2702
        %v2767 = vsel %vm2639, %v2575, %v2703
        %v2768 = vsel %vm2640, %v2576, %v2704
        %v2769 = vsel %vm2641, %v2577, %v2705
        %v2770 = vsel %vm2642, %v2578, %v2706
        %v2771 = vsel %vm2643, %v2579, %v2707
        %v2772 = vsel %vm2644, %v2580, %v2708
        %v2773 = vsel %vm2645, %v2581, %v2709
        %v2774 = vsel %vm2646, %v2582, %v2710
        %v2775 = vsel %vm2647, %v2583, %v2711
        %v2776 = vsel %vm2648, %v2584, %v2712
        %v2777 = vsel %vm2649, %v2585, %v2713
        %v2778 = vsel %vm2650, %v2586, %v2714
        %v2779 = vsel %vm2651, %v2587, %v2715
        %v2780 = vsel %vm2652, %v2588, %v2716
        %v2781 = vsel %vm2653, %v2589, %v2717
        %v2782 = vsel %vm2654, %v2590, %v2718
        %v2783 = vsel %vm2655, %v2591, %v2719
        %v2784 = vsel %vm2656, %v2592, %v2720
        %v2785 = vsel %vm2657, %v2593, %v2721
        %v2786 = vsel %vm2658, %v2594, %v2722
        %v2787 = vadd.f32 %v2723, 1.0
        %v2788 = vadd.f32 %v2724, 1.0
        %v2789 = vadd.f32 %v2725, 1.0
        %v2790 = vadd.f32 %v2726, 1.0
        %v2791 = vadd.f32 %v2727, 1.0
        %v2792 = vadd.f32 %v2728, 1.0
        %v2793 = vadd.f32 %v2729, 1.0
        %v2794 = vadd.f32 %v2730, 1.0
        %v2795 = vadd.f32 %v2731, 1.0
        %v2796 = vadd.f32 %v2732, 1.0
        %v2797 = vadd.f32 %v2733, 1.0
        %v2798 = vadd.f32 %v2734, 1.0
        %v2799 = vadd.f32 %v2735, 1.0
        %v2800 = vadd.f32 %v2736, 1.0
        %v2801 = vadd.f32 %v2737, 1.0
        %v2802 = vadd.f32 %v2738, 1.0
        %v2803 = vadd.f32 %v2739, 1.0
        %v2804 = vadd.f32 %v2740, 1.0
        %v2805 = vadd.f32 %v2741, 1.0
        %v2806 = vadd.f32 %v2742, 1.0
        %v2807 = vadd.f32 %v2743, 1.0
        %v2808 = vadd.f32 %v2744, 1.0
        %v2809 = vadd.f32 %v2745, 1.0
        %v2810 = vadd.f32 %v2746, 1.0
        %v2811 = vadd.f32 %v2747, 1.0
        %v2812 = vadd.f32 %v2748, 1.0
        %v2813 = vadd.f32 %v2749, 1.0
        %v2814 = vadd.f32 %v2750, 1.0
        %v2815 = vadd.f32 %v2751, 1.0
        %v2816 = vadd.f32 %v2752, 1.0
        %v2817 = vadd.f32 %v2753, 1.0
        %v2818 = vadd.f32 %v2754, 1.0
        %v2819 = vadd.f32 %v2755, 1.0
        %v2820 = vadd.f32 %v2756, 1.0
        %v2821 = vadd.f32 %v2757, 1.0
        %v2822 = vadd.f32 %v2758, 1.0
        %v2823 = vadd.f32 %v2759, 1.0
        %v2824 = vadd.f32 %v2760, 1.0
        %v2825 = vadd.f32 %v2761, 1.0
        %v2826 = vadd.f32 %v2762, 1.0
        %v2827 = vadd.f32 %v2763, 1.0
        %v2828 = vadd.f32 %v2764, 1.0
        %v2829 = vadd.f32 %v2765, 1.0
        %v2830 = vadd.f32 %v2766, 1.0
        %v2831 = vadd.f32 %v2767, 1.0
        %v2832 = vadd.f32 %v2768, 1.0
        %v2833 = vadd.f32 %v2769, 1.0
        %v2834 = vadd.f32 %v2770, 1.0
        %v2835 = vadd.f32 %v2771, 1.0
        %v2836 = vadd.f32 %v2772, 1.0
        %v2837 = vadd.f32 %v2773, 1.0
        %v2838 = vadd.f32 %v2774, 1.0
        %v2839 = vadd.f32 %v2775, 1.0
        %v2840 = vadd.f32 %v2776, 1.0
        %v2841 = vadd.f32 %v2777, 1.0
        %v2842 = vadd.f32 %v2778, 1.0
        %v2843 = vadd.f32 %v2779, 1.0
        %v2844 = vadd.f32 %v2780, 1.0
        %v2845 = vadd.f32 %v2781, 1.0
        %v2846 = vadd.f32 %v2782, 1.0
        %v2847 = vadd.f32 %v2783, 1.0
        %v2848 = vadd.f32 %v2784, 1.0
        %v2849 = vadd.f32 %v2785, 1.0
        %v2850 = vadd.f32 %v2786, 1.0
        %v2851 = vmul.f32 %v1187, %v2787
        %v2852 = vmul.f32 %v1188, %v2788
        %v2853 = vmul.f32 %v1189, %v2789
        %v2854 = vmul.f32 %v1190, %v2790
        %v2855 = vmul.f32 %v1191, %v2791
        %v2856 = vmul.f32 %v1192, %v2792
        %v2857 = vmul.f32 %v1193, %v2793
        %v2858 = vmul.f32 %v1194, %v2794
        %v2859 = vmul.f32 %v1195, %v2795
        %v2860 = vmul.f32 %v1196, %v2796
        %v2861 = vmul.f32 %v1197, %v2797
        %v2862 = vmul.f32 %v1198, %v2798
        %v2863 = vmul.f32 %v1199, %v2799
        %v2864 = vmul.f32 %v1200, %v2800
        %v2865 = vmul.f32 %v1201, %v2801
        %v2866 = vmul.f32 %v1202, %v2802
        %v2867 = vmul.f32 %v1203, %v2803
        %v2868 = vmul.f32 %v1204, %v2804
        %v2869 = vmul.f32 %v1205, %v2805
        %v2870 = vmul.f32 %v1206, %v2806
        %v2871 = vmul.f32 %v1207, %v2807
        %v2872 = vmul.f32 %v1208, %v2808
        %v2873 = vmul.f32 %v1209, %v2809
        %v2874 = vmul.f32 %v1210, %v2810
        %v2875 = vmul.f32 %v1211, %v2811
        %v2876 = vmul.f32 %v1212, %v2812
        %v2877 = vmul.f32 %v1213, %v2813
        %v2878 = vmul.f32 %v1214, %v2814
        %v2879 = vmul.f32 %v1215, %v2815
        %v2880 = vmul.f32 %v1216, %v2816
        %v2881 = vmul.f32 %v1217, %v2817
        %v2882 = vmul.f32 %v1218, %v2818
        %v2883 = vmul.f32 %v1219, %v2819
        %v2884 = vmul.f32 %v1220, %v2820
        %v2885 = vmul.f32 %v1221, %v2821
        %v2886 = vmul.f32 %v1222, %v2822
        %v2887 = vmul.f32 %v1223, %v2823
        %v2888 = vmul.f32 %v1224, %v2824
        %v2889 = vmul.f32 %v1225, %v2825
        %v2890 = vmul.f32 %v1226, %v2826
        %v2891 = vmul.f32 %v1227, %v2827
        %v2892 = vmul.f32 %v1228, %v2828
        %v2893 = vmul.f32 %v1229, %v2829
        %v2894 = vmul.f32 %v1230, %v2830
        %v2895 = vmul.f32 %v1231, %v2831
        %v2896 = vmul.f32 %v1232, %v2832
        %v2897 = vmul.f32 %v1233, %v2833
        %v2898 = vmul.f32 %v1234, %v2834
        %v2899 = vmul.f32 %v1235, %v2835
        %v2900 = vmul.f32 %v1236, %v2836
        %v2901 = vmul.f32 %v1237, %v2837
        %v2902 = vmul.f32 %v1238, %v2838
        %v2903 = vmul.f32 %v1239, %v2839
        %v2904 = vmul.f32 %v1240, %v2840
        %v2905 = vmul.f32 %v1241, %v2841
        %v2906 = vmul.f32 %v1242, %v2842
        %v2907 = vmul.f32 %v1243, %v2843
        %v2908 = vmul.f32 %v1244, %v2844
        %v2909 = vmul.f32 %v1245, %v2845
        %v2910 = vmul.f32 %v1246, %v2846
        %v2911 = vmul.f32 %v1247, %v2847
        %v2912 = vmul.f32 %v1248, %v2848
        %v2913 = vmul.f32 %v1249, %v2849
        %v2914 = vmul.f32 %v1250, %v2850
        %2915 = vst [vmem:[%s313] sm:$0xff] %v2851
        %2916 = vst [vmem:[%s313 + $0x8] sm:$0xff] %v2852
        %2917 = vst [vmem:[%s313 + $0x10] sm:$0xff] %v2853
        %2918 = vst [vmem:[%s313 + $0x18] sm:$0xff] %v2854
        %2919 = vst [vmem:[%s313 + $0x20] sm:$0xff] %v2855
        %2920 = vst [vmem:[%s313 + $0x28] sm:$0xff] %v2856
        %2921 = vst [vmem:[%s313 + $0x30] sm:$0xff] %v2857
        %2922 = vst [vmem:[%s313 + $0x38] sm:$0xff] %v2858
        %2923 = vst [vmem:[%s313 + $0x40] sm:$0xff] %v2859
        %2924 = vst [vmem:[%s313 + $0x48] sm:$0xff] %v2860
        %2925 = vst [vmem:[%s313 + $0x50] sm:$0xff] %v2861
        %2926 = vst [vmem:[%s313 + $0x58] sm:$0xff] %v2862
        %2927 = vst [vmem:[%s313 + $0x60] sm:$0xff] %v2863
        %2928 = vst [vmem:[%s313 + $0x68] sm:$0xff] %v2864
        %2929 = vst [vmem:[%s313 + $0x70] sm:$0xff] %v2865
        %2930 = vst [vmem:[%s313 + $0x78] sm:$0xff] %v2866
        %2931 = vst [vmem:[%s313 + $0x80] sm:$0xff] %v2867
        %2932 = vst [vmem:[%s313 + $0x88] sm:$0xff] %v2868
        %2933 = vst [vmem:[%s313 + $0x90] sm:$0xff] %v2869
        %2934 = vst [vmem:[%s313 + $0x98] sm:$0xff] %v2870
        %2935 = vst [vmem:[%s313 + $0xa0] sm:$0xff] %v2871
        %2936 = vst [vmem:[%s313 + $0xa8] sm:$0xff] %v2872
        %2937 = vst [vmem:[%s313 + $0xb0] sm:$0xff] %v2873
        %2938 = vst [vmem:[%s313 + $0xb8] sm:$0xff] %v2874
        %2939 = vst [vmem:[%s313 + $0xc0] sm:$0xff] %v2875
        %2940 = vst [vmem:[%s313 + $0xc8] sm:$0xff] %v2876
        %2941 = vst [vmem:[%s313 + $0xd0] sm:$0xff] %v2877
        %2942 = vst [vmem:[%s313 + $0xd8] sm:$0xff] %v2878
        %2943 = vst [vmem:[%s313 + $0xe0] sm:$0xff] %v2879
        %2944 = vst [vmem:[%s313 + $0xe8] sm:$0xff] %v2880
        %2945 = vst [vmem:[%s313 + $0xf0] sm:$0xff] %v2881
        %2946 = vst [vmem:[%s313 + $0xf8] sm:$0xff] %v2882
        %2947 = vst [vmem:[%s313 + $0x100] sm:$0xff] %v2883
        %2948 = vst [vmem:[%s313 + $0x108] sm:$0xff] %v2884
        %2949 = vst [vmem:[%s313 + $0x110] sm:$0xff] %v2885
        %2950 = vst [vmem:[%s313 + $0x118] sm:$0xff] %v2886
        %2951 = vst [vmem:[%s313 + $0x120] sm:$0xff] %v2887
        %2952 = vst [vmem:[%s313 + $0x128] sm:$0xff] %v2888
        %2953 = vst [vmem:[%s313 + $0x130] sm:$0xff] %v2889
        %2954 = vst [vmem:[%s313 + $0x138] sm:$0xff] %v2890
        %2955 = vst [vmem:[%s313 + $0x140] sm:$0xff] %v2891
        %2956 = vst [vmem:[%s313 + $0x148] sm:$0xff] %v2892
        %2957 = vst [vmem:[%s313 + $0x150] sm:$0xff] %v2893
        %2958 = vst [vmem:[%s313 + $0x158] sm:$0xff] %v2894
        %2959 = vst [vmem:[%s313 + $0x160] sm:$0xff] %v2895
        %2960 = vst [vmem:[%s313 + $0x168] sm:$0xff] %v2896
        %2961 = vst [vmem:[%s313 + $0x170] sm:$0xff] %v2897
        %2962 = vst [vmem:[%s313 + $0x178] sm:$0xff] %v2898
        %2963 = vst [vmem:[%s313 + $0x180] sm:$0xff] %v2899
        %2964 = vst [vmem:[%s313 + $0x188] sm:$0xff] %v2900
        %2965 = vst [vmem:[%s313 + $0x190] sm:$0xff] %v2901
        %2966 = vst [vmem:[%s313 + $0x198] sm:$0xff] %v2902
        %2967 = vst [vmem:[%s313 + $0x1a0] sm:$0xff] %v2903
        %2968 = vst [vmem:[%s313 + $0x1a8] sm:$0xff] %v2904
        %2969 = vst [vmem:[%s313 + $0x1b0] sm:$0xff] %v2905
        %2970 = vst [vmem:[%s313 + $0x1b8] sm:$0xff] %v2906
        %2971 = vst [vmem:[%s313 + $0x1c0] sm:$0xff] %v2907
        %2972 = vst [vmem:[%s313 + $0x1c8] sm:$0xff] %v2908
        %2973 = vst [vmem:[%s313 + $0x1d0] sm:$0xff] %v2909
        %2974 = vst [vmem:[%s313 + $0x1d8] sm:$0xff] %v2910
        %2975 = vst [vmem:[%s313 + $0x1e0] sm:$0xff] %v2911
        %2976 = vst [vmem:[%s313 + $0x1e8] sm:$0xff] %v2912
        %2977 = vst [vmem:[%s313 + $0x1f0] sm:$0xff] %v2913
        %2978 = vst [vmem:[%s313 + $0x1f8] sm:$0xff] %v2914
        %s2979 = sand.u32 %s161, 1
        %s2980 = scalar_lea.sflag [#allocation5], %s2979
        %s2981 = sand.u32 %s161, 1
        %s2982 = smul.addr %s2981, 512
        %s2983 = scalar_lea.vmem [#allocation4], %s2982
        // Predicated region
        $region83: #{tpu_custom_call.1} parent=73 // pred_check
          %p2984 = pneg %p171
        $region84: #{tpu_custom_call.1} parent=73 // pred_check_branch
          %2986 = sbr.rel (%p2984) target = $region86
        $region85: #{tpu_custom_call.1} parent=73 // pred_region
          %s2987 = smul.u32 32, %s23
          %s2988 = smul.u32 2, %s24
          %s2990 = ssub.s32 8192, 8192
          %2991 = vsyncadd %s2980, %s2990
          %s2992 = smul.addr %s2987, 4
          %s2993 = sadd.s32 %s2988, %s2992
          %s2994 = smul.addr %s2993, 128
          %s2995 = scalar_lea.hbm %s5, %s2994
          %s2996 = sshll.u32 %s2983, 4
          %s2997 = int_to_ptr.vmem [resolvable:$true] %s2996
          %3002 = dma.vmem_to_hbm [thread:$0]  %s2997, 8192, %s2995, %s2980, 256, 512, 16
        $region86: #{tpu_custom_call.1} parent=73 // pred_fallthru
          _
      $region74: #{tpu_custom_call.1} parent=5 // pred_fallthru
        _
      %p3003 = scmp.le.s32.totalorder 2, %s14
      // Predicated region
      $region87: #{tpu_custom_call.1} parent=5 // pred_check
        %p3004 = pneg %p3003
      $region88: #{tpu_custom_call.1} parent=5 // pred_check_branch
        %3006 = sbr.rel (%p3004) target = $region90
      $region89: #{tpu_custom_call.1} parent=5 // pred_region
        %s3007 = ssub.s32 %s14, 2
        // Predicated region
        $region91: #{tpu_custom_call.1} parent=89 // pred_check
          %p3008 = pneg %p177
        $region92: #{tpu_custom_call.1} parent=89 // pred_check_branch
          %3010 = sbr.rel (%p3008) target = $region94
        $region93: #{tpu_custom_call.1} parent=89 // pred_region
          %s3011 = sand.u32 %s162, 1
          %s3012 = scalar_lea.sflag [#allocation5], %s3011
          %s3013 = sand.u32 %s162, 1
          %s3014 = smul.addr %s3013, 512
          %s3015 = scalar_lea.vmem [#allocation4], %s3014
          %3016 = dma.done %s3012, 8192
        $region94: #{tpu_custom_call.1} parent=89 // pred_fallthru
          _
      $region90: #{tpu_custom_call.1} parent=5 // pred_fallthru
        _
    $region6: #{tpu_custom_call.1} parent=1 // loop_footer
      %s18 = sadd.s32 1, %s14
    $region7: #{tpu_custom_call.1} parent=1 // loop_footer_branch
      %13 = sbr.rel target = $region3
    $region8: #{tpu_custom_call.1} parent=1 // loop_exit
      _
    %3017 = vsyncpa [#allocation5], 1
    %s3018 = scalar_lea.sflag [#allocation5], 1
    %3019 = vsyncpa %s3018, 1

</llo_original>
